<compile_context>
chip_gen: v6e
topology: v6e:2x2x1
jax: 0.10.0
libtpu: 0.0.40
codegen_flags: <defaults>
</compile_context>

<pallas_src>
import functools

import jax
import jax.numpy as jnp
from jax.experimental import pallas as pl
from jax.experimental.pallas import tpu as pltpu


# -----------------------------------------------------------------------------
# Fused Pallas kernel: conv3x3+ReLU -> conv3x3+ReLU -> GAP -> Linear -> LeakyReLU
#                      -> (Dropout = identity) -> Linear, for ALL branches at once.
# -----------------------------------------------------------------------------
def _fused_forward_kernel(xpad_ref, w1_ref, b1_ref, w2_ref, b2_ref,
                          wh1_ref, bh1_ref, wh2_ref, bh2_ref,
                          out_ref, h1pad_ref, *, H, W):
    # xpad_ref : (TB, H+2, W+2, S)   bf16   spatially padded input (one channel/branch)
    # w1_ref   : (9, S, S*feat1)     bf16   block-diagonal, replication-folded conv1 taps
    # b1_ref   : (1, S*feat1)        f32
    # w2_ref   : (9, S*feat1, S*feat2) bf16 block-diagonal conv2 taps
    # b2_ref   : (1, S*feat2)        f32
    # wh1_ref  : (S*feat2, hidden)   f32
    # bh1_ref  : (1, hidden)         f32
    # wh2_ref  : (hidden, ncls)      f32
    # bh2_ref  : (1, ncls)           f32
    # out_ref  : (TB, 1, ncls)       f32
    # h1pad_ref: (TB, H+2, W+2, S*feat1) f32 VMEM scratch (zero-padded conv1 output)
    TB = xpad_ref.shape[0]
    S = xpad_ref.shape[3]
    C1 = w1_ref.shape[2]
    C2 = w2_ref.shape[2]
    M = TB * H * W

    xpad = xpad_ref[...]                       # (TB, H+2, W+2, S) bf16
    w1 = w1_ref[...]                           # (9, S, C1) bf16

    # ---- conv1: 9 tap-shifted matmuls, block-diagonal weights (all branches at once)
    acc = jnp.zeros((M, C1), jnp.float32)
    for t in range(9):
        dy, dx = divmod(t, 3)
        patch = xpad[:, dy:dy + H, dx:dx + W, :].reshape(M, S)          # bf16
        acc = acc + jnp.dot(patch, w1[t], preferred_element_type=jnp.float32)
    h1 = jnp.maximum(acc + b1_ref[...], 0.0)   # f32 bias + ReLU epilogue, (M, C1)

    # ---- zero-padded copy of h1 in VMEM for the second 3x3 conv (border stays zero)
    h1pad_ref[...] = jnp.zeros_like(h1pad_ref)
    h1pad_ref[:, 1:1 + H, 1:1 + W, :] = h1.reshape(TB, H, W, C1)

    # ---- conv2: 9 tap-shifted matmuls, block-diagonal weights
    w2 = w2_ref[...]                           # (9, C1, C2) bf16
    acc = jnp.zeros((M, C2), jnp.float32)
    for t in range(9):
        dy, dx = divmod(t, 3)
        patch = h1pad_ref[:, dy:dy + H, dx:dx + W, :].astype(jnp.bfloat16)
        patch = patch.reshape(M, C1)
        acc = acc + jnp.dot(patch, w2[t], preferred_element_type=jnp.float32)
    h2 = jnp.maximum(acc + b2_ref[...], 0.0)   # (M, C2) f32

    # ---- fused global average pool (branch features stay concatenated / lane-dense)
    pooled = jnp.sum(h2.reshape(TB, H * W, C2), axis=1) * (1.0 / float(H * W))

    # ---- classification head: Linear -> LeakyReLU -> Dropout(identity) -> Linear
    hid = jnp.dot(pooled, wh1_ref[...], preferred_element_type=jnp.float32) + bh1_ref[...]
    hid = jnp.where(hid > 0.0, hid, 0.01 * hid)        # PyTorch default negative_slope
    logits = jnp.dot(hid, wh2_ref[...], preferred_element_type=jnp.float32) + bh2_ref[...]
    out_ref[...] = logits.reshape(TB, 1, logits.shape[-1]).astype(out_ref.dtype)


# -----------------------------------------------------------------------------
# Parameter helpers
# -----------------------------------------------------------------------------
def init_params(key, separate_inputs, feat1=8, feat2=16, hidden=32, num_classes=5):
    """Per-branch conv weights in PyTorch-equivalent im2col layout + MLP head."""
    params = {"branches": [], "head": {}}
    keys = jax.random.split(key, separate_inputs * 4 + 4)
    k = 0
    for _ in range(separate_inputs):
        w1 = jax.random.normal(keys[k], (9 * 3, feat1), jnp.float32) * 0.1; k += 1
        b1 = jax.random.normal(keys[k], (feat1,), jnp.float32) * 0.01;      k += 1
        w2 = jax.random.normal(keys[k], (9 * feat1, feat2), jnp.float32) * 0.1; k += 1
        b2 = jax.random.normal(keys[k], (feat2,), jnp.float32) * 0.01;          k += 1
        params["branches"].append({"w1": w1, "b1": b1, "w2": w2, "b2": b2})
    ct = separate_inputs * feat2
    params["head"]["w1"] = jax.random.normal(keys[k], (ct, hidden), jnp.float32) * 0.1; k += 1
    params["head"]["b1"] = jax.random.normal(keys[k], (hidden,), jnp.float32) * 0.01;   k += 1
    params["head"]["w2"] = jax.random.normal(keys[k], (hidden, num_classes), jnp.float32) * 0.1; k += 1
    params["head"]["b2"] = jax.random.normal(keys[k], (num_classes,), jnp.float32) * 0.01
    return params


def prepare_kernel_params(params, S, feat1, feat2):
    """Fold the 3x channel replication into conv1 and build block-diagonal
    per-tap weights so the grouped (per-branch) convs become single dense matmuls."""
    C1, C2 = S * feat1, S * feat2
    w1_bd = jnp.zeros((9, S, C1), jnp.float32)
    w2_bd = jnp.zeros((9, C1, C2), jnp.float32)
    b1_list, b2_list = [], []
    for s, p in enumerate(params["branches"]):
        # rows of w1 are (tap-major, cin-minor); the 3 replicated channels are identical,
        # so summing their weights is mathematically identical to replicating the input.
        w1_fold = p["w1"].reshape(9, 3, feat1).sum(axis=1)               # (9, feat1)
        w1_bd = w1_bd.at[:, s, s * feat1:(s + 1) * feat1].set(w1_fold)
        w2_r = p["w2"].reshape(9, feat1, feat2)                          # (9, feat1, feat2)
        w2_bd = w2_bd.at[:, s * feat1:(s + 1) * feat1,
                         s * feat2:(s + 1) * feat2].set(w2_r)
        b1_list.append(p["b1"]); b2_list.append(p["b2"])
    return dict(
        w1=w1_bd.astype(jnp.bfloat16),
        b1=jnp.concatenate(b1_list).reshape(1, C1).astype(jnp.float32),
        w2=w2_bd.astype(jnp.bfloat16),
        b2=jnp.concatenate(b2_list).reshape(1, C2).astype(jnp.float32),
        wh1=params["head"]["w1"].astype(jnp.float32),
        bh1=params["head"]["b1"].reshape(1, -1).astype(jnp.float32),
        wh2=params["head"]["w2"].astype(jnp.float32),
        bh2=params["head"]["b2"].reshape(1, -1).astype(jnp.float32),
    )


# -----------------------------------------------------------------------------
# Forward pass (single fused pallas_call, grid over batch tiles)
# -----------------------------------------------------------------------------
def base_model_sep_in_forward(params, x_nchw, separate_inputs,
                              feat1=8, feat2=16, batch_tile=1):
    B, C, H, W = x_nchw.shape
    if C < separate_inputs:
        raise ValueError(
            f"Can't split. Input data has {C} channels whereas "
            f"separate_inputs parameter is {separate_inputs}."
        )
    S = separate_inputs
    C1, C2 = S * feat1, S * feat2
    kp = prepare_kernel_params(params, S, feat1, feat2)
    hidden = kp["wh1"].shape[1]
    ncls = kp["wh2"].shape[1]

    # NCHW -> NHWC, keep only the first S channels (what the branches consume),
    # pad spatially once for the 3x3 convs, cast to bf16 to halve HBM bytes.
    x = jnp.transpose(x_nchw[:, :S], (0, 2, 3, 1))
    xpad = jnp.pad(x, ((0, 0), (1, 1), (1, 1), (0, 0))).astype(jnp.bfloat16)

    TB = batch_tile
    assert B % TB == 0, "batch must be divisible by batch_tile"
    grid = (B // TB,)

    kernel = functools.partial(_fused_forward_kernel, H=H, W=W)
    out = pl.pallas_call(
        kernel,
        grid=grid,
        in_specs=[
            pl.BlockSpec((TB, H + 2, W + 2, S), lambda b: (b, 0, 0, 0)),
            pl.BlockSpec((9, S, C1), lambda b: (0, 0, 0)),
            pl.BlockSpec((1, C1), lambda b: (0, 0)),
            pl.BlockSpec((9, C1, C2), lambda b: (0, 0, 0)),
            pl.BlockSpec((1, C2), lambda b: (0, 0)),
            pl.BlockSpec((C2, hidden), lambda b: (0, 0)),
            pl.BlockSpec((1, hidden), lambda b: (0, 0)),
            pl.BlockSpec((hidden, ncls), lambda b: (0, 0)),
            pl.BlockSpec((1, ncls), lambda b: (0, 0)),
        ],
        out_specs=pl.BlockSpec((TB, 1, ncls), lambda b: (b, 0, 0)),
        out_shape=jax.ShapeDtypeStruct((B, 1, ncls), jnp.float32),
        scratch_shapes=[pltpu.VMEM((TB, H + 2, W + 2, C1), jnp.float32)],
        compiler_params=pltpu.CompilerParams(
            dimension_semantics=("parallel",),       # batch axis is independent
            vmem_limit_bytes=32 * 1024 * 1024,       # explicit, portable (v5e/v6e/v7x)
        ),
    )(xpad, kp["w1"], kp["b1"], kp["w2"], kp["b2"],
      kp["wh1"], kp["bh1"], kp["wh2"], kp["bh2"])
    return out[:, 0, :]                              # (B, num_classes)


# -----------------------------------------------------------------------------
# Straightforward per-branch f32 reference (mirrors the PyTorch forward) for checking
# -----------------------------------------------------------------------------
def _ref_conv3x3_relu(x, w_flat, b):
    B, H, W, C = x.shape
    xp = jnp.pad(x, ((0, 0), (1, 1), (1, 1), (0, 0)))
    cols = []
    for dy in range(3):
        for dx in range(3):
            cols.append(xp[:, dy:dy + H, dx:dx + W, :])
    col = jnp.concatenate(cols, axis=-1)                       # (B,H,W,9*C) tap-major
    out = jnp.einsum("bhwk,kn->bhwn", col, w_flat) + b
    return jnp.maximum(out, 0.0)


def reference_forward(params, x_nchw, separate_inputs):
    x = jnp.transpose(x_nchw, (0, 2, 3, 1)).astype(jnp.float32)
    feats = []
    for i in range(separate_inputs):
        xi = x[..., i:i + 1]
        xi3 = jnp.concatenate([xi, xi, xi], axis=-1)           # replicate to 3 channels
        p = params["branches"][i]
        h = _ref_conv3x3_relu(xi3, p["w1"], p["b1"])
        h = _ref_conv3x3_relu(h, p["w2"], p["b2"])
        feats.append(h)
    f = jnp.concatenate(feats, axis=-1)                        # concat along channels
    pooled = jnp.mean(f, axis=(1, 2))
    hid = pooled @ params["head"]["w1"] + params["head"]["b1"]
    hid = jnp.where(hid > 0.0, hid, 0.01 * hid)
    return hid @ params["head"]["w2"] + params["head"]["b2"]


# -----------------------------------------------------------------------------
if __name__ == "__main__":
    B, C, H, W = 2, 4, 16, 16
    separate_inputs = 4
    feat1, feat2, hidden, num_classes = 8, 16, 32, 5

    key = jax.random.PRNGKey(0)
    kx, kp = jax.random.split(key)
    x = jax.random.normal(kx, (B, C, H, W), jnp.float32)
    params = init_params(kp, separate_inputs, feat1, feat2, hidden, num_classes)

    out = base_model_sep_in_forward(params, x, separate_inputs,
                                    feat1=feat1, feat2=feat2)
    out = jax.block_until_ready(out)
    assert out.shape == (B, num_classes), out.shape

    # numerical sanity check vs. the per-branch f32 reference (kernel uses bf16 matmuls)
    ref = jax.block_until_ready(reference_forward(params, x, separate_inputs))
    max_err = float(jnp.max(jnp.abs(out - ref)))
    assert max_err < 2e-2, f"max abs error {max_err}"

    print("KERNEL_OK")
</pallas_src>

<mosaic_0001>
module attributes {stable_mosaic.version = 11 : i64} {
  func.func @_fused_forward_kernel(%arg0: i32, %arg1: memref<1x18x18x4xbf16, #tpu.memory_space<vmem>>, %arg2: memref<9x4x32xbf16, #tpu.memory_space<vmem>>, %arg3: memref<1x32xf32, #tpu.memory_space<vmem>>, %arg4: memref<9x32x64xbf16, #tpu.memory_space<vmem>>, %arg5: memref<1x64xf32, #tpu.memory_space<vmem>>, %arg6: memref<64x32xf32, #tpu.memory_space<vmem>>, %arg7: memref<1x32xf32, #tpu.memory_space<vmem>>, %arg8: memref<32x5xf32, #tpu.memory_space<vmem>>, %arg9: memref<1x5xf32, #tpu.memory_space<vmem>>, %arg10: memref<1x1x5xf32, #tpu.memory_space<vmem>>, %arg11: memref<1x18x18x32xf32, #tpu.memory_space<vmem>>) attributes {dimension_semantics = [#tpu.dimension_semantics<parallel>], iteration_bounds = array<i64: 2>, scalar_prefetch = 0 : i64, scratch_operands = 1 : i64, tpu.core_type = #tpu.core_type<tc>, window_params = [{transform_indices = @transform_0, window_bounds = array<i64: 1, 18, 18, 4>}, {pipeline_mode = #tpu.pipeline_mode<synchronous>, transform_indices = @transform_1, window_bounds = array<i64: 9, 4, 32>}, {pipeline_mode = #tpu.pipeline_mode<synchronous>, transform_indices = @transform_2, window_bounds = array<i64: 1, 32>}, {pipeline_mode = #tpu.pipeline_mode<synchronous>, transform_indices = @transform_3, window_bounds = array<i64: 9, 32, 64>}, {pipeline_mode = #tpu.pipeline_mode<synchronous>, transform_indices = @transform_4, window_bounds = array<i64: 1, 64>}, {pipeline_mode = #tpu.pipeline_mode<synchronous>, transform_indices = @transform_5, window_bounds = array<i64: 64, 32>}, {pipeline_mode = #tpu.pipeline_mode<synchronous>, transform_indices = @transform_6, window_bounds = array<i64: 1, 32>}, {pipeline_mode = #tpu.pipeline_mode<synchronous>, transform_indices = @transform_7, window_bounds = array<i64: 32, 5>}, {pipeline_mode = #tpu.pipeline_mode<synchronous>, transform_indices = @transform_8, window_bounds = array<i64: 1, 5>}, {transform_indices = @transform_9, window_bounds = array<i64: 1, 1, 5>}]} {
    %c0 = arith.constant 0 : index
    %c0_0 = arith.constant 0 : index
    %c0_1 = arith.constant 0 : index
    %c0_2 = arith.constant 0 : index
    %0 = vector.load %arg1[%c0, %c0_0, %c0_1, %c0_2] : memref<1x18x18x4xbf16, #tpu.memory_space<vmem>>, vector<1x18x18x4xbf16>
    %c0_3 = arith.constant 0 : index
    %c0_4 = arith.constant 0 : index
    %c0_5 = arith.constant 0 : index
    %1 = vector.load %arg2[%c0_3, %c0_4, %c0_5] : memref<9x4x32xbf16, #tpu.memory_space<vmem>>, vector<9x4x32xbf16>
    %cst = arith.constant 0.000000e+00 : f32
    %2 = vector.broadcast %cst : f32 to vector<256x32xf32>
    %3 = vector.extract_strided_slice %0 {offsets = [0, 0, 0, 0], sizes = [1, 16, 16, 4], strides = [1, 1, 1, 1]} : vector<1x18x18x4xbf16> to vector<1x16x16x4xbf16>
    %4 = vector.shape_cast %3 : vector<1x16x16x4xbf16> to vector<256x4xbf16>
    %5 = vector.extract_strided_slice %1 {offsets = [0, 0, 0], sizes = [1, 4, 32], strides = [1, 1, 1]} : vector<9x4x32xbf16> to vector<1x4x32xbf16>
    %6 = vector.shape_cast %5 : vector<1x4x32xbf16> to vector<4x32xbf16>
    %cst_6 = arith.constant dense<0.000000e+00> : vector<256x32xf32>
    %7 = tpu.matmul %4, %6, %cst_6 {dimension_numbers = #tpu.dot_dimension_numbers<[1], [0], [0], [1], [0, 0, 1, 1], [], []>} : vector<256x4xbf16>, vector<4x32xbf16>, vector<256x32xf32> -> vector<256x32xf32>
    %8 = arith.addf %2, %7 : vector<256x32xf32>
    %9 = vector.extract_strided_slice %0 {offsets = [0, 0, 1, 0], sizes = [1, 16, 16, 4], strides = [1, 1, 1, 1]} : vector<1x18x18x4xbf16> to vector<1x16x16x4xbf16>
    %10 = vector.shape_cast %9 : vector<1x16x16x4xbf16> to vector<256x4xbf16>
    %11 = vector.extract_strided_slice %1 {offsets = [1, 0, 0], sizes = [1, 4, 32], strides = [1, 1, 1]} : vector<9x4x32xbf16> to vector<1x4x32xbf16>
    %12 = vector.shape_cast %11 : vector<1x4x32xbf16> to vector<4x32xbf16>
    %cst_7 = arith.constant dense<0.000000e+00> : vector<256x32xf32>
    %13 = tpu.matmul %10, %12, %cst_7 {dimension_numbers = #tpu.dot_dimension_numbers<[1], [0], [0], [1], [0, 0, 1, 1], [], []>} : vector<256x4xbf16>, vector<4x32xbf16>, vector<256x32xf32> -> vector<256x32xf32>
    %14 = arith.addf %8, %13 : vector<256x32xf32>
    %15 = vector.extract_strided_slice %0 {offsets = [0, 0, 2, 0], sizes = [1, 16, 16, 4], strides = [1, 1, 1, 1]} : vector<1x18x18x4xbf16> to vector<1x16x16x4xbf16>
    %16 = vector.shape_cast %15 : vector<1x16x16x4xbf16> to vector<256x4xbf16>
    %17 = vector.extract_strided_slice %1 {offsets = [2, 0, 0], sizes = [1, 4, 32], strides = [1, 1, 1]} : vector<9x4x32xbf16> to vector<1x4x32xbf16>
    %18 = vector.shape_cast %17 : vector<1x4x32xbf16> to vector<4x32xbf16>
    %cst_8 = arith.constant dense<0.000000e+00> : vector<256x32xf32>
    %19 = tpu.matmul %16, %18, %cst_8 {dimension_numbers = #tpu.dot_dimension_numbers<[1], [0], [0], [1], [0, 0, 1, 1], [], []>} : vector<256x4xbf16>, vector<4x32xbf16>, vector<256x32xf32> -> vector<256x32xf32>
    %20 = arith.addf %14, %19 : vector<256x32xf32>
    %21 = vector.extract_strided_slice %0 {offsets = [0, 1, 0, 0], sizes = [1, 16, 16, 4], strides = [1, 1, 1, 1]} : vector<1x18x18x4xbf16> to vector<1x16x16x4xbf16>
    %22 = vector.shape_cast %21 : vector<1x16x16x4xbf16> to vector<256x4xbf16>
    %23 = vector.extract_strided_slice %1 {offsets = [3, 0, 0], sizes = [1, 4, 32], strides = [1, 1, 1]} : vector<9x4x32xbf16> to vector<1x4x32xbf16>
    %24 = vector.shape_cast %23 : vector<1x4x32xbf16> to vector<4x32xbf16>
    %cst_9 = arith.constant dense<0.000000e+00> : vector<256x32xf32>
    %25 = tpu.matmul %22, %24, %cst_9 {dimension_numbers = #tpu.dot_dimension_numbers<[1], [0], [0], [1], [0, 0, 1, 1], [], []>} : vector<256x4xbf16>, vector<4x32xbf16>, vector<256x32xf32> -> vector<256x32xf32>
    %26 = arith.addf %20, %25 : vector<256x32xf32>
    %27 = vector.extract_strided_slice %0 {offsets = [0, 1, 1, 0], sizes = [1, 16, 16, 4], strides = [1, 1, 1, 1]} : vector<1x18x18x4xbf16> to vector<1x16x16x4xbf16>
    %28 = vector.shape_cast %27 : vector<1x16x16x4xbf16> to vector<256x4xbf16>
    %29 = vector.extract_strided_slice %1 {offsets = [4, 0, 0], sizes = [1, 4, 32], strides = [1, 1, 1]} : vector<9x4x32xbf16> to vector<1x4x32xbf16>
    %30 = vector.shape_cast %29 : vector<1x4x32xbf16> to vector<4x32xbf16>
    %cst_10 = arith.constant dense<0.000000e+00> : vector<256x32xf32>
    %31 = tpu.matmul %28, %30, %cst_10 {dimension_numbers = #tpu.dot_dimension_numbers<[1], [0], [0], [1], [0, 0, 1, 1], [], []>} : vector<256x4xbf16>, vector<4x32xbf16>, vector<256x32xf32> -> vector<256x32xf32>
    %32 = arith.addf %26, %31 : vector<256x32xf32>
    %33 = vector.extract_strided_slice %0 {offsets = [0, 1, 2, 0], sizes = [1, 16, 16, 4], strides = [1, 1, 1, 1]} : vector<1x18x18x4xbf16> to vector<1x16x16x4xbf16>
    %34 = vector.shape_cast %33 : vector<1x16x16x4xbf16> to vector<256x4xbf16>
    %35 = vector.extract_strided_slice %1 {offsets = [5, 0, 0], sizes = [1, 4, 32], strides = [1, 1, 1]} : vector<9x4x32xbf16> to vector<1x4x32xbf16>
    %36 = vector.shape_cast %35 : vector<1x4x32xbf16> to vector<4x32xbf16>
    %cst_11 = arith.constant dense<0.000000e+00> : vector<256x32xf32>
    %37 = tpu.matmul %34, %36, %cst_11 {dimension_numbers = #tpu.dot_dimension_numbers<[1], [0], [0], [1], [0, 0, 1, 1], [], []>} : vector<256x4xbf16>, vector<4x32xbf16>, vector<256x32xf32> -> vector<256x32xf32>
    %38 = arith.addf %32, %37 : vector<256x32xf32>
    %39 = vector.extract_strided_slice %0 {offsets = [0, 2, 0, 0], sizes = [1, 16, 16, 4], strides = [1, 1, 1, 1]} : vector<1x18x18x4xbf16> to vector<1x16x16x4xbf16>
    %40 = vector.shape_cast %39 : vector<1x16x16x4xbf16> to vector<256x4xbf16>
    %41 = vector.extract_strided_slice %1 {offsets = [6, 0, 0], sizes = [1, 4, 32], strides = [1, 1, 1]} : vector<9x4x32xbf16> to vector<1x4x32xbf16>
    %42 = vector.shape_cast %41 : vector<1x4x32xbf16> to vector<4x32xbf16>
    %cst_12 = arith.constant dense<0.000000e+00> : vector<256x32xf32>
    %43 = tpu.matmul %40, %42, %cst_12 {dimension_numbers = #tpu.dot_dimension_numbers<[1], [0], [0], [1], [0, 0, 1, 1], [], []>} : vector<256x4xbf16>, vector<4x32xbf16>, vector<256x32xf32> -> vector<256x32xf32>
    %44 = arith.addf %38, %43 : vector<256x32xf32>
    %45 = vector.extract_strided_slice %0 {offsets = [0, 2, 1, 0], sizes = [1, 16, 16, 4], strides = [1, 1, 1, 1]} : vector<1x18x18x4xbf16> to vector<1x16x16x4xbf16>
    %46 = vector.shape_cast %45 : vector<1x16x16x4xbf16> to vector<256x4xbf16>
    %47 = vector.extract_strided_slice %1 {offsets = [7, 0, 0], sizes = [1, 4, 32], strides = [1, 1, 1]} : vector<9x4x32xbf16> to vector<1x4x32xbf16>
    %48 = vector.shape_cast %47 : vector<1x4x32xbf16> to vector<4x32xbf16>
    %cst_13 = arith.constant dense<0.000000e+00> : vector<256x32xf32>
    %49 = tpu.matmul %46, %48, %cst_13 {dimension_numbers = #tpu.dot_dimension_numbers<[1], [0], [0], [1], [0, 0, 1, 1], [], []>} : vector<256x4xbf16>, vector<4x32xbf16>, vector<256x32xf32> -> vector<256x32xf32>
    %50 = arith.addf %44, %49 : vector<256x32xf32>
    %51 = vector.extract_strided_slice %0 {offsets = [0, 2, 2, 0], sizes = [1, 16, 16, 4], strides = [1, 1, 1, 1]} : vector<1x18x18x4xbf16> to vector<1x16x16x4xbf16>
    %52 = vector.shape_cast %51 : vector<1x16x16x4xbf16> to vector<256x4xbf16>
    %53 = vector.extract_strided_slice %1 {offsets = [8, 0, 0], sizes = [1, 4, 32], strides = [1, 1, 1]} : vector<9x4x32xbf16> to vector<1x4x32xbf16>
    %54 = vector.shape_cast %53 : vector<1x4x32xbf16> to vector<4x32xbf16>
    %cst_14 = arith.constant dense<0.000000e+00> : vector<256x32xf32>
    %55 = tpu.matmul %52, %54, %cst_14 {dimension_numbers = #tpu.dot_dimension_numbers<[1], [0], [0], [1], [0, 0, 1, 1], [], []>} : vector<256x4xbf16>, vector<4x32xbf16>, vector<256x32xf32> -> vector<256x32xf32>
    %56 = arith.addf %50, %55 : vector<256x32xf32>
    %c0_15 = arith.constant 0 : index
    %c0_16 = arith.constant 0 : index
    %57 = vector.load %arg3[%c0_15, %c0_16] : memref<1x32xf32, #tpu.memory_space<vmem>>, vector<1x32xf32>
    %58 = vector.broadcast %57 : vector<1x32xf32> to vector<256x32xf32>
    %59 = arith.addf %56, %58 : vector<256x32xf32>
    %cst_17 = arith.constant 0.000000e+00 : f32
    %60 = vector.broadcast %cst_17 : f32 to vector<256x32xf32>
    %61 = arith.maximumf %59, %60 : vector<256x32xf32>
    %cst_18 = arith.constant 0.000000e+00 : f32
    %62 = vector.broadcast %cst_18 : f32 to vector<1x18x18x32xf32>
    %c0_19 = arith.constant 0 : index
    %c0_20 = arith.constant 0 : index
    %c0_21 = arith.constant 0 : index
    %c0_22 = arith.constant 0 : index
    %63 = vector.load %arg11[%c0_19, %c0_20, %c0_21, %c0_22] : memref<1x18x18x32xf32, #tpu.memory_space<vmem>>, vector<1x18x18x32xf32>
    tpu.vector_store %arg11[%c0_19, %c0_20, %c0_21, %c0_22], %62 {strides = array<i32>} : memref<1x18x18x32xf32, #tpu.memory_space<vmem>>, vector<1x18x18x32xf32>,
    %64 = vector.shape_cast %61 : vector<256x32xf32> to vector<1x16x16x32xf32>
    %c0_23 = arith.constant 0 : index
    %c1 = arith.constant 1 : index
    %c1_24 = arith.constant 1 : index
    %c0_25 = arith.constant 0 : index
    %65 = vector.load %arg11[%c0_23, %c1, %c1_24, %c0_25] : memref<1x18x18x32xf32, #tpu.memory_space<vmem>>, vector<1x16x16x32xf32>
    tpu.vector_store %arg11[%c0_23, %c1, %c1_24, %c0_25], %64 {strides = array<i32>} : memref<1x18x18x32xf32, #tpu.memory_space<vmem>>, vector<1x16x16x32xf32>,
    %c0_26 = arith.constant 0 : index
    %c0_27 = arith.constant 0 : index
    %c0_28 = arith.constant 0 : index
    %66 = vector.load %arg4[%c0_26, %c0_27, %c0_28] : memref<9x32x64xbf16, #tpu.memory_space<vmem>>, vector<9x32x64xbf16>
    %cst_29 = arith.constant 0.000000e+00 : f32
    %67 = vector.broadcast %cst_29 : f32 to vector<256x64xf32>
    %c0_30 = arith.constant 0 : index
    %c0_31 = arith.constant 0 : index
    %c0_32 = arith.constant 0 : index
    %c0_33 = arith.constant 0 : index
    %68 = vector.load %arg11[%c0_30, %c0_31, %c0_32, %c0_33] : memref<1x18x18x32xf32, #tpu.memory_space<vmem>>, vector<1x16x16x32xf32>
    %69 = arith.truncf %68 : vector<1x16x16x32xf32> to vector<1x16x16x32xbf16>
    %70 = vector.shape_cast %69 : vector<1x16x16x32xbf16> to vector<256x32xbf16>
    %71 = vector.extract_strided_slice %66 {offsets = [0, 0, 0], sizes = [1, 32, 64], strides = [1, 1, 1]} : vector<9x32x64xbf16> to vector<1x32x64xbf16>
    %72 = vector.shape_cast %71 : vector<1x32x64xbf16> to vector<32x64xbf16>
    %cst_34 = arith.constant dense<0.000000e+00> : vector<256x64xf32>
    %73 = tpu.matmul %70, %72, %cst_34 {dimension_numbers = #tpu.dot_dimension_numbers<[1], [0], [0], [1], [0, 0, 1, 1], [], []>} : vector<256x32xbf16>, vector<32x64xbf16>, vector<256x64xf32> -> vector<256x64xf32>
    %74 = arith.addf %67, %73 : vector<256x64xf32>
    %c0_35 = arith.constant 0 : index
    %c0_36 = arith.constant 0 : index
    %c1_37 = arith.constant 1 : index
    %c0_38 = arith.constant 0 : index
    %75 = vector.load %arg11[%c0_35, %c0_36, %c1_37, %c0_38] : memref<1x18x18x32xf32, #tpu.memory_space<vmem>>, vector<1x16x16x32xf32>
    %76 = arith.truncf %75 : vector<1x16x16x32xf32> to vector<1x16x16x32xbf16>
    %77 = vector.shape_cast %76 : vector<1x16x16x32xbf16> to vector<256x32xbf16>
    %78 = vector.extract_strided_slice %66 {offsets = [1, 0, 0], sizes = [1, 32, 64], strides = [1, 1, 1]} : vector<9x32x64xbf16> to vector<1x32x64xbf16>
    %79 = vector.shape_cast %78 : vector<1x32x64xbf16> to vector<32x64xbf16>
    %cst_39 = arith.constant dense<0.000000e+00> : vector<256x64xf32>
    %80 = tpu.matmul %77, %79, %cst_39 {dimension_numbers = #tpu.dot_dimension_numbers<[1], [0], [0], [1], [0, 0, 1, 1], [], []>} : vector<256x32xbf16>, vector<32x64xbf16>, vector<256x64xf32> -> vector<256x64xf32>
    %81 = arith.addf %74, %80 : vector<256x64xf32>
    %c0_40 = arith.constant 0 : index
    %c0_41 = arith.constant 0 : index
    %c2 = arith.constant 2 : index
    %c0_42 = arith.constant 0 : index
    %82 = vector.load %arg11[%c0_40, %c0_41, %c2, %c0_42] : memref<1x18x18x32xf32, #tpu.memory_space<vmem>>, vector<1x16x16x32xf32>
    %83 = arith.truncf %82 : vector<1x16x16x32xf32> to vector<1x16x16x32xbf16>
    %84 = vector.shape_cast %83 : vector<1x16x16x32xbf16> to vector<256x32xbf16>
    %85 = vector.extract_strided_slice %66 {offsets = [2, 0, 0], sizes = [1, 32, 64], strides = [1, 1, 1]} : vector<9x32x64xbf16> to vector<1x32x64xbf16>
    %86 = vector.shape_cast %85 : vector<1x32x64xbf16> to vector<32x64xbf16>
    %cst_43 = arith.constant dense<0.000000e+00> : vector<256x64xf32>
    %87 = tpu.matmul %84, %86, %cst_43 {dimension_numbers = #tpu.dot_dimension_numbers<[1], [0], [0], [1], [0, 0, 1, 1], [], []>} : vector<256x32xbf16>, vector<32x64xbf16>, vector<256x64xf32> -> vector<256x64xf32>
    %88 = arith.addf %81, %87 : vector<256x64xf32>
    %c0_44 = arith.constant 0 : index
    %c1_45 = arith.constant 1 : index
    %c0_46 = arith.constant 0 : index
    %c0_47 = arith.constant 0 : index
    %89 = vector.load %arg11[%c0_44, %c1_45, %c0_46, %c0_47] : memref<1x18x18x32xf32, #tpu.memory_space<vmem>>, vector<1x16x16x32xf32>
    %90 = arith.truncf %89 : vector<1x16x16x32xf32> to vector<1x16x16x32xbf16>
    %91 = vector.shape_cast %90 : vector<1x16x16x32xbf16> to vector<256x32xbf16>
    %92 = vector.extract_strided_slice %66 {offsets = [3, 0, 0], sizes = [1, 32, 64], strides = [1, 1, 1]} : vector<9x32x64xbf16> to vector<1x32x64xbf16>
    %93 = vector.shape_cast %92 : vector<1x32x64xbf16> to vector<32x64xbf16>
    %cst_48 = arith.constant dense<0.000000e+00> : vector<256x64xf32>
    %94 = tpu.matmul %91, %93, %cst_48 {dimension_numbers = #tpu.dot_dimension_numbers<[1], [0], [0], [1], [0, 0, 1, 1], [], []>} : vector<256x32xbf16>, vector<32x64xbf16>, vector<256x64xf32> -> vector<256x64xf32>
    %95 = arith.addf %88, %94 : vector<256x64xf32>
    %c0_49 = arith.constant 0 : index
    %c1_50 = arith.constant 1 : index
    %c1_51 = arith.constant 1 : index
    %c0_52 = arith.constant 0 : index
    %96 = vector.load %arg11[%c0_49, %c1_50, %c1_51, %c0_52] : memref<1x18x18x32xf32, #tpu.memory_space<vmem>>, vector<1x16x16x32xf32>
    %97 = arith.truncf %96 : vector<1x16x16x32xf32> to vector<1x16x16x32xbf16>
    %98 = vector.shape_cast %97 : vector<1x16x16x32xbf16> to vector<256x32xbf16>
    %99 = vector.extract_strided_slice %66 {offsets = [4, 0, 0], sizes = [1, 32, 64], strides = [1, 1, 1]} : vector<9x32x64xbf16> to vector<1x32x64xbf16>
    %100 = vector.shape_cast %99 : vector<1x32x64xbf16> to vector<32x64xbf16>
    %cst_53 = arith.constant dense<0.000000e+00> : vector<256x64xf32>
    %101 = tpu.matmul %98, %100, %cst_53 {dimension_numbers = #tpu.dot_dimension_numbers<[1], [0], [0], [1], [0, 0, 1, 1], [], []>} : vector<256x32xbf16>, vector<32x64xbf16>, vector<256x64xf32> -> vector<256x64xf32>
    %102 = arith.addf %95, %101 : vector<256x64xf32>
    %c0_54 = arith.constant 0 : index
    %c1_55 = arith.constant 1 : index
    %c2_56 = arith.constant 2 : index
    %c0_57 = arith.constant 0 : index
    %103 = vector.load %arg11[%c0_54, %c1_55, %c2_56, %c0_57] : memref<1x18x18x32xf32, #tpu.memory_space<vmem>>, vector<1x16x16x32xf32>
    %104 = arith.truncf %103 : vector<1x16x16x32xf32> to vector<1x16x16x32xbf16>
    %105 = vector.shape_cast %104 : vector<1x16x16x32xbf16> to vector<256x32xbf16>
    %106 = vector.extract_strided_slice %66 {offsets = [5, 0, 0], sizes = [1, 32, 64], strides = [1, 1, 1]} : vector<9x32x64xbf16> to vector<1x32x64xbf16>
    %107 = vector.shape_cast %106 : vector<1x32x64xbf16> to vector<32x64xbf16>
    %cst_58 = arith.constant dense<0.000000e+00> : vector<256x64xf32>
    %108 = tpu.matmul %105, %107, %cst_58 {dimension_numbers = #tpu.dot_dimension_numbers<[1], [0], [0], [1], [0, 0, 1, 1], [], []>} : vector<256x32xbf16>, vector<32x64xbf16>, vector<256x64xf32> -> vector<256x64xf32>
    %109 = arith.addf %102, %108 : vector<256x64xf32>
    %c0_59 = arith.constant 0 : index
    %c2_60 = arith.constant 2 : index
    %c0_61 = arith.constant 0 : index
    %c0_62 = arith.constant 0 : index
    %110 = vector.load %arg11[%c0_59, %c2_60, %c0_61, %c0_62] : memref<1x18x18x32xf32, #tpu.memory_space<vmem>>, vector<1x16x16x32xf32>
    %111 = arith.truncf %110 : vector<1x16x16x32xf32> to vector<1x16x16x32xbf16>
    %112 = vector.shape_cast %111 : vector<1x16x16x32xbf16> to vector<256x32xbf16>
    %113 = vector.extract_strided_slice %66 {offsets = [6, 0, 0], sizes = [1, 32, 64], strides = [1, 1, 1]} : vector<9x32x64xbf16> to vector<1x32x64xbf16>
    %114 = vector.shape_cast %113 : vector<1x32x64xbf16> to vector<32x64xbf16>
    %cst_63 = arith.constant dense<0.000000e+00> : vector<256x64xf32>
    %115 = tpu.matmul %112, %114, %cst_63 {dimension_numbers = #tpu.dot_dimension_numbers<[1], [0], [0], [1], [0, 0, 1, 1], [], []>} : vector<256x32xbf16>, vector<32x64xbf16>, vector<256x64xf32> -> vector<256x64xf32>
    %116 = arith.addf %109, %115 : vector<256x64xf32>
    %c0_64 = arith.constant 0 : index
    %c2_65 = arith.constant 2 : index
    %c1_66 = arith.constant 1 : index
    %c0_67 = arith.constant 0 : index
    %117 = vector.load %arg11[%c0_64, %c2_65, %c1_66, %c0_67] : memref<1x18x18x32xf32, #tpu.memory_space<vmem>>, vector<1x16x16x32xf32>
    %118 = arith.truncf %117 : vector<1x16x16x32xf32> to vector<1x16x16x32xbf16>
    %119 = vector.shape_cast %118 : vector<1x16x16x32xbf16> to vector<256x32xbf16>
    %120 = vector.extract_strided_slice %66 {offsets = [7, 0, 0], sizes = [1, 32, 64], strides = [1, 1, 1]} : vector<9x32x64xbf16> to vector<1x32x64xbf16>
    %121 = vector.shape_cast %120 : vector<1x32x64xbf16> to vector<32x64xbf16>
    %cst_68 = arith.constant dense<0.000000e+00> : vector<256x64xf32>
    %122 = tpu.matmul %119, %121, %cst_68 {dimension_numbers = #tpu.dot_dimension_numbers<[1], [0], [0], [1], [0, 0, 1, 1], [], []>} : vector<256x32xbf16>, vector<32x64xbf16>, vector<256x64xf32> -> vector<256x64xf32>
    %123 = arith.addf %116, %122 : vector<256x64xf32>
    %c0_69 = arith.constant 0 : index
    %c2_70 = arith.constant 2 : index
    %c2_71 = arith.constant 2 : index
    %c0_72 = arith.constant 0 : index
    %124 = vector.load %arg11[%c0_69, %c2_70, %c2_71, %c0_72] : memref<1x18x18x32xf32, #tpu.memory_space<vmem>>, vector<1x16x16x32xf32>
    %125 = arith.truncf %124 : vector<1x16x16x32xf32> to vector<1x16x16x32xbf16>
    %126 = vector.shape_cast %125 : vector<1x16x16x32xbf16> to vector<256x32xbf16>
    %127 = vector.extract_strided_slice %66 {offsets = [8, 0, 0], sizes = [1, 32, 64], strides = [1, 1, 1]} : vector<9x32x64xbf16> to vector<1x32x64xbf16>
    %128 = vector.shape_cast %127 : vector<1x32x64xbf16> to vector<32x64xbf16>
    %cst_73 = arith.constant dense<0.000000e+00> : vector<256x64xf32>
    %129 = tpu.matmul %126, %128, %cst_73 {dimension_numbers = #tpu.dot_dimension_numbers<[1], [0], [0], [1], [0, 0, 1, 1], [], []>} : vector<256x32xbf16>, vector<32x64xbf16>, vector<256x64xf32> -> vector<256x64xf32>
    %130 = arith.addf %123, %129 : vector<256x64xf32>
    %c0_74 = arith.constant 0 : index
    %c0_75 = arith.constant 0 : index
    %131 = vector.load %arg5[%c0_74, %c0_75] : memref<1x64xf32, #tpu.memory_space<vmem>>, vector<1x64xf32>
    %132 = vector.broadcast %131 : vector<1x64xf32> to vector<256x64xf32>
    %133 = arith.addf %130, %132 : vector<256x64xf32>
    %cst_76 = arith.constant 0.000000e+00 : f32
    %134 = vector.broadcast %cst_76 : f32 to vector<256x64xf32>
    %135 = arith.maximumf %133, %134 : vector<256x64xf32>
    %136 = vector.shape_cast %135 : vector<256x64xf32> to vector<1x256x64xf32>
    %cst_77 = arith.constant dense<0.000000e+00> : vector<1x64xf32>
    %137 = vector.multi_reduction <add>, %136, %cst_77 [1] : vector<1x256x64xf32> to vector<1x64xf32>
    %cst_78 = arith.constant 3.906250e-03 : f32
    %138 = vector.broadcast %cst_78 : f32 to vector<1x64xf32>
    %139 = arith.mulf %137, %138 : vector<1x64xf32>
    %c0_79 = arith.constant 0 : index
    %c0_80 = arith.constant 0 : index
    %140 = vector.load %arg6[%c0_79, %c0_80] : memref<64x32xf32, #tpu.memory_space<vmem>>, vector<64x32xf32>
    %cst_81 = arith.constant dense<0.000000e+00> : vector<1x32xf32>
    %141 = tpu.matmul %139, %140, %cst_81 {dimension_numbers = #tpu.dot_dimension_numbers<[1], [0], [0], [1], [0, 0, 1, 1], [], []>} : vector<1x64xf32>, vector<64x32xf32>, vector<1x32xf32> -> vector<1x32xf32>
    %c0_82 = arith.constant 0 : index
    %c0_83 = arith.constant 0 : index
    %142 = vector.load %arg7[%c0_82, %c0_83] : memref<1x32xf32, #tpu.memory_space<vmem>>, vector<1x32xf32>
    %143 = arith.addf %141, %142 : vector<1x32xf32>
    %cst_84 = arith.constant 0.000000e+00 : f32
    %144 = vector.broadcast %cst_84 : f32 to vector<1x32xf32>
    %145 = arith.cmpf ogt, %143, %144 : vector<1x32xf32>
    %cst_85 = arith.constant 0.00999999977 : f32
    %146 = vector.broadcast %cst_85 : f32 to vector<1x32xf32>
    %147 = arith.mulf %146, %143 : vector<1x32xf32>
    %148 = arith.select %145, %143, %147 : vector<1x32xi1>, vector<1x32xf32>
    %c0_86 = arith.constant 0 : index
    %c0_87 = arith.constant 0 : index
    %149 = vector.load %arg8[%c0_86, %c0_87] : memref<32x5xf32, #tpu.memory_space<vmem>>, vector<32x5xf32>
    %cst_88 = arith.constant dense<0.000000e+00> : vector<1x5xf32>
    %150 = tpu.matmul %148, %149, %cst_88 {dimension_numbers = #tpu.dot_dimension_numbers<[1], [0], [0], [1], [0, 0, 1, 1], [], []>} : vector<1x32xf32>, vector<32x5xf32>, vector<1x5xf32> -> vector<1x5xf32>
    %c0_89 = arith.constant 0 : index
    %c0_90 = arith.constant 0 : index
    %151 = vector.load %arg9[%c0_89, %c0_90] : memref<1x5xf32, #tpu.memory_space<vmem>>, vector<1x5xf32>
    %152 = arith.addf %150, %151 : vector<1x5xf32>
    %153 = vector.shape_cast %152 : vector<1x5xf32> to vector<1x1x5xf32>
    %c0_91 = arith.constant 0 : index
    %c0_92 = arith.constant 0 : index
    %c0_93 = arith.constant 0 : index
    %154 = vector.load %arg10[%c0_91, %c0_92, %c0_93] : memref<1x1x5xf32, #tpu.memory_space<vmem>>, vector<1x1x5xf32>
    tpu.vector_store %arg10[%c0_91, %c0_92, %c0_93], %153 {strides = array<i32>} : memref<1x1x5xf32, #tpu.memory_space<vmem>>, vector<1x1x5xf32>,
    return
  }
  func.func @transform_0(%arg0: i32) -> (i32, i32, i32, i32) {
    %c0_i32 = arith.constant 0 : i32
    %c0_i32_0 = arith.constant 0 : i32
    %c0_i32_1 = arith.constant 0 : i32
    %c0_i32_2 = arith.constant 0 : i32
    return %arg0, %c0_i32, %c0_i32_0, %c0_i32_1 : i32, i32, i32, i32
  }
  func.func @transform_1(%arg0: i32) -> (i32, i32, i32) {
    %c0_i32 = arith.constant 0 : i32
    %c0_i32_0 = arith.constant 0 : i32
    %c0_i32_1 = arith.constant 0 : i32
    %c0_i32_2 = arith.constant 0 : i32
    return %c0_i32, %c0_i32_0, %c0_i32_1 : i32, i32, i32
  }
  func.func @transform_2(%arg0: i32) -> (i32, i32) {
    %c0_i32 = arith.constant 0 : i32
    %c0_i32_0 = arith.constant 0 : i32
    %c0_i32_1 = arith.constant 0 : i32
    return %c0_i32, %c0_i32_0 : i32, i32
  }
  func.func @transform_3(%arg0: i32) -> (i32, i32, i32) {
    %c0_i32 = arith.constant 0 : i32
    %c0_i32_0 = arith.constant 0 : i32
    %c0_i32_1 = arith.constant 0 : i32
    %c0_i32_2 = arith.constant 0 : i32
    return %c0_i32, %c0_i32_0, %c0_i32_1 : i32, i32, i32
  }
  func.func @transform_4(%arg0: i32) -> (i32, i32) {
    %c0_i32 = arith.constant 0 : i32
    %c0_i32_0 = arith.constant 0 : i32
    %c0_i32_1 = arith.constant 0 : i32
    return %c0_i32, %c0_i32_0 : i32, i32
  }
  func.func @transform_5(%arg0: i32) -> (i32, i32) {
    %c0_i32 = arith.constant 0 : i32
    %c0_i32_0 = arith.constant 0 : i32
    %c0_i32_1 = arith.constant 0 : i32
    return %c0_i32, %c0_i32_0 : i32, i32
  }
  func.func @transform_6(%arg0: i32) -> (i32, i32) {
    %c0_i32 = arith.constant 0 : i32
    %c0_i32_0 = arith.constant 0 : i32
    %c0_i32_1 = arith.constant 0 : i32
    return %c0_i32, %c0_i32_0 : i32, i32
  }
  func.func @transform_7(%arg0: i32) -> (i32, i32) {
    %c0_i32 = arith.constant 0 : i32
    %c0_i32_0 = arith.constant 0 : i32
    %c0_i32_1 = arith.constant 0 : i32
    return %c0_i32, %c0_i32_0 : i32, i32
  }
  func.func @transform_8(%arg0: i32) -> (i32, i32) {
    %c0_i32 = arith.constant 0 : i32
    %c0_i32_0 = arith.constant 0 : i32
    %c0_i32_1 = arith.constant 0 : i32
    return %c0_i32, %c0_i32_0 : i32, i32
  }
  func.func @transform_9(%arg0: i32) -> (i32, i32, i32) {
    %c0_i32 = arith.constant 0 : i32
    %c0_i32_0 = arith.constant 0 : i32
    %c0_i32_1 = arith.constant 0 : i32
    return %arg0, %c0_i32, %c0_i32_0 : i32, i32, i32
  }
}

</mosaic_0001>

<llo_original>
// kernel: tpu_custom_call.1
$region0: #{tpu_custom_call.1}
  #allocation0 [shape = 'u32[]', space=smem, size = 0x4, offset = 0x4, fixed_abs, tag = 'smem constant byte address 0x4 - core index']
  #allocation1 [shape = 'u32[144,128]{1,0:T(1,128)}', space=vmem, size = 0x12000, scoped, tag = 'internal scratch']
  #allocation2 [shape = 'f32[1,18,18,32]{3,2,1,0:T(8,128)}', space=vmem, size = 0x36000, scoped, tag = 'scratch operand']
  %s0 = inlined_call_operand.vmem [shape: bf16[2,18,18,4], index: 0, kind: input, shape index: {}]
  %s1 = inlined_call_operand.vmem [shape: bf16[9,4,32], index: 1, kind: input, shape index: {}]
  %s2 = inlined_call_operand.vmem [shape: f32[1,32], index: 2, kind: input, shape index: {}]
  %s3 = inlined_call_operand.vmem [shape: bf16[9,32,64], index: 3, kind: input, shape index: {}]
  %s4 = inlined_call_operand.vmem [shape: f32[1,64], index: 4, kind: input, shape index: {}]
  %s5 = inlined_call_operand.vmem [shape: f32[64,32], index: 5, kind: input, shape index: {}]
  %s6 = inlined_call_operand.vmem [shape: f32[1,32], index: 6, kind: input, shape index: {}]
  %s7 = inlined_call_operand.vmem [shape: f32[32,5], index: 7, kind: input, shape index: {}]
  %s8 = inlined_call_operand.vmem [shape: f32[1,5], index: 8, kind: input, shape index: {}]
  %s9 = inlined_call_operand.hbm [shape: f32[2,1,5], index: 9, kind: output, shape index: {}]
  %s10 = sld [smem:[#allocation0]]
  $region69: #{tpu_custom_call.1} parent=0
    _
  %s12 = ssub.s32 1, %s10
  %s13 = scalar_select 0, %s12, %s10
  $region1: #{tpu_custom_call.1} parent=0
    #allocation3 [shape = 'u8[1024]{0}', space=vmem, size = 0x400, scoped, tag = 'output window, operand 0']
    #allocation4 [shape = 's32[2]{0}', space=sflag, size = 0x8, scoped, tag = 'scoped memory for tpu_custom_call.1']
    %14 = vsyncpa [#allocation4], 0
    %s15 = scalar_lea.sflag [#allocation4], 1
    %16 = vsyncpa %s15, 0
    loop: start=0, step=1, limit=4
    $region2: #{tpu_custom_call.1} parent=1 // loop_pre_header
      _
    $region3: #{tpu_custom_call.1} parent=1 // loop_header
      %s18 = sphi 0, %s22
      %p19 = scmp.ge.s32.totalorder %s18, 4
      %s28 = sphi 0, %s30
      %s31 = sphi 0, %s28
      %s32 = sphi 0, %s31
      %s48 = sphi 0, %s32
      %s52 = sphi 0, %s52
      %s54 = sphi 0, %s52
      %s55 = sphi 0, %s54
      %s69 = sphi 0, %s55
      %s73 = sphi 0, %s73
      %s75 = sphi 0, %s73
      %s76 = sphi 0, %s75
      %s90 = sphi 0, %s76
      %s94 = sphi 0, %s94
      %s96 = sphi 0, %s94
      %s97 = sphi 0, %s96
      %s111 = sphi 0, %s97
      %s115 = sphi 0, %s115
      %s117 = sphi 0, %s115
      %s118 = sphi 0, %s117
      %s132 = sphi 0, %s118
      %s136 = sphi 0, %s136
      %s138 = sphi 0, %s136
      %s139 = sphi 0, %s138
      %s153 = sphi 0, %s139
      %s157 = sphi 0, %s157
      %s159 = sphi 0, %s157
      %s160 = sphi 0, %s159
      %s174 = sphi 0, %s160
      %s178 = sphi 0, %s178
      %s180 = sphi 0, %s178
      %s181 = sphi 0, %s180
      %s195 = sphi 0, %s181
      %s199 = sphi 0, %s199
      %s201 = sphi 0, %s199
      %s202 = sphi 0, %s201
      %s216 = sphi 0, %s202
      %s222 = sphi 0, %s224
      %s225 = sphi 0, %s222
      %s226 = sphi 0, %s225
      %s242 = sphi 0, %s226
    $region4: #{tpu_custom_call.1} parent=1 // loop_header_branch
      %21 = sbr.rel (%p19) target = $region8
    $region5: #{tpu_custom_call.1} parent=1 // loop_body
      %s23 = ssub.s32 %s18, 1
      %s24 = ssub.s32 %s18, 2
      %s25 = sadd.s32 %s18, 1
      %s26 = ssub.s32 %s18, %s25
      %p27 = scmp.eq.s32.totalorder %s26, 0
      %s29 = sadd.s32 %s28, 1
      %s30 = scalar_select %p27, %s28, %s29
      %p33 = pneg %p27
      %p34 = scmp.eq.s32.totalorder %s18, 1
      %p35 = por %p33, %p34
      %p36 = scmp.ne.s32.totalorder %s28, %s31
      %p37 = scmp.eq.s32.totalorder %s18, 0
      %p38 = por %p36, %p37
      %p39 = scmp.ne.s32.totalorder %s28, %s31
      %p40 = scmp.eq.s32.totalorder %s23, 1
      %p41 = por %p39, %p40
      %p42 = scmp.ne.s32.totalorder %s31, %s32
      %p43 = scmp.eq.s32.totalorder %s23, 0
      %p44 = por %p42, %p43
      %p45 = scmp.ne.s32.totalorder %s31, %s32
      %p46 = scmp.eq.s32.totalorder %s24, 1
      %p47 = por %p45, %p46
      %p49 = scmp.ne.s32.totalorder %s32, %s48
      %p50 = scmp.eq.s32.totalorder %s24, 0
      %p51 = por %p49, %p50
      %s53 = sadd.s32 %s52, 1
      %p56 = scmp.eq.s32.totalorder %s18, 1
      %p57 = scmp.ne.s32.totalorder %s52, %s54
      %p58 = scmp.eq.s32.totalorder %s18, 0
      %p59 = por %p57, %p58
      %p60 = scmp.ne.s32.totalorder %s52, %s54
      %p61 = scmp.eq.s32.totalorder %s23, 1
      %p62 = por %p60, %p61
      %p63 = scmp.ne.s32.totalorder %s54, %s55
      %p64 = scmp.eq.s32.totalorder %s23, 0
      %p65 = por %p63, %p64
      %p66 = scmp.ne.s32.totalorder %s54, %s55
      %p67 = scmp.eq.s32.totalorder %s24, 1
      %p68 = por %p66, %p67
      %p70 = scmp.ne.s32.totalorder %s55, %s69
      %p71 = scmp.eq.s32.totalorder %s24, 0
      %p72 = por %p70, %p71
      %s74 = sadd.s32 %s73, 1
      %p77 = scmp.eq.s32.totalorder %s18, 1
      %p78 = scmp.ne.s32.totalorder %s73, %s75
      %p79 = scmp.eq.s32.totalorder %s18, 0
      %p80 = por %p78, %p79
      %p81 = scmp.ne.s32.totalorder %s73, %s75
      %p82 = scmp.eq.s32.totalorder %s23, 1
      %p83 = por %p81, %p82
      %p84 = scmp.ne.s32.totalorder %s75, %s76
      %p85 = scmp.eq.s32.totalorder %s23, 0
      %p86 = por %p84, %p85
      %p87 = scmp.ne.s32.totalorder %s75, %s76
      %p88 = scmp.eq.s32.totalorder %s24, 1
      %p89 = por %p87, %p88
      %p91 = scmp.ne.s32.totalorder %s76, %s90
      %p92 = scmp.eq.s32.totalorder %s24, 0
      %p93 = por %p91, %p92
      %s95 = sadd.s32 %s94, 1
      %p98 = scmp.eq.s32.totalorder %s18, 1
      %p99 = scmp.ne.s32.totalorder %s94, %s96
      %p100 = scmp.eq.s32.totalorder %s18, 0
      %p101 = por %p99, %p100
      %p102 = scmp.ne.s32.totalorder %s94, %s96
      %p103 = scmp.eq.s32.totalorder %s23, 1
      %p104 = por %p102, %p103
      %p105 = scmp.ne.s32.totalorder %s96, %s97
      %p106 = scmp.eq.s32.totalorder %s23, 0
      %p107 = por %p105, %p106
      %p108 = scmp.ne.s32.totalorder %s96, %s97
      %p109 = scmp.eq.s32.totalorder %s24, 1
      %p110 = por %p108, %p109
      %p112 = scmp.ne.s32.totalorder %s97, %s111
      %p113 = scmp.eq.s32.totalorder %s24, 0
      %p114 = por %p112, %p113
      %s116 = sadd.s32 %s115, 1
      %p119 = scmp.eq.s32.totalorder %s18, 1
      %p120 = scmp.ne.s32.totalorder %s115, %s117
      %p121 = scmp.eq.s32.totalorder %s18, 0
      %p122 = por %p120, %p121
      %p123 = scmp.ne.s32.totalorder %s115, %s117
      %p124 = scmp.eq.s32.totalorder %s23, 1
      %p125 = por %p123, %p124
      %p126 = scmp.ne.s32.totalorder %s117, %s118
      %p127 = scmp.eq.s32.totalorder %s23, 0
      %p128 = por %p126, %p127
      %p129 = scmp.ne.s32.totalorder %s117, %s118
      %p130 = scmp.eq.s32.totalorder %s24, 1
      %p131 = por %p129, %p130
      %p133 = scmp.ne.s32.totalorder %s118, %s132
      %p134 = scmp.eq.s32.totalorder %s24, 0
      %p135 = por %p133, %p134
      %s137 = sadd.s32 %s136, 1
      %p140 = scmp.eq.s32.totalorder %s18, 1
      %p141 = scmp.ne.s32.totalorder %s136, %s138
      %p142 = scmp.eq.s32.totalorder %s18, 0
      %p143 = por %p141, %p142
      %p144 = scmp.ne.s32.totalorder %s136, %s138
      %p145 = scmp.eq.s32.totalorder %s23, 1
      %p146 = por %p144, %p145
      %p147 = scmp.ne.s32.totalorder %s138, %s139
      %p148 = scmp.eq.s32.totalorder %s23, 0
      %p149 = por %p147, %p148
      %p150 = scmp.ne.s32.totalorder %s138, %s139
      %p151 = scmp.eq.s32.totalorder %s24, 1
      %p152 = por %p150, %p151
      %p154 = scmp.ne.s32.totalorder %s139, %s153
      %p155 = scmp.eq.s32.totalorder %s24, 0
      %p156 = por %p154, %p155
      %s158 = sadd.s32 %s157, 1
      %p161 = scmp.eq.s32.totalorder %s18, 1
      %p162 = scmp.ne.s32.totalorder %s157, %s159
      %p163 = scmp.eq.s32.totalorder %s18, 0
      %p164 = por %p162, %p163
      %p165 = scmp.ne.s32.totalorder %s157, %s159
      %p166 = scmp.eq.s32.totalorder %s23, 1
      %p167 = por %p165, %p166
      %p168 = scmp.ne.s32.totalorder %s159, %s160
      %p169 = scmp.eq.s32.totalorder %s23, 0
      %p170 = por %p168, %p169
      %p171 = scmp.ne.s32.totalorder %s159, %s160
      %p172 = scmp.eq.s32.totalorder %s24, 1
      %p173 = por %p171, %p172
      %p175 = scmp.ne.s32.totalorder %s160, %s174
      %p176 = scmp.eq.s32.totalorder %s24, 0
      %p177 = por %p175, %p176
      %s179 = sadd.s32 %s178, 1
      %p182 = scmp.eq.s32.totalorder %s18, 1
      %p183 = scmp.ne.s32.totalorder %s178, %s180
      %p184 = scmp.eq.s32.totalorder %s18, 0
      %p185 = por %p183, %p184
      %p186 = scmp.ne.s32.totalorder %s178, %s180
      %p187 = scmp.eq.s32.totalorder %s23, 1
      %p188 = por %p186, %p187
      %p189 = scmp.ne.s32.totalorder %s180, %s181
      %p190 = scmp.eq.s32.totalorder %s23, 0
      %p191 = por %p189, %p190
      %p192 = scmp.ne.s32.totalorder %s180, %s181
      %p193 = scmp.eq.s32.totalorder %s24, 1
      %p194 = por %p192, %p193
      %p196 = scmp.ne.s32.totalorder %s181, %s195
      %p197 = scmp.eq.s32.totalorder %s24, 0
      %p198 = por %p196, %p197
      %s200 = sadd.s32 %s199, 1
      %p203 = scmp.eq.s32.totalorder %s18, 1
      %p204 = scmp.ne.s32.totalorder %s199, %s201
      %p205 = scmp.eq.s32.totalorder %s18, 0
      %p206 = por %p204, %p205
      %p207 = scmp.ne.s32.totalorder %s199, %s201
      %p208 = scmp.eq.s32.totalorder %s23, 1
      %p209 = por %p207, %p208
      %p210 = scmp.ne.s32.totalorder %s201, %s202
      %p211 = scmp.eq.s32.totalorder %s23, 0
      %p212 = por %p210, %p211
      %p213 = scmp.ne.s32.totalorder %s201, %s202
      %p214 = scmp.eq.s32.totalorder %s24, 1
      %p215 = por %p213, %p214
      %p217 = scmp.ne.s32.totalorder %s202, %s216
      %p218 = scmp.eq.s32.totalorder %s24, 0
      %p219 = por %p217, %p218
      %s220 = ssub.s32 %s18, %s25
      %p221 = scmp.eq.s32.totalorder %s220, 0
      %s223 = sadd.s32 %s222, 1
      %s224 = scalar_select %p221, %s222, %s223
      %p227 = pneg %p221
      %p228 = scmp.eq.s32.totalorder %s18, 1
      %p229 = por %p227, %p228
      %p230 = scmp.ne.s32.totalorder %s222, %s225
      %p231 = scmp.eq.s32.totalorder %s18, 0
      %p232 = por %p230, %p231
      %p233 = scmp.ne.s32.totalorder %s222, %s225
      %p234 = scmp.eq.s32.totalorder %s23, 1
      %p235 = por %p233, %p234
      %p236 = scmp.ne.s32.totalorder %s225, %s226
      %p237 = scmp.eq.s32.totalorder %s23, 0
      %p238 = por %p236, %p237
      %p239 = scmp.ne.s32.totalorder %s225, %s226
      %p240 = scmp.eq.s32.totalorder %s24, 1
      %p241 = por %p239, %p240
      %p243 = scmp.ne.s32.totalorder %s226, %s242
      %p244 = scmp.eq.s32.totalorder %s24, 0
      %p245 = por %p243, %p244
      %p246 = scmp.le.s32.totalorder 1, %s18
      %p247 = scmp.lt.s32.totalorder %s18, 3
      %p248 = pnand %p246, %p247
      %p249 = pneg %p248
      // Predicated region
      $region9: #{tpu_custom_call.1} parent=5 // pred_check
        _
      $region10: #{tpu_custom_call.1} parent=5 // pred_check_branch
        %251 = sbr.rel (%p248) target = $region12
      $region11: #{tpu_custom_call.1} parent=5 // pred_region
        %s252 = ssub.s32 %s18, 1
        // Predicated region
        $region13: #{tpu_custom_call.1} parent=11 // pred_check
          %p253 = pneg %p65
        $region14: #{tpu_custom_call.1} parent=11 // pred_check_branch
          %255 = sbr.rel (%p253) target = $region16
        $region15: #{tpu_custom_call.1} parent=11 // pred_region
          _
        $region16: #{tpu_custom_call.1} parent=11 // pred_fallthru
          _
        // Predicated region
        $region17: #{tpu_custom_call.1} parent=11 // pred_check
          %p256 = pneg %p86
        $region18: #{tpu_custom_call.1} parent=11 // pred_check_branch
          %258 = sbr.rel (%p256) target = $region20
        $region19: #{tpu_custom_call.1} parent=11 // pred_region
          _
        $region20: #{tpu_custom_call.1} parent=11 // pred_fallthru
          _
        // Predicated region
        $region21: #{tpu_custom_call.1} parent=11 // pred_check
          %p259 = pneg %p107
        $region22: #{tpu_custom_call.1} parent=11 // pred_check_branch
          %261 = sbr.rel (%p259) target = $region24
        $region23: #{tpu_custom_call.1} parent=11 // pred_region
          _
        $region24: #{tpu_custom_call.1} parent=11 // pred_fallthru
          _
        // Predicated region
        $region25: #{tpu_custom_call.1} parent=11 // pred_check
          %p262 = pneg %p128
        $region26: #{tpu_custom_call.1} parent=11 // pred_check_branch
          %264 = sbr.rel (%p262) target = $region28
        $region27: #{tpu_custom_call.1} parent=11 // pred_region
          _
        $region28: #{tpu_custom_call.1} parent=11 // pred_fallthru
          _
        // Predicated region
        $region29: #{tpu_custom_call.1} parent=11 // pred_check
          %p265 = pneg %p149
        $region30: #{tpu_custom_call.1} parent=11 // pred_check_branch
          %267 = sbr.rel (%p265) target = $region32
        $region31: #{tpu_custom_call.1} parent=11 // pred_region
          _
        $region32: #{tpu_custom_call.1} parent=11 // pred_fallthru
          _
        // Predicated region
        $region33: #{tpu_custom_call.1} parent=11 // pred_check
          %p268 = pneg %p170
        $region34: #{tpu_custom_call.1} parent=11 // pred_check_branch
          %270 = sbr.rel (%p268) target = $region36
        $region35: #{tpu_custom_call.1} parent=11 // pred_region
          _
        $region36: #{tpu_custom_call.1} parent=11 // pred_fallthru
          _
        // Predicated region
        $region37: #{tpu_custom_call.1} parent=11 // pred_check
          %p271 = pneg %p191
        $region38: #{tpu_custom_call.1} parent=11 // pred_check_branch
          %273 = sbr.rel (%p271) target = $region40
        $region39: #{tpu_custom_call.1} parent=11 // pred_region
          _
        $region40: #{tpu_custom_call.1} parent=11 // pred_fallthru
          _
        // Predicated region
        $region41: #{tpu_custom_call.1} parent=11 // pred_check
          %p274 = pneg %p212
        $region42: #{tpu_custom_call.1} parent=11 // pred_check_branch
          %276 = sbr.rel (%p274) target = $region44
        $region43: #{tpu_custom_call.1} parent=11 // pred_region
          _
        $region44: #{tpu_custom_call.1} parent=11 // pred_fallthru
          _
      $region12: #{tpu_custom_call.1} parent=5 // pred_fallthru
        _
      %p277 = scmp.lt.s32.totalorder %s18, 2
      // Predicated region
      $region45: #{tpu_custom_call.1} parent=5 // pred_check
        %p278 = pneg %p277
      $region46: #{tpu_custom_call.1} parent=5 // pred_check_branch
        %280 = sbr.rel (%p278) target = $region48
      $region47: #{tpu_custom_call.1} parent=5 // pred_region
        // Predicated region
        $region49: #{tpu_custom_call.1} parent=47 // pred_check
          %p281 = pneg %p38
        $region50: #{tpu_custom_call.1} parent=47 // pred_check_branch
          %283 = sbr.rel (%p281) target = $region52
        $region51: #{tpu_custom_call.1} parent=47 // pred_region
          %p284 = scmp.lt.s32.totalorder %s18, 1
          %s285 = scalar_select %p284, %s18, 1
          %s286 = smul.addr %s285, 54
          %s287 = smul.addr %s286, 4
          %s288 = scalar_lea.vmem %s0, %s287
        $region52: #{tpu_custom_call.1} parent=47 // pred_fallthru
          _
      $region48: #{tpu_custom_call.1} parent=5 // pred_fallthru
        _
      %p289 = scmp.le.s32.totalorder 1, %s18
      %p290 = scmp.lt.s32.totalorder %s18, 3
      %p291 = pnand %p289, %p290
      %p292 = pneg %p291
      // Predicated region
      $region53: #{tpu_custom_call.1} parent=5 // pred_check
        _
      $region54: #{tpu_custom_call.1} parent=5 // pred_check_branch
        %294 = sbr.rel (%p291) target = $region56
      $region55: #{tpu_custom_call.1} parent=5 // pred_region
        %s295 = ssub.s32 %s18, 1
        %p296 = scmp.lt.s32.totalorder %s23, 1
        %s297 = scalar_select %p296, %s23, 1
        %s298 = smul.addr %s297, 54
        %s299 = smul.addr %s298, 4
        %s300 = scalar_lea.vmem %s0, %s299
        %p301 = pneg %p44
        %p302 = pneg %p41
        %p303 = pneg %p65
        %p304 = pneg %p62
        %p305 = pneg %p86
        %p306 = pneg %p83
        %p307 = pneg %p107
        %p308 = pneg %p104
        %p309 = pneg %p128
        %p310 = pneg %p125
        %p311 = pneg %p149
        %p312 = pneg %p146
        %p313 = pneg %p170
        %p314 = pneg %p167
        %p315 = pneg %p191
        %p316 = pneg %p188
        %p317 = pneg %p212
        %p318 = pneg %p209
        %p319 = pneg %p238
        %p320 = pneg %p235
        %s321 = sand.u32 %s225, 1
        %s322 = scalar_lea.sflag [#allocation4], %s321
        %s323 = sand.u32 %s225, 1
        %s324 = scalar_lea.vmem [#allocation3], %s323
        %p325 = scmp.lt.s32.totalorder %s23, 1
        %s326 = scalar_select %p325, %s23, 1
        %s327 = smul.addr %s326, 54
        %s328 = smul.addr %s327, 4
        %s329 = scalar_lea.vmem %s0, %s328
        %v331 = vld [vmem:[%s329] sm:$0xf]
        %v332 = vld [vmem:[%s329 + $0x4] sm:$0xf]
        %v333 = vld [vmem:[%s329 + $0x8] sm:$0x1]
        %v334 = vld [vmem:[%s329 + $0xc] sm:$0xf]
        %v335 = vld [vmem:[%s329 + $0x10] sm:$0xf]
        %v336 = vld [vmem:[%s329 + $0x14] sm:$0x1]
        %v337 = vld [vmem:[%s329 + $0x18] sm:$0xf]
        %v338 = vld [vmem:[%s329 + $0x1c] sm:$0xf]
        %v339 = vld [vmem:[%s329 + $0x20] sm:$0x1]
        %v340 = vld [vmem:[%s329 + $0x24] sm:$0xf]
        %v341 = vld [vmem:[%s329 + $0x28] sm:$0xf]
        %v342 = vld [vmem:[%s329 + $0x2c] sm:$0x1]
        %v343 = vld [vmem:[%s329 + $0x30] sm:$0xf]
        %v344 = vld [vmem:[%s329 + $0x34] sm:$0xf]
        %v345 = vld [vmem:[%s329 + $0x38] sm:$0x1]
        %v346 = vld [vmem:[%s329 + $0x3c] sm:$0xf]
        %v347 = vld [vmem:[%s329 + $0x40] sm:$0xf]
        %v348 = vld [vmem:[%s329 + $0x44] sm:$0x1]
        %v349 = vld [vmem:[%s329 + $0x48] sm:$0xf]
        %v350 = vld [vmem:[%s329 + $0x4c] sm:$0xf]
        %v351 = vld [vmem:[%s329 + $0x50] sm:$0x1]
        %v352 = vld [vmem:[%s329 + $0x54] sm:$0xf]
        %v353 = vld [vmem:[%s329 + $0x58] sm:$0xf]
        %v354 = vld [vmem:[%s329 + $0x5c] sm:$0x1]
        %v355 = vld [vmem:[%s329 + $0x60] sm:$0xf]
        %v356 = vld [vmem:[%s329 + $0x64] sm:$0xf]
        %v357 = vld [vmem:[%s329 + $0x68] sm:$0x1]
        %v358 = vld [vmem:[%s329 + $0x6c] sm:$0xf]
        %v359 = vld [vmem:[%s329 + $0x70] sm:$0xf]
        %v360 = vld [vmem:[%s329 + $0x74] sm:$0x1]
        %v361 = vld [vmem:[%s329 + $0x78] sm:$0xf]
        %v362 = vld [vmem:[%s329 + $0x7c] sm:$0xf]
        %v363 = vld [vmem:[%s329 + $0x80] sm:$0x1]
        %v364 = vld [vmem:[%s329 + $0x84] sm:$0xf]
        %v365 = vld [vmem:[%s329 + $0x88] sm:$0xf]
        %v366 = vld [vmem:[%s329 + $0x8c] sm:$0x1]
        %v367 = vld [vmem:[%s329 + $0x90] sm:$0xf]
        %v368 = vld [vmem:[%s329 + $0x94] sm:$0xf]
        %v369 = vld [vmem:[%s329 + $0x98] sm:$0x1]
        %v370 = vld [vmem:[%s329 + $0x9c] sm:$0xf]
        %v371 = vld [vmem:[%s329 + $0xa0] sm:$0xf]
        %v372 = vld [vmem:[%s329 + $0xa4] sm:$0x1]
        %v373 = vld [vmem:[%s329 + $0xa8] sm:$0xf]
        %v374 = vld [vmem:[%s329 + $0xac] sm:$0xf]
        %v375 = vld [vmem:[%s329 + $0xb0] sm:$0x1]
        %v376 = vld [vmem:[%s329 + $0xb4] sm:$0xf]
        %v377 = vld [vmem:[%s329 + $0xb8] sm:$0xf]
        %v378 = vld [vmem:[%s329 + $0xbc] sm:$0x1]
        %v379 = vld [vmem:[%s329 + $0xc0] sm:$0xf]
        %v380 = vld [vmem:[%s329 + $0xc4] sm:$0xf]
        %v381 = vld [vmem:[%s329 + $0xc8] sm:$0x1]
        %v382 = vld [vmem:[%s329 + $0xcc] sm:$0xf]
        %v383 = vld [vmem:[%s329 + $0xd0] sm:$0xf]
        %v384 = vld [vmem:[%s329 + $0xd4] sm:$0x1]
        %v385 = vld [vmem:[%s1] sm:$0x3]
        %v386 = vld [vmem:[%s1 + $0x2] sm:$0x3]
        %v387 = vld [vmem:[%s1 + $0x4] sm:$0x3]
        %v388 = vld [vmem:[%s1 + $0x6] sm:$0x3]
        %v389 = vld [vmem:[%s1 + $0x8] sm:$0x3]
        %v390 = vld [vmem:[%s1 + $0xa] sm:$0x3]
        %v391 = vld [vmem:[%s1 + $0xc] sm:$0x3]
        %v392 = vld [vmem:[%s1 + $0xe] sm:$0x3]
        %v393 = vld [vmem:[%s1 + $0x10] sm:$0x3]
        %vm394 = vsmask.f32 3328
        %vm395 = vsmask.f32 7440
        %vm396 = vmor %vm394, %vm395
        %v398 = vshrl.u32 %v331, 16
        %v400 = vrot.slane %v398, 4
        %v401 = vshll.u32 %v331, 16
        %v403 = vrot.slane %v401, 5
        %v404 = vor.u32 %v400, %v403
        %v405 = vrot.slane %v404, 4
        %v407 = vshll.u32 %v332, 16
        %v409 = vrot.slane %v407, 5
        %v410 = vsel %vm396, %v405, %v409
        %v411 = vshrl.u32 %v332, 16
        %v413 = vrot.slane %v411, 4
        %v414 = vor.u32 %v413, %v409
        %v415 = vrot.slane %v414, 4
        %v417 = vshll.u32 %v333, 16
        %v419 = vrot.slane %v417, 5
        %v420 = vsel %vm396, %v415, %v419
        %v422 = vshrl.u32 %v334, 16
        %v424 = vrot.slane %v422, 4
        %v425 = vshll.u32 %v334, 16
        %v427 = vrot.slane %v425, 5
        %v428 = vor.u32 %v424, %v427
        %v429 = vrot.slane %v428, 4
        %v431 = vshll.u32 %v335, 16
        %v433 = vrot.slane %v431, 5
        %v434 = vsel %vm396, %v429, %v433
        %v435 = vshrl.u32 %v335, 16
        %v437 = vrot.slane %v435, 4
        %v438 = vor.u32 %v437, %v433
        %v439 = vrot.slane %v438, 4
        %v441 = vshll.u32 %v336, 16
        %v443 = vrot.slane %v441, 5
        %v444 = vsel %vm396, %v439, %v443
        %v446 = vshrl.u32 %v337, 16
        %v448 = vrot.slane %v446, 4
        %v449 = vshll.u32 %v337, 16
        %v451 = vrot.slane %v449, 5
        %v452 = vor.u32 %v448, %v451
        %v453 = vrot.slane %v452, 4
        %v455 = vshll.u32 %v338, 16
        %v457 = vrot.slane %v455, 5
        %v458 = vsel %vm396, %v453, %v457
        %v459 = vshrl.u32 %v338, 16
        %v461 = vrot.slane %v459, 4
        %v462 = vor.u32 %v461, %v457
        %v463 = vrot.slane %v462, 4
        %v465 = vshll.u32 %v339, 16
        %v467 = vrot.slane %v465, 5
        %v468 = vsel %vm396, %v463, %v467
        %v470 = vshrl.u32 %v340, 16
        %v472 = vrot.slane %v470, 4
        %v473 = vshll.u32 %v340, 16
        %v475 = vrot.slane %v473, 5
        %v476 = vor.u32 %v472, %v475
        %v477 = vrot.slane %v476, 4
        %v479 = vshll.u32 %v341, 16
        %v481 = vrot.slane %v479, 5
        %v482 = vsel %vm396, %v477, %v481
        %v483 = vshrl.u32 %v341, 16
        %v485 = vrot.slane %v483, 4
        %v486 = vor.u32 %v485, %v481
        %v487 = vrot.slane %v486, 4
        %v489 = vshll.u32 %v342, 16
        %v491 = vrot.slane %v489, 5
        %v492 = vsel %vm396, %v487, %v491
        %v494 = vshrl.u32 %v343, 16
        %v496 = vrot.slane %v494, 4
        %v497 = vshll.u32 %v343, 16
        %v499 = vrot.slane %v497, 5
        %v500 = vor.u32 %v496, %v499
        %v501 = vrot.slane %v500, 4
        %v503 = vshll.u32 %v344, 16
        %v505 = vrot.slane %v503, 5
        %v506 = vsel %vm396, %v501, %v505
        %v507 = vshrl.u32 %v344, 16
        %v509 = vrot.slane %v507, 4
        %v510 = vor.u32 %v509, %v505
        %v511 = vrot.slane %v510, 4
        %v513 = vshll.u32 %v345, 16
        %v515 = vrot.slane %v513, 5
        %v516 = vsel %vm396, %v511, %v515
        %v518 = vshrl.u32 %v346, 16
        %v520 = vrot.slane %v518, 4
        %v521 = vshll.u32 %v346, 16
        %v523 = vrot.slane %v521, 5
        %v524 = vor.u32 %v520, %v523
        %v525 = vrot.slane %v524, 4
        %v527 = vshll.u32 %v347, 16
        %v529 = vrot.slane %v527, 5
        %v530 = vsel %vm396, %v525, %v529
        %v531 = vshrl.u32 %v347, 16
        %v533 = vrot.slane %v531, 4
        %v534 = vor.u32 %v533, %v529
        %v535 = vrot.slane %v534, 4
        %v537 = vshll.u32 %v348, 16
        %v539 = vrot.slane %v537, 5
        %v540 = vsel %vm396, %v535, %v539
        %v542 = vshrl.u32 %v349, 16
        %v544 = vrot.slane %v542, 4
        %v545 = vshll.u32 %v349, 16
        %v547 = vrot.slane %v545, 5
        %v548 = vor.u32 %v544, %v547
        %v549 = vrot.slane %v548, 4
        %v551 = vshll.u32 %v350, 16
        %v553 = vrot.slane %v551, 5
        %v554 = vsel %vm396, %v549, %v553
        %v555 = vshrl.u32 %v350, 16
        %v557 = vrot.slane %v555, 4
        %v558 = vor.u32 %v557, %v553
        %v559 = vrot.slane %v558, 4
        %v561 = vshll.u32 %v351, 16
        %v563 = vrot.slane %v561, 5
        %v564 = vsel %vm396, %v559, %v563
        %v566 = vshrl.u32 %v352, 16
        %v568 = vrot.slane %v566, 4
        %v569 = vshll.u32 %v352, 16
        %v571 = vrot.slane %v569, 5
        %v572 = vor.u32 %v568, %v571
        %v573 = vrot.slane %v572, 4
        %v575 = vshll.u32 %v353, 16
        %v577 = vrot.slane %v575, 5
        %v578 = vsel %vm396, %v573, %v577
        %v579 = vshrl.u32 %v353, 16
        %v581 = vrot.slane %v579, 4
        %v582 = vor.u32 %v581, %v577
        %v583 = vrot.slane %v582, 4
        %v585 = vshll.u32 %v354, 16
        %v587 = vrot.slane %v585, 5
        %v588 = vsel %vm396, %v583, %v587
        %v590 = vshrl.u32 %v355, 16
        %v592 = vrot.slane %v590, 4
        %v593 = vshll.u32 %v355, 16
        %v595 = vrot.slane %v593, 5
        %v596 = vor.u32 %v592, %v595
        %v597 = vrot.slane %v596, 4
        %v599 = vshll.u32 %v356, 16
        %v601 = vrot.slane %v599, 5
        %v602 = vsel %vm396, %v597, %v601
        %v603 = vshrl.u32 %v356, 16
        %v605 = vrot.slane %v603, 4
        %v606 = vor.u32 %v605, %v601
        %v607 = vrot.slane %v606, 4
        %v609 = vshll.u32 %v357, 16
        %v611 = vrot.slane %v609, 5
        %v612 = vsel %vm396, %v607, %v611
        %v614 = vshrl.u32 %v358, 16
        %v616 = vrot.slane %v614, 4
        %v617 = vshll.u32 %v358, 16
        %v619 = vrot.slane %v617, 5
        %v620 = vor.u32 %v616, %v619
        %v621 = vrot.slane %v620, 4
        %v623 = vshll.u32 %v359, 16
        %v625 = vrot.slane %v623, 5
        %v626 = vsel %vm396, %v621, %v625
        %v627 = vshrl.u32 %v359, 16
        %v629 = vrot.slane %v627, 4
        %v630 = vor.u32 %v629, %v625
        %v631 = vrot.slane %v630, 4
        %v633 = vshll.u32 %v360, 16
        %v635 = vrot.slane %v633, 5
        %v636 = vsel %vm396, %v631, %v635
        %v638 = vshrl.u32 %v361, 16
        %v640 = vrot.slane %v638, 4
        %v641 = vshll.u32 %v361, 16
        %v643 = vrot.slane %v641, 5
        %v644 = vor.u32 %v640, %v643
        %v645 = vrot.slane %v644, 4
        %v647 = vshll.u32 %v362, 16
        %v649 = vrot.slane %v647, 5
        %v650 = vsel %vm396, %v645, %v649
        %v651 = vshrl.u32 %v362, 16
        %v653 = vrot.slane %v651, 4
        %v654 = vor.u32 %v653, %v649
        %v655 = vrot.slane %v654, 4
        %v657 = vshll.u32 %v363, 16
        %v659 = vrot.slane %v657, 5
        %v660 = vsel %vm396, %v655, %v659
        %v662 = vshrl.u32 %v364, 16
        %v664 = vrot.slane %v662, 4
        %v665 = vshll.u32 %v364, 16
        %v667 = vrot.slane %v665, 5
        %v668 = vor.u32 %v664, %v667
        %v669 = vrot.slane %v668, 4
        %v671 = vshll.u32 %v365, 16
        %v673 = vrot.slane %v671, 5
        %v674 = vsel %vm396, %v669, %v673
        %v675 = vshrl.u32 %v365, 16
        %v677 = vrot.slane %v675, 4
        %v678 = vor.u32 %v677, %v673
        %v679 = vrot.slane %v678, 4
        %v681 = vshll.u32 %v366, 16
        %v683 = vrot.slane %v681, 5
        %v684 = vsel %vm396, %v679, %v683
        %v686 = vshrl.u32 %v367, 16
        %v688 = vrot.slane %v686, 4
        %v689 = vshll.u32 %v367, 16
        %v691 = vrot.slane %v689, 5
        %v692 = vor.u32 %v688, %v691
        %v693 = vrot.slane %v692, 4
        %v695 = vshll.u32 %v368, 16
        %v697 = vrot.slane %v695, 5
        %v698 = vsel %vm396, %v693, %v697
        %v699 = vshrl.u32 %v368, 16
        %v701 = vrot.slane %v699, 4
        %v702 = vor.u32 %v701, %v697
        %v703 = vrot.slane %v702, 4
        %v705 = vshll.u32 %v369, 16
        %v707 = vrot.slane %v705, 5
        %v708 = vsel %vm396, %v703, %v707
        %v710 = vshrl.u32 %v370, 16
        %v712 = vrot.slane %v710, 4
        %v713 = vshll.u32 %v370, 16
        %v715 = vrot.slane %v713, 5
        %v716 = vor.u32 %v712, %v715
        %v717 = vrot.slane %v716, 4
        %v719 = vshll.u32 %v371, 16
        %v721 = vrot.slane %v719, 5
        %v722 = vsel %vm396, %v717, %v721
        %v723 = vshrl.u32 %v371, 16
        %v725 = vrot.slane %v723, 4
        %v726 = vor.u32 %v725, %v721
        %v727 = vrot.slane %v726, 4
        %v729 = vshll.u32 %v372, 16
        %v731 = vrot.slane %v729, 5
        %v732 = vsel %vm396, %v727, %v731
        %v734 = vshrl.u32 %v373, 16
        %v736 = vrot.slane %v734, 4
        %v737 = vshll.u32 %v373, 16
        %v739 = vrot.slane %v737, 5
        %v740 = vor.u32 %v736, %v739
        %v741 = vrot.slane %v740, 4
        %v743 = vshll.u32 %v374, 16
        %v745 = vrot.slane %v743, 5
        %v746 = vsel %vm396, %v741, %v745
        %v747 = vshrl.u32 %v374, 16
        %v749 = vrot.slane %v747, 4
        %v750 = vor.u32 %v749, %v745
        %v751 = vrot.slane %v750, 4
        %v753 = vshll.u32 %v375, 16
        %v755 = vrot.slane %v753, 5
        %v756 = vsel %vm396, %v751, %v755
        %v758 = vshrl.u32 %v376, 16
        %v760 = vrot.slane %v758, 4
        %v761 = vshll.u32 %v376, 16
        %v763 = vrot.slane %v761, 5
        %v764 = vor.u32 %v760, %v763
        %v765 = vrot.slane %v764, 4
        %v767 = vshll.u32 %v377, 16
        %v769 = vrot.slane %v767, 5
        %v770 = vsel %vm396, %v765, %v769
        %v771 = vshrl.u32 %v377, 16
        %v773 = vrot.slane %v771, 4
        %v774 = vor.u32 %v773, %v769
        %v775 = vrot.slane %v774, 4
        %v777 = vshll.u32 %v378, 16
        %v779 = vrot.slane %v777, 5
        %v780 = vsel %vm396, %v775, %v779
        %v781 = vunpack.c.l.b16 %v410
        %v782 = vunpack.c.l.b16 %v420
        %v783 = vunpack.c.l.b16 %v434
        %v784 = vunpack.c.l.b16 %v444
        %v785 = vunpack.c.l.b16 %v458
        %v786 = vunpack.c.l.b16 %v468
        %v787 = vunpack.c.l.b16 %v482
        %v788 = vunpack.c.l.b16 %v492
        %v789 = vunpack.c.l.b16 %v506
        %v790 = vunpack.c.l.b16 %v516
        %v791 = vunpack.c.l.b16 %v530
        %v792 = vunpack.c.l.b16 %v540
        %v793 = vunpack.c.l.b16 %v554
        %v794 = vunpack.c.l.b16 %v564
        %v795 = vunpack.c.l.b16 %v578
        %v796 = vunpack.c.l.b16 %v588
        %v797 = vunpack.c.l.b16 %v602
        %v798 = vunpack.c.l.b16 %v612
        %v799 = vunpack.c.l.b16 %v626
        %v800 = vunpack.c.l.b16 %v636
        %v801 = vunpack.c.l.b16 %v650
        %v802 = vunpack.c.l.b16 %v660
        %v803 = vunpack.c.l.b16 %v674
        %v804 = vunpack.c.l.b16 %v684
        %v805 = vunpack.c.l.b16 %v698
        %v806 = vunpack.c.l.b16 %v708
        %v807 = vunpack.c.l.b16 %v722
        %v808 = vunpack.c.l.b16 %v732
        %v809 = vunpack.c.l.b16 %v746
        %v810 = vunpack.c.l.b16 %v756
        %v811 = vunpack.c.l.b16 %v770
        %v812 = vunpack.c.l.b16 %v780
        %v813 = vpack.c.b16 %v782, %v781
        %v814 = vpack.c.b16 %v784, %v783
        %v815 = vpack.c.b16 %v786, %v785
        %v816 = vpack.c.b16 %v788, %v787
        %v817 = vpack.c.b16 %v790, %v789
        %v818 = vpack.c.b16 %v792, %v791
        %v819 = vpack.c.b16 %v794, %v793
        %v820 = vpack.c.b16 %v796, %v795
        %v821 = vpack.c.b16 %v798, %v797
        %v822 = vpack.c.b16 %v800, %v799
        %v823 = vpack.c.b16 %v802, %v801
        %v824 = vpack.c.b16 %v804, %v803
        %v825 = vpack.c.b16 %v806, %v805
        %v826 = vpack.c.b16 %v808, %v807
        %v827 = vpack.c.b16 %v810, %v809
        %v828 = vpack.c.b16 %v812, %v811
        %vm829 = vcmask 31744
        %v831 = vsel %vm829, %v813, 0
        %v834 = vsel %vm829, %v814, 0
        %v837 = vsel %vm829, %v815, 0
        %v840 = vsel %vm829, %v816, 0
        %v843 = vsel %vm829, %v817, 0
        %v846 = vsel %vm829, %v818, 0
        %v849 = vsel %vm829, %v819, 0
        %v852 = vsel %vm829, %v820, 0
        %v855 = vsel %vm829, %v821, 0
        %v858 = vsel %vm829, %v822, 0
        %v861 = vsel %vm829, %v823, 0
        %v864 = vsel %vm829, %v824, 0
        %v867 = vsel %vm829, %v825, 0
        %v870 = vsel %vm829, %v826, 0
        %v873 = vsel %vm829, %v827, 0
        %v876 = vsel %vm829, %v828, 0
        %vm878 = vcmask 1041408
        %v880 = vsel %vm878, %v386, 0
        %882 = vmatprep.subr.bf16.mxu0 0
        %883 = vmatpush1.bf16.msra.mxu0 0
        %884 = vmatprep.subr.bf16.mxu0 0
        %885 = vmatpush1.bf16.msra.mxu0 0
        %886 = vmatprep.subr.bf16.mxu0 0
        %887 = vmatpush1.bf16.msra.mxu0 0
        %888 = vmatprep.subr.bf16.mxu0 0
        %889 = vmatpush1.bf16.msra.mxu0 0
        %890 = vmatprep.subr.bf16.mxu0 0
        %891 = vmatpush1.bf16.msra.mxu0 0
        %892 = vmatprep.subr.bf16.mxu0 0
        %893 = vmatpush1.bf16.msra.mxu0 0
        %894 = vmatprep.subr.bf16.mxu0 0
        %895 = vmatpush1.bf16.msra.mxu0 0
        %896 = vmatprep.subr.bf16.mxu0 0
        %897 = vmatpush1.bf16.msra.mxu0 %v880
        %898 = vmatprep.subr.bf16.mxu0 0
        %899 = vmatpush2.bf16.msra.mxu0 0
        %900 = vmatprep.subr.bf16.mxu0 0
        %901 = vmatpush2.bf16.msra.mxu0 0
        %902 = vmatprep.subr.bf16.mxu0 0
        %903 = vmatpush2.bf16.msra.mxu0 0
        %904 = vmatprep.subr.bf16.mxu0 0
        %905 = vmatpush2.bf16.msra.mxu0 0
        %906 = vmatprep.subr.bf16.mxu0 0
        %907 = vmatpush2.bf16.msra.mxu0 0
        %908 = vmatprep.subr.bf16.mxu0 0
        %909 = vmatpush2.bf16.msra.mxu0 0
        %910 = vmatprep.subr.bf16.mxu0 0
        %911 = vmatpush2.bf16.msra.mxu0 0
        %912 = vmatprep.subr.bf16.mxu0 0
        %913 = vmatpush2.bf16.msra.mxu0 0
        %914 = vmatprep.mubr.bf16.mxu0 0
        %915 = vmatmul.mubr.bf16.gmra.mxu0 %v831
        %v916 = vpop.f32.mrf.mxu0
        %v917 = vadd.f32 0.0, %v916
        %v918 = vpop.f32.mrf.mxu0
        %v919 = vpop.f32.mrf.mxu0
        %v920 = vadd.f32 0.0, %v919
        %v921 = vpop.f32.mrf.mxu0
        %922 = vmatprep.mubr.bf16.mxu0 0
        %923 = vmatmul.mubr.bf16.gmra.mxu0 %v834
        %v924 = vpop.f32.mrf.mxu0
        %v925 = vadd.f32 0.0, %v924
        %v926 = vpop.f32.mrf.mxu0
        %v927 = vpop.f32.mrf.mxu0
        %v928 = vadd.f32 0.0, %v927
        %v929 = vpop.f32.mrf.mxu0
        %930 = vmatprep.mubr.bf16.mxu0 0
        %931 = vmatmul.mubr.bf16.gmra.mxu0 %v837
        %v932 = vpop.f32.mrf.mxu0
        %v933 = vadd.f32 0.0, %v932
        %v934 = vpop.f32.mrf.mxu0
        %v935 = vpop.f32.mrf.mxu0
        %v936 = vadd.f32 0.0, %v935
        %v937 = vpop.f32.mrf.mxu0
        %938 = vmatprep.mubr.bf16.mxu0 0
        %939 = vmatmul.mubr.bf16.gmra.mxu0 %v840
        %v940 = vpop.f32.mrf.mxu0
        %v941 = vadd.f32 0.0, %v940
        %v942 = vpop.f32.mrf.mxu0
        %v943 = vpop.f32.mrf.mxu0
        %v944 = vadd.f32 0.0, %v943
        %v945 = vpop.f32.mrf.mxu0
        %946 = vmatprep.mubr.bf16.mxu0 0
        %947 = vmatmul.mubr.bf16.gmra.mxu0 %v843
        %v948 = vpop.f32.mrf.mxu0
        %v949 = vadd.f32 0.0, %v948
        %v950 = vpop.f32.mrf.mxu0
        %v951 = vpop.f32.mrf.mxu0
        %v952 = vadd.f32 0.0, %v951
        %v953 = vpop.f32.mrf.mxu0
        %954 = vmatprep.mubr.bf16.mxu0 0
        %955 = vmatmul.mubr.bf16.gmra.mxu0 %v846
        %v956 = vpop.f32.mrf.mxu0
        %v957 = vadd.f32 0.0, %v956
        %v958 = vpop.f32.mrf.mxu0
        %v959 = vpop.f32.mrf.mxu0
        %v960 = vadd.f32 0.0, %v959
        %v961 = vpop.f32.mrf.mxu0
        %962 = vmatprep.mubr.bf16.mxu0 0
        %963 = vmatmul.mubr.bf16.gmra.mxu0 %v849
        %v964 = vpop.f32.mrf.mxu0
        %v965 = vadd.f32 0.0, %v964
        %v966 = vpop.f32.mrf.mxu0
        %v967 = vpop.f32.mrf.mxu0
        %v968 = vadd.f32 0.0, %v967
        %v969 = vpop.f32.mrf.mxu0
        %970 = vmatprep.mubr.bf16.mxu0 0
        %971 = vmatmul.mubr.bf16.gmra.mxu0 %v852
        %v972 = vpop.f32.mrf.mxu0
        %v973 = vadd.f32 0.0, %v972
        %v974 = vpop.f32.mrf.mxu0
        %v975 = vpop.f32.mrf.mxu0
        %v976 = vadd.f32 0.0, %v975
        %v977 = vpop.f32.mrf.mxu0
        %978 = vmatprep.mubr.bf16.mxu0 0
        %979 = vmatmul.mubr.bf16.gmra.mxu0 %v855
        %v980 = vpop.f32.mrf.mxu0
        %v981 = vadd.f32 0.0, %v980
        %v982 = vpop.f32.mrf.mxu0
        %v983 = vpop.f32.mrf.mxu0
        %v984 = vadd.f32 0.0, %v983
        %v985 = vpop.f32.mrf.mxu0
        %986 = vmatprep.mubr.bf16.mxu0 0
        %987 = vmatmul.mubr.bf16.gmra.mxu0 %v858
        %v988 = vpop.f32.mrf.mxu0
        %v989 = vadd.f32 0.0, %v988
        %v990 = vpop.f32.mrf.mxu0
        %v991 = vpop.f32.mrf.mxu0
        %v992 = vadd.f32 0.0, %v991
        %v993 = vpop.f32.mrf.mxu0
        %994 = vmatprep.mubr.bf16.mxu0 0
        %995 = vmatmul.mubr.bf16.gmra.mxu0 %v861
        %v996 = vpop.f32.mrf.mxu0
        %v997 = vadd.f32 0.0, %v996
        %v998 = vpop.f32.mrf.mxu0
        %v999 = vpop.f32.mrf.mxu0
        %v1000 = vadd.f32 0.0, %v999
        %v1001 = vpop.f32.mrf.mxu0
        %1002 = vmatprep.mubr.bf16.mxu0 0
        %1003 = vmatmul.mubr.bf16.gmra.mxu0 %v864
        %v1004 = vpop.f32.mrf.mxu0
        %v1005 = vadd.f32 0.0, %v1004
        %v1006 = vpop.f32.mrf.mxu0
        %v1007 = vpop.f32.mrf.mxu0
        %v1008 = vadd.f32 0.0, %v1007
        %v1009 = vpop.f32.mrf.mxu0
        %1010 = vmatprep.mubr.bf16.mxu0 0
        %1011 = vmatmul.mubr.bf16.gmra.mxu0 %v867
        %v1012 = vpop.f32.mrf.mxu0
        %v1013 = vadd.f32 0.0, %v1012
        %v1014 = vpop.f32.mrf.mxu0
        %v1015 = vpop.f32.mrf.mxu0
        %v1016 = vadd.f32 0.0, %v1015
        %v1017 = vpop.f32.mrf.mxu0
        %1018 = vmatprep.mubr.bf16.mxu0 0
        %1019 = vmatmul.mubr.bf16.gmra.mxu0 %v870
        %v1020 = vpop.f32.mrf.mxu0
        %v1021 = vadd.f32 0.0, %v1020
        %v1022 = vpop.f32.mrf.mxu0
        %v1023 = vpop.f32.mrf.mxu0
        %v1024 = vadd.f32 0.0, %v1023
        %v1025 = vpop.f32.mrf.mxu0
        %1026 = vmatprep.mubr.bf16.mxu0 0
        %1027 = vmatmul.mubr.bf16.gmra.mxu0 %v873
        %v1028 = vpop.f32.mrf.mxu0
        %v1029 = vadd.f32 0.0, %v1028
        %v1030 = vpop.f32.mrf.mxu0
        %v1031 = vpop.f32.mrf.mxu0
        %v1032 = vadd.f32 0.0, %v1031
        %v1033 = vpop.f32.mrf.mxu0
        %1034 = vmatprep.mubr.bf16.mxu0 0
        %1035 = vmatmul.mubr.bf16.gmra.mxu0 %v876
        %v1036 = vpop.f32.mrf.mxu0
        %v1037 = vadd.f32 0.0, %v1036
        %v1038 = vpop.f32.mrf.mxu0
        %v1039 = vpop.f32.mrf.mxu0
        %v1040 = vadd.f32 0.0, %v1039
        %v1041 = vpop.f32.mrf.mxu0
        %1042 = vdwg.mxu0
        %v1075 = vunpack.c.l.b16 %v331
        %v1076 = vunpack.c.l.b16 %v332
        %v1077 = vunpack.c.l.b16 %v334
        %v1078 = vunpack.c.l.b16 %v335
        %v1079 = vunpack.c.l.b16 %v337
        %v1080 = vunpack.c.l.b16 %v338
        %v1081 = vunpack.c.l.b16 %v340
        %v1082 = vunpack.c.l.b16 %v341
        %v1083 = vunpack.c.l.b16 %v343
        %v1084 = vunpack.c.l.b16 %v344
        %v1085 = vunpack.c.l.b16 %v346
        %v1086 = vunpack.c.l.b16 %v347
        %v1087 = vunpack.c.l.b16 %v349
        %v1088 = vunpack.c.l.b16 %v350
        %v1089 = vunpack.c.l.b16 %v352
        %v1090 = vunpack.c.l.b16 %v353
        %v1091 = vunpack.c.l.b16 %v355
        %v1092 = vunpack.c.l.b16 %v356
        %v1093 = vunpack.c.l.b16 %v358
        %v1094 = vunpack.c.l.b16 %v359
        %v1095 = vunpack.c.l.b16 %v361
        %v1096 = vunpack.c.l.b16 %v362
        %v1097 = vunpack.c.l.b16 %v364
        %v1098 = vunpack.c.l.b16 %v365
        %v1099 = vunpack.c.l.b16 %v367
        %v1100 = vunpack.c.l.b16 %v368
        %v1101 = vunpack.c.l.b16 %v370
        %v1102 = vunpack.c.l.b16 %v371
        %v1103 = vunpack.c.l.b16 %v373
        %v1104 = vunpack.c.l.b16 %v374
        %v1105 = vunpack.c.l.b16 %v376
        %v1106 = vunpack.c.l.b16 %v377
        %v1107 = vpack.c.b16 %v1076, %v1075
        %v1108 = vpack.c.b16 %v1078, %v1077
        %v1109 = vpack.c.b16 %v1080, %v1079
        %v1110 = vpack.c.b16 %v1082, %v1081
        %v1111 = vpack.c.b16 %v1084, %v1083
        %v1112 = vpack.c.b16 %v1086, %v1085
        %v1113 = vpack.c.b16 %v1088, %v1087
        %v1114 = vpack.c.b16 %v1090, %v1089
        %v1115 = vpack.c.b16 %v1092, %v1091
        %v1116 = vpack.c.b16 %v1094, %v1093
        %v1117 = vpack.c.b16 %v1096, %v1095
        %v1118 = vpack.c.b16 %v1098, %v1097
        %v1119 = vpack.c.b16 %v1100, %v1099
        %v1120 = vpack.c.b16 %v1102, %v1101
        %v1121 = vpack.c.b16 %v1104, %v1103
        %v1122 = vpack.c.b16 %v1106, %v1105
        %v1124 = vsel %vm829, %v1107, 0
        %v1127 = vsel %vm829, %v1108, 0
        %v1130 = vsel %vm829, %v1109, 0
        %v1133 = vsel %vm829, %v1110, 0
        %v1136 = vsel %vm829, %v1111, 0
        %v1139 = vsel %vm829, %v1112, 0
        %v1142 = vsel %vm829, %v1113, 0
        %v1145 = vsel %vm829, %v1114, 0
        %v1148 = vsel %vm829, %v1115, 0
        %v1151 = vsel %vm829, %v1116, 0
        %v1154 = vsel %vm829, %v1117, 0
        %v1157 = vsel %vm829, %v1118, 0
        %v1160 = vsel %vm829, %v1119, 0
        %v1163 = vsel %vm829, %v1120, 0
        %v1166 = vsel %vm829, %v1121, 0
        %v1169 = vsel %vm829, %v1122, 0
        %v1172 = vsel %vm878, %v385, 0
        %1174 = vmatprep.subr.bf16.mxu0 0
        %1175 = vmatpush1.bf16.msra.mxu0 0
        %1176 = vmatprep.subr.bf16.mxu0 0
        %1177 = vmatpush1.bf16.msra.mxu0 0
        %1178 = vmatprep.subr.bf16.mxu0 0
        %1179 = vmatpush1.bf16.msra.mxu0 0
        %1180 = vmatprep.subr.bf16.mxu0 0
        %1181 = vmatpush1.bf16.msra.mxu0 0
        %1182 = vmatprep.subr.bf16.mxu0 0
        %1183 = vmatpush1.bf16.msra.mxu0 0
        %1184 = vmatprep.subr.bf16.mxu0 0
        %1185 = vmatpush1.bf16.msra.mxu0 0
        %1186 = vmatprep.subr.bf16.mxu0 0
        %1187 = vmatpush1.bf16.msra.mxu0 0
        %1188 = vmatprep.subr.bf16.mxu0 0
        %1189 = vmatpush1.bf16.msra.mxu0 %v1172
        %1190 = vmatprep.subr.bf16.mxu0 0
        %1191 = vmatpush2.bf16.msra.mxu0 0
        %1192 = vmatprep.subr.bf16.mxu0 0
        %1193 = vmatpush2.bf16.msra.mxu0 0
        %1194 = vmatprep.subr.bf16.mxu0 0
        %1195 = vmatpush2.bf16.msra.mxu0 0
        %1196 = vmatprep.subr.bf16.mxu0 0
        %1197 = vmatpush2.bf16.msra.mxu0 0
        %1198 = vmatprep.subr.bf16.mxu0 0
        %1199 = vmatpush2.bf16.msra.mxu0 0
        %1200 = vmatprep.subr.bf16.mxu0 0
        %1201 = vmatpush2.bf16.msra.mxu0 0
        %1202 = vmatprep.subr.bf16.mxu0 0
        %1203 = vmatpush2.bf16.msra.mxu0 0
        %1204 = vmatprep.subr.bf16.mxu0 0
        %1205 = vmatpush2.bf16.msra.mxu0 0
        %1206 = vmatprep.mubr.bf16.mxu0 0
        %1207 = vmatmul.mubr.bf16.gmra.mxu0 %v1124
        %v1208 = vpop.f32.mrf.mxu0
        %v1209 = vadd.f32 %v917, %v1208
        %v1210 = vpop.f32.mrf.mxu0
        %v1211 = vpop.f32.mrf.mxu0
        %v1212 = vadd.f32 %v920, %v1211
        %v1213 = vpop.f32.mrf.mxu0
        %1214 = vmatprep.mubr.bf16.mxu0 0
        %1215 = vmatmul.mubr.bf16.gmra.mxu0 %v1127
        %v1216 = vpop.f32.mrf.mxu0
        %v1217 = vadd.f32 %v925, %v1216
        %v1218 = vpop.f32.mrf.mxu0
        %v1219 = vpop.f32.mrf.mxu0
        %v1220 = vadd.f32 %v928, %v1219
        %v1221 = vpop.f32.mrf.mxu0
        %1222 = vmatprep.mubr.bf16.mxu0 0
        %1223 = vmatmul.mubr.bf16.gmra.mxu0 %v1130
        %v1224 = vpop.f32.mrf.mxu0
        %v1225 = vadd.f32 %v933, %v1224
        %v1226 = vpop.f32.mrf.mxu0
        %v1227 = vpop.f32.mrf.mxu0
        %v1228 = vadd.f32 %v936, %v1227
        %v1229 = vpop.f32.mrf.mxu0
        %1230 = vmatprep.mubr.bf16.mxu0 0
        %1231 = vmatmul.mubr.bf16.gmra.mxu0 %v1133
        %v1232 = vpop.f32.mrf.mxu0
        %v1233 = vadd.f32 %v941, %v1232
        %v1234 = vpop.f32.mrf.mxu0
        %v1235 = vpop.f32.mrf.mxu0
        %v1236 = vadd.f32 %v944, %v1235
        %v1237 = vpop.f32.mrf.mxu0
        %1238 = vmatprep.mubr.bf16.mxu0 0
        %1239 = vmatmul.mubr.bf16.gmra.mxu0 %v1136
        %v1240 = vpop.f32.mrf.mxu0
        %v1241 = vadd.f32 %v949, %v1240
        %v1242 = vpop.f32.mrf.mxu0
        %v1243 = vpop.f32.mrf.mxu0
        %v1244 = vadd.f32 %v952, %v1243
        %v1245 = vpop.f32.mrf.mxu0
        %1246 = vmatprep.mubr.bf16.mxu0 0
        %1247 = vmatmul.mubr.bf16.gmra.mxu0 %v1139
        %v1248 = vpop.f32.mrf.mxu0
        %v1249 = vadd.f32 %v957, %v1248
        %v1250 = vpop.f32.mrf.mxu0
        %v1251 = vpop.f32.mrf.mxu0
        %v1252 = vadd.f32 %v960, %v1251
        %v1253 = vpop.f32.mrf.mxu0
        %1254 = vmatprep.mubr.bf16.mxu0 0
        %1255 = vmatmul.mubr.bf16.gmra.mxu0 %v1142
        %v1256 = vpop.f32.mrf.mxu0
        %v1257 = vadd.f32 %v965, %v1256
        %v1258 = vpop.f32.mrf.mxu0
        %v1259 = vpop.f32.mrf.mxu0
        %v1260 = vadd.f32 %v968, %v1259
        %v1261 = vpop.f32.mrf.mxu0
        %1262 = vmatprep.mubr.bf16.mxu0 0
        %1263 = vmatmul.mubr.bf16.gmra.mxu0 %v1145
        %v1264 = vpop.f32.mrf.mxu0
        %v1265 = vadd.f32 %v973, %v1264
        %v1266 = vpop.f32.mrf.mxu0
        %v1267 = vpop.f32.mrf.mxu0
        %v1268 = vadd.f32 %v976, %v1267
        %v1269 = vpop.f32.mrf.mxu0
        %1270 = vmatprep.mubr.bf16.mxu0 0
        %1271 = vmatmul.mubr.bf16.gmra.mxu0 %v1148
        %v1272 = vpop.f32.mrf.mxu0
        %v1273 = vadd.f32 %v981, %v1272
        %v1274 = vpop.f32.mrf.mxu0
        %v1275 = vpop.f32.mrf.mxu0
        %v1276 = vadd.f32 %v984, %v1275
        %v1277 = vpop.f32.mrf.mxu0
        %1278 = vmatprep.mubr.bf16.mxu0 0
        %1279 = vmatmul.mubr.bf16.gmra.mxu0 %v1151
        %v1280 = vpop.f32.mrf.mxu0
        %v1281 = vadd.f32 %v989, %v1280
        %v1282 = vpop.f32.mrf.mxu0
        %v1283 = vpop.f32.mrf.mxu0
        %v1284 = vadd.f32 %v992, %v1283
        %v1285 = vpop.f32.mrf.mxu0
        %1286 = vmatprep.mubr.bf16.mxu0 0
        %1287 = vmatmul.mubr.bf16.gmra.mxu0 %v1154
        %v1288 = vpop.f32.mrf.mxu0
        %v1289 = vadd.f32 %v997, %v1288
        %v1290 = vpop.f32.mrf.mxu0
        %v1291 = vpop.f32.mrf.mxu0
        %v1292 = vadd.f32 %v1000, %v1291
        %v1293 = vpop.f32.mrf.mxu0
        %1294 = vmatprep.mubr.bf16.mxu0 0
        %1295 = vmatmul.mubr.bf16.gmra.mxu0 %v1157
        %v1296 = vpop.f32.mrf.mxu0
        %v1297 = vadd.f32 %v1005, %v1296
        %v1298 = vpop.f32.mrf.mxu0
        %v1299 = vpop.f32.mrf.mxu0
        %v1300 = vadd.f32 %v1008, %v1299
        %v1301 = vpop.f32.mrf.mxu0
        %1302 = vmatprep.mubr.bf16.mxu0 0
        %1303 = vmatmul.mubr.bf16.gmra.mxu0 %v1160
        %v1304 = vpop.f32.mrf.mxu0
        %v1305 = vadd.f32 %v1013, %v1304
        %v1306 = vpop.f32.mrf.mxu0
        %v1307 = vpop.f32.mrf.mxu0
        %v1308 = vadd.f32 %v1016, %v1307
        %v1309 = vpop.f32.mrf.mxu0
        %1310 = vmatprep.mubr.bf16.mxu0 0
        %1311 = vmatmul.mubr.bf16.gmra.mxu0 %v1163
        %v1312 = vpop.f32.mrf.mxu0
        %v1313 = vadd.f32 %v1021, %v1312
        %v1314 = vpop.f32.mrf.mxu0
        %v1315 = vpop.f32.mrf.mxu0
        %v1316 = vadd.f32 %v1024, %v1315
        %v1317 = vpop.f32.mrf.mxu0
        %1318 = vmatprep.mubr.bf16.mxu0 0
        %1319 = vmatmul.mubr.bf16.gmra.mxu0 %v1166
        %v1320 = vpop.f32.mrf.mxu0
        %v1321 = vadd.f32 %v1029, %v1320
        %v1322 = vpop.f32.mrf.mxu0
        %v1323 = vpop.f32.mrf.mxu0
        %v1324 = vadd.f32 %v1032, %v1323
        %v1325 = vpop.f32.mrf.mxu0
        %1326 = vmatprep.mubr.bf16.mxu0 0
        %1327 = vmatmul.mubr.bf16.gmra.mxu0 %v1169
        %v1328 = vpop.f32.mrf.mxu0
        %v1329 = vadd.f32 %v1037, %v1328
        %v1330 = vpop.f32.mrf.mxu0
        %v1331 = vpop.f32.mrf.mxu0
        %v1332 = vadd.f32 %v1040, %v1331
        %v1333 = vpop.f32.mrf.mxu0
        %1334 = vdwg.mxu0
        %vm1351 = vcmask 1042432
        %vm1352 = vcmask 1046532
        %vm1353 = vmor %vm1351, %vm1352
        %v1354 = vrot.slane %v331, 5
        %v1355 = vrot.slane %v1354, 4
        %v1356 = vrot.slane %v332, 5
        %v1357 = vsel %vm1353, %v1355, %v1356
        %v1358 = vrot.slane %v1356, 4
        %v1359 = vrot.slane %v333, 5
        %v1360 = vsel %vm1353, %v1358, %v1359
        %v1361 = vrot.slane %v334, 5
        %v1362 = vrot.slane %v1361, 4
        %v1363 = vrot.slane %v335, 5
        %v1364 = vsel %vm1353, %v1362, %v1363
        %v1365 = vrot.slane %v1363, 4
        %v1366 = vrot.slane %v336, 5
        %v1367 = vsel %vm1353, %v1365, %v1366
        %v1368 = vrot.slane %v337, 5
        %v1369 = vrot.slane %v1368, 4
        %v1370 = vrot.slane %v338, 5
        %v1371 = vsel %vm1353, %v1369, %v1370
        %v1372 = vrot.slane %v1370, 4
        %v1373 = vrot.slane %v339, 5
        %v1374 = vsel %vm1353, %v1372, %v1373
        %v1375 = vrot.slane %v340, 5
        %v1376 = vrot.slane %v1375, 4
        %v1377 = vrot.slane %v341, 5
        %v1378 = vsel %vm1353, %v1376, %v1377
        %v1379 = vrot.slane %v1377, 4
        %v1380 = vrot.slane %v342, 5
        %v1381 = vsel %vm1353, %v1379, %v1380
        %v1382 = vrot.slane %v343, 5
        %v1383 = vrot.slane %v1382, 4
        %v1384 = vrot.slane %v344, 5
        %v1385 = vsel %vm1353, %v1383, %v1384
        %v1386 = vrot.slane %v1384, 4
        %v1387 = vrot.slane %v345, 5
        %v1388 = vsel %vm1353, %v1386, %v1387
        %v1389 = vrot.slane %v346, 5
        %v1390 = vrot.slane %v1389, 4
        %v1391 = vrot.slane %v347, 5
        %v1392 = vsel %vm1353, %v1390, %v1391
        %v1393 = vrot.slane %v1391, 4
        %v1394 = vrot.slane %v348, 5
        %v1395 = vsel %vm1353, %v1393, %v1394
        %v1396 = vrot.slane %v349, 5
        %v1397 = vrot.slane %v1396, 4
        %v1398 = vrot.slane %v350, 5
        %v1399 = vsel %vm1353, %v1397, %v1398
        %v1400 = vrot.slane %v1398, 4
        %v1401 = vrot.slane %v351, 5
        %v1402 = vsel %vm1353, %v1400, %v1401
        %v1403 = vrot.slane %v352, 5
        %v1404 = vrot.slane %v1403, 4
        %v1405 = vrot.slane %v353, 5
        %v1406 = vsel %vm1353, %v1404, %v1405
        %v1407 = vrot.slane %v1405, 4
        %v1408 = vrot.slane %v354, 5
        %v1409 = vsel %vm1353, %v1407, %v1408
        %v1410 = vrot.slane %v355, 5
        %v1411 = vrot.slane %v1410, 4
        %v1412 = vrot.slane %v356, 5
        %v1413 = vsel %vm1353, %v1411, %v1412
        %v1414 = vrot.slane %v1412, 4
        %v1415 = vrot.slane %v357, 5
        %v1416 = vsel %vm1353, %v1414, %v1415
        %v1417 = vrot.slane %v358, 5
        %v1418 = vrot.slane %v1417, 4
        %v1419 = vrot.slane %v359, 5
        %v1420 = vsel %vm1353, %v1418, %v1419
        %v1421 = vrot.slane %v1419, 4
        %v1422 = vrot.slane %v360, 5
        %v1423 = vsel %vm1353, %v1421, %v1422
        %v1424 = vrot.slane %v361, 5
        %v1425 = vrot.slane %v1424, 4
        %v1426 = vrot.slane %v362, 5
        %v1427 = vsel %vm1353, %v1425, %v1426
        %v1428 = vrot.slane %v1426, 4
        %v1429 = vrot.slane %v363, 5
        %v1430 = vsel %vm1353, %v1428, %v1429
        %v1431 = vrot.slane %v364, 5
        %v1432 = vrot.slane %v1431, 4
        %v1433 = vrot.slane %v365, 5
        %v1434 = vsel %vm1353, %v1432, %v1433
        %v1435 = vrot.slane %v1433, 4
        %v1436 = vrot.slane %v366, 5
        %v1437 = vsel %vm1353, %v1435, %v1436
        %v1438 = vrot.slane %v367, 5
        %v1439 = vrot.slane %v1438, 4
        %v1440 = vrot.slane %v368, 5
        %v1441 = vsel %vm1353, %v1439, %v1440
        %v1442 = vrot.slane %v1440, 4
        %v1443 = vrot.slane %v369, 5
        %v1444 = vsel %vm1353, %v1442, %v1443
        %v1445 = vrot.slane %v370, 5
        %v1446 = vrot.slane %v1445, 4
        %v1447 = vrot.slane %v371, 5
        %v1448 = vsel %vm1353, %v1446, %v1447
        %v1449 = vrot.slane %v1447, 4
        %v1450 = vrot.slane %v372, 5
        %v1451 = vsel %vm1353, %v1449, %v1450
        %v1452 = vrot.slane %v373, 5
        %v1453 = vrot.slane %v1452, 4
        %v1454 = vrot.slane %v374, 5
        %v1455 = vsel %vm1353, %v1453, %v1454
        %v1456 = vrot.slane %v1454, 4
        %v1457 = vrot.slane %v375, 5
        %v1458 = vsel %vm1353, %v1456, %v1457
        %v1459 = vrot.slane %v376, 5
        %v1460 = vrot.slane %v1459, 4
        %v1461 = vrot.slane %v377, 5
        %v1462 = vsel %vm1353, %v1460, %v1461
        %v1463 = vrot.slane %v1461, 4
        %v1464 = vrot.slane %v378, 5
        %v1465 = vsel %vm1353, %v1463, %v1464
        %v1466 = vunpack.c.l.b16 %v1357
        %v1467 = vunpack.c.l.b16 %v1360
        %v1468 = vunpack.c.l.b16 %v1364
        %v1469 = vunpack.c.l.b16 %v1367
        %v1470 = vunpack.c.l.b16 %v1371
        %v1471 = vunpack.c.l.b16 %v1374
        %v1472 = vunpack.c.l.b16 %v1378
        %v1473 = vunpack.c.l.b16 %v1381
        %v1474 = vunpack.c.l.b16 %v1385
        %v1475 = vunpack.c.l.b16 %v1388
        %v1476 = vunpack.c.l.b16 %v1392
        %v1477 = vunpack.c.l.b16 %v1395
        %v1478 = vunpack.c.l.b16 %v1399
        %v1479 = vunpack.c.l.b16 %v1402
        %v1480 = vunpack.c.l.b16 %v1406
        %v1481 = vunpack.c.l.b16 %v1409
        %v1482 = vunpack.c.l.b16 %v1413
        %v1483 = vunpack.c.l.b16 %v1416
        %v1484 = vunpack.c.l.b16 %v1420
        %v1485 = vunpack.c.l.b16 %v1423
        %v1486 = vunpack.c.l.b16 %v1427
        %v1487 = vunpack.c.l.b16 %v1430
        %v1488 = vunpack.c.l.b16 %v1434
        %v1489 = vunpack.c.l.b16 %v1437
        %v1490 = vunpack.c.l.b16 %v1441
        %v1491 = vunpack.c.l.b16 %v1444
        %v1492 = vunpack.c.l.b16 %v1448
        %v1493 = vunpack.c.l.b16 %v1451
        %v1494 = vunpack.c.l.b16 %v1455
        %v1495 = vunpack.c.l.b16 %v1458
        %v1496 = vunpack.c.l.b16 %v1462
        %v1497 = vunpack.c.l.b16 %v1465
        %v1498 = vpack.c.b16 %v1467, %v1466
        %v1499 = vpack.c.b16 %v1469, %v1468
        %v1500 = vpack.c.b16 %v1471, %v1470
        %v1501 = vpack.c.b16 %v1473, %v1472
        %v1502 = vpack.c.b16 %v1475, %v1474
        %v1503 = vpack.c.b16 %v1477, %v1476
        %v1504 = vpack.c.b16 %v1479, %v1478
        %v1505 = vpack.c.b16 %v1481, %v1480
        %v1506 = vpack.c.b16 %v1483, %v1482
        %v1507 = vpack.c.b16 %v1485, %v1484
        %v1508 = vpack.c.b16 %v1487, %v1486
        %v1509 = vpack.c.b16 %v1489, %v1488
        %v1510 = vpack.c.b16 %v1491, %v1490
        %v1511 = vpack.c.b16 %v1493, %v1492
        %v1512 = vpack.c.b16 %v1495, %v1494
        %v1513 = vpack.c.b16 %v1497, %v1496
        %v1515 = vsel %vm829, %v1498, 0
        %v1518 = vsel %vm829, %v1499, 0
        %v1521 = vsel %vm829, %v1500, 0
        %v1524 = vsel %vm829, %v1501, 0
        %v1527 = vsel %vm829, %v1502, 0
        %v1530 = vsel %vm829, %v1503, 0
        %v1533 = vsel %vm829, %v1504, 0
        %v1536 = vsel %vm829, %v1505, 0
        %v1539 = vsel %vm829, %v1506, 0
        %v1542 = vsel %vm829, %v1507, 0
        %v1545 = vsel %vm829, %v1508, 0
        %v1548 = vsel %vm829, %v1509, 0
        %v1551 = vsel %vm829, %v1510, 0
        %v1554 = vsel %vm829, %v1511, 0
        %v1557 = vsel %vm829, %v1512, 0
        %v1560 = vsel %vm829, %v1513, 0
        %v1563 = vsel %vm878, %v387, 0
        %1565 = vmatprep.subr.bf16.mxu0 0
        %1566 = vmatpush1.bf16.msra.mxu0 0
        %1567 = vmatprep.subr.bf16.mxu0 0
        %1568 = vmatpush1.bf16.msra.mxu0 0
        %1569 = vmatprep.subr.bf16.mxu0 0
        %1570 = vmatpush1.bf16.msra.mxu0 0
        %1571 = vmatprep.subr.bf16.mxu0 0
        %1572 = vmatpush1.bf16.msra.mxu0 0
        %1573 = vmatprep.subr.bf16.mxu0 0
        %1574 = vmatpush1.bf16.msra.mxu0 0
        %1575 = vmatprep.subr.bf16.mxu0 0
        %1576 = vmatpush1.bf16.msra.mxu0 0
        %1577 = vmatprep.subr.bf16.mxu0 0
        %1578 = vmatpush1.bf16.msra.mxu0 0
        %1579 = vmatprep.subr.bf16.mxu0 0
        %1580 = vmatpush1.bf16.msra.mxu0 %v1563
        %1581 = vmatprep.subr.bf16.mxu0 0
        %1582 = vmatpush2.bf16.msra.mxu0 0
        %1583 = vmatprep.subr.bf16.mxu0 0
        %1584 = vmatpush2.bf16.msra.mxu0 0
        %1585 = vmatprep.subr.bf16.mxu0 0
        %1586 = vmatpush2.bf16.msra.mxu0 0
        %1587 = vmatprep.subr.bf16.mxu0 0
        %1588 = vmatpush2.bf16.msra.mxu0 0
        %1589 = vmatprep.subr.bf16.mxu0 0
        %1590 = vmatpush2.bf16.msra.mxu0 0
        %1591 = vmatprep.subr.bf16.mxu0 0
        %1592 = vmatpush2.bf16.msra.mxu0 0
        %1593 = vmatprep.subr.bf16.mxu0 0
        %1594 = vmatpush2.bf16.msra.mxu0 0
        %1595 = vmatprep.subr.bf16.mxu0 0
        %1596 = vmatpush2.bf16.msra.mxu0 0
        %1597 = vmatprep.mubr.bf16.mxu0 0
        %1598 = vmatmul.mubr.bf16.gmra.mxu0 %v1515
        %v1599 = vpop.f32.mrf.mxu0
        %v1600 = vadd.f32 0.0, %v1599
        %v1601 = vpop.f32.mrf.mxu0
        %v1602 = vpop.f32.mrf.mxu0
        %v1603 = vadd.f32 0.0, %v1602
        %v1604 = vpop.f32.mrf.mxu0
        %1605 = vmatprep.mubr.bf16.mxu0 0
        %1606 = vmatmul.mubr.bf16.gmra.mxu0 %v1518
        %v1607 = vpop.f32.mrf.mxu0
        %v1608 = vadd.f32 0.0, %v1607
        %v1609 = vpop.f32.mrf.mxu0
        %v1610 = vpop.f32.mrf.mxu0
        %v1611 = vadd.f32 0.0, %v1610
        %v1612 = vpop.f32.mrf.mxu0
        %1613 = vmatprep.mubr.bf16.mxu0 0
        %1614 = vmatmul.mubr.bf16.gmra.mxu0 %v1521
        %v1615 = vpop.f32.mrf.mxu0
        %v1616 = vadd.f32 0.0, %v1615
        %v1617 = vpop.f32.mrf.mxu0
        %v1618 = vpop.f32.mrf.mxu0
        %v1619 = vadd.f32 0.0, %v1618
        %v1620 = vpop.f32.mrf.mxu0
        %1621 = vmatprep.mubr.bf16.mxu0 0
        %1622 = vmatmul.mubr.bf16.gmra.mxu0 %v1524
        %v1623 = vpop.f32.mrf.mxu0
        %v1624 = vadd.f32 0.0, %v1623
        %v1625 = vpop.f32.mrf.mxu0
        %v1626 = vpop.f32.mrf.mxu0
        %v1627 = vadd.f32 0.0, %v1626
        %v1628 = vpop.f32.mrf.mxu0
        %1629 = vmatprep.mubr.bf16.mxu0 0
        %1630 = vmatmul.mubr.bf16.gmra.mxu0 %v1527
        %v1631 = vpop.f32.mrf.mxu0
        %v1632 = vadd.f32 0.0, %v1631
        %v1633 = vpop.f32.mrf.mxu0
        %v1634 = vpop.f32.mrf.mxu0
        %v1635 = vadd.f32 0.0, %v1634
        %v1636 = vpop.f32.mrf.mxu0
        %1637 = vmatprep.mubr.bf16.mxu0 0
        %1638 = vmatmul.mubr.bf16.gmra.mxu0 %v1530
        %v1639 = vpop.f32.mrf.mxu0
        %v1640 = vadd.f32 0.0, %v1639
        %v1641 = vpop.f32.mrf.mxu0
        %v1642 = vpop.f32.mrf.mxu0
        %v1643 = vadd.f32 0.0, %v1642
        %v1644 = vpop.f32.mrf.mxu0
        %1645 = vmatprep.mubr.bf16.mxu0 0
        %1646 = vmatmul.mubr.bf16.gmra.mxu0 %v1533
        %v1647 = vpop.f32.mrf.mxu0
        %v1648 = vadd.f32 0.0, %v1647
        %v1649 = vpop.f32.mrf.mxu0
        %v1650 = vpop.f32.mrf.mxu0
        %v1651 = vadd.f32 0.0, %v1650
        %v1652 = vpop.f32.mrf.mxu0
        %1653 = vmatprep.mubr.bf16.mxu0 0
        %1654 = vmatmul.mubr.bf16.gmra.mxu0 %v1536
        %v1655 = vpop.f32.mrf.mxu0
        %v1656 = vadd.f32 0.0, %v1655
        %v1657 = vpop.f32.mrf.mxu0
        %v1658 = vpop.f32.mrf.mxu0
        %v1659 = vadd.f32 0.0, %v1658
        %v1660 = vpop.f32.mrf.mxu0
        %1661 = vmatprep.mubr.bf16.mxu0 0
        %1662 = vmatmul.mubr.bf16.gmra.mxu0 %v1539
        %v1663 = vpop.f32.mrf.mxu0
        %v1664 = vadd.f32 0.0, %v1663
        %v1665 = vpop.f32.mrf.mxu0
        %v1666 = vpop.f32.mrf.mxu0
        %v1667 = vadd.f32 0.0, %v1666
        %v1668 = vpop.f32.mrf.mxu0
        %1669 = vmatprep.mubr.bf16.mxu0 0
        %1670 = vmatmul.mubr.bf16.gmra.mxu0 %v1542
        %v1671 = vpop.f32.mrf.mxu0
        %v1672 = vadd.f32 0.0, %v1671
        %v1673 = vpop.f32.mrf.mxu0
        %v1674 = vpop.f32.mrf.mxu0
        %v1675 = vadd.f32 0.0, %v1674
        %v1676 = vpop.f32.mrf.mxu0
        %1677 = vmatprep.mubr.bf16.mxu0 0
        %1678 = vmatmul.mubr.bf16.gmra.mxu0 %v1545
        %v1679 = vpop.f32.mrf.mxu0
        %v1680 = vadd.f32 0.0, %v1679
        %v1681 = vpop.f32.mrf.mxu0
        %v1682 = vpop.f32.mrf.mxu0
        %v1683 = vadd.f32 0.0, %v1682
        %v1684 = vpop.f32.mrf.mxu0
        %1685 = vmatprep.mubr.bf16.mxu0 0
        %1686 = vmatmul.mubr.bf16.gmra.mxu0 %v1548
        %v1687 = vpop.f32.mrf.mxu0
        %v1688 = vadd.f32 0.0, %v1687
        %v1689 = vpop.f32.mrf.mxu0
        %v1690 = vpop.f32.mrf.mxu0
        %v1691 = vadd.f32 0.0, %v1690
        %v1692 = vpop.f32.mrf.mxu0
        %1693 = vmatprep.mubr.bf16.mxu0 0
        %1694 = vmatmul.mubr.bf16.gmra.mxu0 %v1551
        %v1695 = vpop.f32.mrf.mxu0
        %v1696 = vadd.f32 0.0, %v1695
        %v1697 = vpop.f32.mrf.mxu0
        %v1698 = vpop.f32.mrf.mxu0
        %v1699 = vadd.f32 0.0, %v1698
        %v1700 = vpop.f32.mrf.mxu0
        %1701 = vmatprep.mubr.bf16.mxu0 0
        %1702 = vmatmul.mubr.bf16.gmra.mxu0 %v1554
        %v1703 = vpop.f32.mrf.mxu0
        %v1704 = vadd.f32 0.0, %v1703
        %v1705 = vpop.f32.mrf.mxu0
        %v1706 = vpop.f32.mrf.mxu0
        %v1707 = vadd.f32 0.0, %v1706
        %v1708 = vpop.f32.mrf.mxu0
        %1709 = vmatprep.mubr.bf16.mxu0 0
        %1710 = vmatmul.mubr.bf16.gmra.mxu0 %v1557
        %v1711 = vpop.f32.mrf.mxu0
        %v1712 = vadd.f32 0.0, %v1711
        %v1713 = vpop.f32.mrf.mxu0
        %v1714 = vpop.f32.mrf.mxu0
        %v1715 = vadd.f32 0.0, %v1714
        %v1716 = vpop.f32.mrf.mxu0
        %1717 = vmatprep.mubr.bf16.mxu0 0
        %1718 = vmatmul.mubr.bf16.gmra.mxu0 %v1560
        %v1719 = vpop.f32.mrf.mxu0
        %v1720 = vadd.f32 0.0, %v1719
        %v1721 = vpop.f32.mrf.mxu0
        %v1722 = vpop.f32.mrf.mxu0
        %v1723 = vadd.f32 0.0, %v1722
        %v1724 = vpop.f32.mrf.mxu0
        %1725 = vdwg.mxu0
        %v1726 = vadd.f32 %v1209, %v1600
        %v1727 = vadd.f32 %v1212, %v1603
        %v1728 = vadd.f32 %v1217, %v1608
        %v1729 = vadd.f32 %v1220, %v1611
        %v1730 = vadd.f32 %v1225, %v1616
        %v1731 = vadd.f32 %v1228, %v1619
        %v1732 = vadd.f32 %v1233, %v1624
        %v1733 = vadd.f32 %v1236, %v1627
        %v1734 = vadd.f32 %v1241, %v1632
        %v1735 = vadd.f32 %v1244, %v1635
        %v1736 = vadd.f32 %v1249, %v1640
        %v1737 = vadd.f32 %v1252, %v1643
        %v1738 = vadd.f32 %v1257, %v1648
        %v1739 = vadd.f32 %v1260, %v1651
        %v1740 = vadd.f32 %v1265, %v1656
        %v1741 = vadd.f32 %v1268, %v1659
        %v1742 = vadd.f32 %v1273, %v1664
        %v1743 = vadd.f32 %v1276, %v1667
        %v1744 = vadd.f32 %v1281, %v1672
        %v1745 = vadd.f32 %v1284, %v1675
        %v1746 = vadd.f32 %v1289, %v1680
        %v1747 = vadd.f32 %v1292, %v1683
        %v1748 = vadd.f32 %v1297, %v1688
        %v1749 = vadd.f32 %v1300, %v1691
        %v1750 = vadd.f32 %v1305, %v1696
        %v1751 = vadd.f32 %v1308, %v1699
        %v1752 = vadd.f32 %v1313, %v1704
        %v1753 = vadd.f32 %v1316, %v1707
        %v1754 = vadd.f32 %v1321, %v1712
        %v1755 = vadd.f32 %v1324, %v1715
        %v1756 = vadd.f32 %v1329, %v1720
        %v1757 = vadd.f32 %v1332, %v1723
        %v1760 = vunpack.c.l.b16 %v379
        %v1761 = vunpack.c.l.b16 %v380
        %v1762 = vpack.c.b16 %v1761, %v1760
        %v1764 = vsel %vm829, %v1762, 0
        %v1767 = vsel %vm878, %v388, 0
        %1769 = vmatprep.subr.bf16.mxu0 0
        %1770 = vmatpush1.bf16.msra.mxu0 0
        %1771 = vmatprep.subr.bf16.mxu0 0
        %1772 = vmatpush1.bf16.msra.mxu0 0
        %1773 = vmatprep.subr.bf16.mxu0 0
        %1774 = vmatpush1.bf16.msra.mxu0 0
        %1775 = vmatprep.subr.bf16.mxu0 0
        %1776 = vmatpush1.bf16.msra.mxu0 0
        %1777 = vmatprep.subr.bf16.mxu0 0
        %1778 = vmatpush1.bf16.msra.mxu0 0
        %1779 = vmatprep.subr.bf16.mxu0 0
        %1780 = vmatpush1.bf16.msra.mxu0 0
        %1781 = vmatprep.subr.bf16.mxu0 0
        %1782 = vmatpush1.bf16.msra.mxu0 0
        %1783 = vmatprep.subr.bf16.mxu0 0
        %1784 = vmatpush1.bf16.msra.mxu0 %v1767
        %1785 = vmatprep.subr.bf16.mxu0 0
        %1786 = vmatpush2.bf16.msra.mxu0 0
        %1787 = vmatprep.subr.bf16.mxu0 0
        %1788 = vmatpush2.bf16.msra.mxu0 0
        %1789 = vmatprep.subr.bf16.mxu0 0
        %1790 = vmatpush2.bf16.msra.mxu0 0
        %1791 = vmatprep.subr.bf16.mxu0 0
        %1792 = vmatpush2.bf16.msra.mxu0 0
        %1793 = vmatprep.subr.bf16.mxu0 0
        %1794 = vmatpush2.bf16.msra.mxu0 0
        %1795 = vmatprep.subr.bf16.mxu0 0
        %1796 = vmatpush2.bf16.msra.mxu0 0
        %1797 = vmatprep.subr.bf16.mxu0 0
        %1798 = vmatpush2.bf16.msra.mxu0 0
        %1799 = vmatprep.subr.bf16.mxu0 0
        %1800 = vmatpush2.bf16.msra.mxu0 0
        %1801 = vmatprep.mubr.bf16.mxu0 0
        %1802 = vmatmul.mubr.bf16.gmra.mxu0 %v1127
        %v1803 = vpop.f32.mrf.mxu0
        %v1804 = vadd.f32 0.0, %v1803
        %v1805 = vpop.f32.mrf.mxu0
        %v1806 = vpop.f32.mrf.mxu0
        %v1807 = vadd.f32 0.0, %v1806
        %v1808 = vpop.f32.mrf.mxu0
        %1809 = vmatprep.mubr.bf16.mxu0 0
        %1810 = vmatmul.mubr.bf16.gmra.mxu0 %v1130
        %v1811 = vpop.f32.mrf.mxu0
        %v1812 = vadd.f32 0.0, %v1811
        %v1813 = vpop.f32.mrf.mxu0
        %v1814 = vpop.f32.mrf.mxu0
        %v1815 = vadd.f32 0.0, %v1814
        %v1816 = vpop.f32.mrf.mxu0
        %1817 = vmatprep.mubr.bf16.mxu0 0
        %1818 = vmatmul.mubr.bf16.gmra.mxu0 %v1133
        %v1819 = vpop.f32.mrf.mxu0
        %v1820 = vadd.f32 0.0, %v1819
        %v1821 = vpop.f32.mrf.mxu0
        %v1822 = vpop.f32.mrf.mxu0
        %v1823 = vadd.f32 0.0, %v1822
        %v1824 = vpop.f32.mrf.mxu0
        %1825 = vmatprep.mubr.bf16.mxu0 0
        %1826 = vmatmul.mubr.bf16.gmra.mxu0 %v1136
        %v1827 = vpop.f32.mrf.mxu0
        %v1828 = vadd.f32 0.0, %v1827
        %v1829 = vpop.f32.mrf.mxu0
        %v1830 = vpop.f32.mrf.mxu0
        %v1831 = vadd.f32 0.0, %v1830
        %v1832 = vpop.f32.mrf.mxu0
        %1833 = vmatprep.mubr.bf16.mxu0 0
        %1834 = vmatmul.mubr.bf16.gmra.mxu0 %v1139
        %v1835 = vpop.f32.mrf.mxu0
        %v1836 = vadd.f32 0.0, %v1835
        %v1837 = vpop.f32.mrf.mxu0
        %v1838 = vpop.f32.mrf.mxu0
        %v1839 = vadd.f32 0.0, %v1838
        %v1840 = vpop.f32.mrf.mxu0
        %1841 = vmatprep.mubr.bf16.mxu0 0
        %1842 = vmatmul.mubr.bf16.gmra.mxu0 %v1142
        %v1843 = vpop.f32.mrf.mxu0
        %v1844 = vadd.f32 0.0, %v1843
        %v1845 = vpop.f32.mrf.mxu0
        %v1846 = vpop.f32.mrf.mxu0
        %v1847 = vadd.f32 0.0, %v1846
        %v1848 = vpop.f32.mrf.mxu0
        %1849 = vmatprep.mubr.bf16.mxu0 0
        %1850 = vmatmul.mubr.bf16.gmra.mxu0 %v1145
        %v1851 = vpop.f32.mrf.mxu0
        %v1852 = vadd.f32 0.0, %v1851
        %v1853 = vpop.f32.mrf.mxu0
        %v1854 = vpop.f32.mrf.mxu0
        %v1855 = vadd.f32 0.0, %v1854
        %v1856 = vpop.f32.mrf.mxu0
        %1857 = vmatprep.mubr.bf16.mxu0 0
        %1858 = vmatmul.mubr.bf16.gmra.mxu0 %v1148
        %v1859 = vpop.f32.mrf.mxu0
        %v1860 = vadd.f32 0.0, %v1859
        %v1861 = vpop.f32.mrf.mxu0
        %v1862 = vpop.f32.mrf.mxu0
        %v1863 = vadd.f32 0.0, %v1862
        %v1864 = vpop.f32.mrf.mxu0
        %1865 = vmatprep.mubr.bf16.mxu0 0
        %1866 = vmatmul.mubr.bf16.gmra.mxu0 %v1151
        %v1867 = vpop.f32.mrf.mxu0
        %v1868 = vadd.f32 0.0, %v1867
        %v1869 = vpop.f32.mrf.mxu0
        %v1870 = vpop.f32.mrf.mxu0
        %v1871 = vadd.f32 0.0, %v1870
        %v1872 = vpop.f32.mrf.mxu0
        %1873 = vmatprep.mubr.bf16.mxu0 0
        %1874 = vmatmul.mubr.bf16.gmra.mxu0 %v1154
        %v1875 = vpop.f32.mrf.mxu0
        %v1876 = vadd.f32 0.0, %v1875
        %v1877 = vpop.f32.mrf.mxu0
        %v1878 = vpop.f32.mrf.mxu0
        %v1879 = vadd.f32 0.0, %v1878
        %v1880 = vpop.f32.mrf.mxu0
        %1881 = vmatprep.mubr.bf16.mxu0 0
        %1882 = vmatmul.mubr.bf16.gmra.mxu0 %v1157
        %v1883 = vpop.f32.mrf.mxu0
        %v1884 = vadd.f32 0.0, %v1883
        %v1885 = vpop.f32.mrf.mxu0
        %v1886 = vpop.f32.mrf.mxu0
        %v1887 = vadd.f32 0.0, %v1886
        %v1888 = vpop.f32.mrf.mxu0
        %1889 = vmatprep.mubr.bf16.mxu0 0
        %1890 = vmatmul.mubr.bf16.gmra.mxu0 %v1160
        %v1891 = vpop.f32.mrf.mxu0
        %v1892 = vadd.f32 0.0, %v1891
        %v1893 = vpop.f32.mrf.mxu0
        %v1894 = vpop.f32.mrf.mxu0
        %v1895 = vadd.f32 0.0, %v1894
        %v1896 = vpop.f32.mrf.mxu0
        %1897 = vmatprep.mubr.bf16.mxu0 0
        %1898 = vmatmul.mubr.bf16.gmra.mxu0 %v1163
        %v1899 = vpop.f32.mrf.mxu0
        %v1900 = vadd.f32 0.0, %v1899
        %v1901 = vpop.f32.mrf.mxu0
        %v1902 = vpop.f32.mrf.mxu0
        %v1903 = vadd.f32 0.0, %v1902
        %v1904 = vpop.f32.mrf.mxu0
        %1905 = vmatprep.mubr.bf16.mxu0 0
        %1906 = vmatmul.mubr.bf16.gmra.mxu0 %v1166
        %v1907 = vpop.f32.mrf.mxu0
        %v1908 = vadd.f32 0.0, %v1907
        %v1909 = vpop.f32.mrf.mxu0
        %v1910 = vpop.f32.mrf.mxu0
        %v1911 = vadd.f32 0.0, %v1910
        %v1912 = vpop.f32.mrf.mxu0
        %1913 = vmatprep.mubr.bf16.mxu0 0
        %1914 = vmatmul.mubr.bf16.gmra.mxu0 %v1169
        %v1915 = vpop.f32.mrf.mxu0
        %v1916 = vadd.f32 0.0, %v1915
        %v1917 = vpop.f32.mrf.mxu0
        %v1918 = vpop.f32.mrf.mxu0
        %v1919 = vadd.f32 0.0, %v1918
        %v1920 = vpop.f32.mrf.mxu0
        %1921 = vmatprep.mubr.bf16.mxu0 0
        %1922 = vmatmul.mubr.bf16.gmra.mxu0 %v1764
        %v1923 = vpop.f32.mrf.mxu0
        %v1924 = vadd.f32 0.0, %v1923
        %v1925 = vpop.f32.mrf.mxu0
        %v1926 = vpop.f32.mrf.mxu0
        %v1927 = vadd.f32 0.0, %v1926
        %v1928 = vpop.f32.mrf.mxu0
        %1929 = vdwg.mxu0
        %v1930 = vadd.f32 %v1726, %v1804
        %v1931 = vadd.f32 %v1727, %v1807
        %v1932 = vadd.f32 %v1728, %v1812
        %v1933 = vadd.f32 %v1729, %v1815
        %v1934 = vadd.f32 %v1730, %v1820
        %v1935 = vadd.f32 %v1731, %v1823
        %v1936 = vadd.f32 %v1732, %v1828
        %v1937 = vadd.f32 %v1733, %v1831
        %v1938 = vadd.f32 %v1734, %v1836
        %v1939 = vadd.f32 %v1735, %v1839
        %v1940 = vadd.f32 %v1736, %v1844
        %v1941 = vadd.f32 %v1737, %v1847
        %v1942 = vadd.f32 %v1738, %v1852
        %v1943 = vadd.f32 %v1739, %v1855
        %v1944 = vadd.f32 %v1740, %v1860
        %v1945 = vadd.f32 %v1741, %v1863
        %v1946 = vadd.f32 %v1742, %v1868
        %v1947 = vadd.f32 %v1743, %v1871
        %v1948 = vadd.f32 %v1744, %v1876
        %v1949 = vadd.f32 %v1745, %v1879
        %v1950 = vadd.f32 %v1746, %v1884
        %v1951 = vadd.f32 %v1747, %v1887
        %v1952 = vadd.f32 %v1748, %v1892
        %v1953 = vadd.f32 %v1749, %v1895
        %v1954 = vadd.f32 %v1750, %v1900
        %v1955 = vadd.f32 %v1751, %v1903
        %v1956 = vadd.f32 %v1752, %v1908
        %v1957 = vadd.f32 %v1753, %v1911
        %v1958 = vadd.f32 %v1754, %v1916
        %v1959 = vadd.f32 %v1755, %v1919
        %v1960 = vadd.f32 %v1756, %v1924
        %v1961 = vadd.f32 %v1757, %v1927
        %v1963 = vshrl.u32 %v379, 16
        %v1965 = vrot.slane %v1963, 4
        %v1966 = vshll.u32 %v379, 16
        %v1968 = vrot.slane %v1966, 5
        %v1969 = vor.u32 %v1965, %v1968
        %v1970 = vrot.slane %v1969, 4
        %v1972 = vshll.u32 %v380, 16
        %v1974 = vrot.slane %v1972, 5
        %v1975 = vsel %vm396, %v1970, %v1974
        %v1976 = vshrl.u32 %v380, 16
        %v1978 = vrot.slane %v1976, 4
        %v1979 = vor.u32 %v1978, %v1974
        %v1980 = vrot.slane %v1979, 4
        %v1982 = vshll.u32 %v381, 16
        %v1984 = vrot.slane %v1982, 5
        %v1985 = vsel %vm396, %v1980, %v1984
        %v1986 = vunpack.c.l.b16 %v1975
        %v1987 = vunpack.c.l.b16 %v1985
        %v1988 = vpack.c.b16 %v1987, %v1986
        %v1990 = vsel %vm829, %v1988, 0
        %v1993 = vsel %vm878, %v389, 0
        %1995 = vmatprep.subr.bf16.mxu0 0
        %1996 = vmatpush1.bf16.msra.mxu0 0
        %1997 = vmatprep.subr.bf16.mxu0 0
        %1998 = vmatpush1.bf16.msra.mxu0 0
        %1999 = vmatprep.subr.bf16.mxu0 0
        %2000 = vmatpush1.bf16.msra.mxu0 0
        %2001 = vmatprep.subr.bf16.mxu0 0
        %2002 = vmatpush1.bf16.msra.mxu0 0
        %2003 = vmatprep.subr.bf16.mxu0 0
        %2004 = vmatpush1.bf16.msra.mxu0 0
        %2005 = vmatprep.subr.bf16.mxu0 0
        %2006 = vmatpush1.bf16.msra.mxu0 0
        %2007 = vmatprep.subr.bf16.mxu0 0
        %2008 = vmatpush1.bf16.msra.mxu0 0
        %2009 = vmatprep.subr.bf16.mxu0 0
        %2010 = vmatpush1.bf16.msra.mxu0 %v1993
        %2011 = vmatprep.subr.bf16.mxu0 0
        %2012 = vmatpush2.bf16.msra.mxu0 0
        %2013 = vmatprep.subr.bf16.mxu0 0
        %2014 = vmatpush2.bf16.msra.mxu0 0
        %2015 = vmatprep.subr.bf16.mxu0 0
        %2016 = vmatpush2.bf16.msra.mxu0 0
        %2017 = vmatprep.subr.bf16.mxu0 0
        %2018 = vmatpush2.bf16.msra.mxu0 0
        %2019 = vmatprep.subr.bf16.mxu0 0
        %2020 = vmatpush2.bf16.msra.mxu0 0
        %2021 = vmatprep.subr.bf16.mxu0 0
        %2022 = vmatpush2.bf16.msra.mxu0 0
        %2023 = vmatprep.subr.bf16.mxu0 0
        %2024 = vmatpush2.bf16.msra.mxu0 0
        %2025 = vmatprep.subr.bf16.mxu0 0
        %2026 = vmatpush2.bf16.msra.mxu0 0
        %2027 = vmatprep.mubr.bf16.mxu0 0
        %2028 = vmatmul.mubr.bf16.gmra.mxu0 %v834
        %v2029 = vpop.f32.mrf.mxu0
        %v2030 = vadd.f32 0.0, %v2029
        %v2031 = vpop.f32.mrf.mxu0
        %v2032 = vpop.f32.mrf.mxu0
        %v2033 = vadd.f32 0.0, %v2032
        %v2034 = vpop.f32.mrf.mxu0
        %2035 = vmatprep.mubr.bf16.mxu0 0
        %2036 = vmatmul.mubr.bf16.gmra.mxu0 %v837
        %v2037 = vpop.f32.mrf.mxu0
        %v2038 = vadd.f32 0.0, %v2037
        %v2039 = vpop.f32.mrf.mxu0
        %v2040 = vpop.f32.mrf.mxu0
        %v2041 = vadd.f32 0.0, %v2040
        %v2042 = vpop.f32.mrf.mxu0
        %2043 = vmatprep.mubr.bf16.mxu0 0
        %2044 = vmatmul.mubr.bf16.gmra.mxu0 %v840
        %v2045 = vpop.f32.mrf.mxu0
        %v2046 = vadd.f32 0.0, %v2045
        %v2047 = vpop.f32.mrf.mxu0
        %v2048 = vpop.f32.mrf.mxu0
        %v2049 = vadd.f32 0.0, %v2048
        %v2050 = vpop.f32.mrf.mxu0
        %2051 = vmatprep.mubr.bf16.mxu0 0
        %2052 = vmatmul.mubr.bf16.gmra.mxu0 %v843
        %v2053 = vpop.f32.mrf.mxu0
        %v2054 = vadd.f32 0.0, %v2053
        %v2055 = vpop.f32.mrf.mxu0
        %v2056 = vpop.f32.mrf.mxu0
        %v2057 = vadd.f32 0.0, %v2056
        %v2058 = vpop.f32.mrf.mxu0
        %2059 = vmatprep.mubr.bf16.mxu0 0
        %2060 = vmatmul.mubr.bf16.gmra.mxu0 %v846
        %v2061 = vpop.f32.mrf.mxu0
        %v2062 = vadd.f32 0.0, %v2061
        %v2063 = vpop.f32.mrf.mxu0
        %v2064 = vpop.f32.mrf.mxu0
        %v2065 = vadd.f32 0.0, %v2064
        %v2066 = vpop.f32.mrf.mxu0
        %2067 = vmatprep.mubr.bf16.mxu0 0
        %2068 = vmatmul.mubr.bf16.gmra.mxu0 %v849
        %v2069 = vpop.f32.mrf.mxu0
        %v2070 = vadd.f32 0.0, %v2069
        %v2071 = vpop.f32.mrf.mxu0
        %v2072 = vpop.f32.mrf.mxu0
        %v2073 = vadd.f32 0.0, %v2072
        %v2074 = vpop.f32.mrf.mxu0
        %2075 = vmatprep.mubr.bf16.mxu0 0
        %2076 = vmatmul.mubr.bf16.gmra.mxu0 %v852
        %v2077 = vpop.f32.mrf.mxu0
        %v2078 = vadd.f32 0.0, %v2077
        %v2079 = vpop.f32.mrf.mxu0
        %v2080 = vpop.f32.mrf.mxu0
        %v2081 = vadd.f32 0.0, %v2080
        %v2082 = vpop.f32.mrf.mxu0
        %2083 = vmatprep.mubr.bf16.mxu0 0
        %2084 = vmatmul.mubr.bf16.gmra.mxu0 %v855
        %v2085 = vpop.f32.mrf.mxu0
        %v2086 = vadd.f32 0.0, %v2085
        %v2087 = vpop.f32.mrf.mxu0
        %v2088 = vpop.f32.mrf.mxu0
        %v2089 = vadd.f32 0.0, %v2088
        %v2090 = vpop.f32.mrf.mxu0
        %2091 = vmatprep.mubr.bf16.mxu0 0
        %2092 = vmatmul.mubr.bf16.gmra.mxu0 %v858
        %v2093 = vpop.f32.mrf.mxu0
        %v2094 = vadd.f32 0.0, %v2093
        %v2095 = vpop.f32.mrf.mxu0
        %v2096 = vpop.f32.mrf.mxu0
        %v2097 = vadd.f32 0.0, %v2096
        %v2098 = vpop.f32.mrf.mxu0
        %2099 = vmatprep.mubr.bf16.mxu0 0
        %2100 = vmatmul.mubr.bf16.gmra.mxu0 %v861
        %v2101 = vpop.f32.mrf.mxu0
        %v2102 = vadd.f32 0.0, %v2101
        %v2103 = vpop.f32.mrf.mxu0
        %v2104 = vpop.f32.mrf.mxu0
        %v2105 = vadd.f32 0.0, %v2104
        %v2106 = vpop.f32.mrf.mxu0
        %2107 = vmatprep.mubr.bf16.mxu0 0
        %2108 = vmatmul.mubr.bf16.gmra.mxu0 %v864
        %v2109 = vpop.f32.mrf.mxu0
        %v2110 = vadd.f32 0.0, %v2109
        %v2111 = vpop.f32.mrf.mxu0
        %v2112 = vpop.f32.mrf.mxu0
        %v2113 = vadd.f32 0.0, %v2112
        %v2114 = vpop.f32.mrf.mxu0
        %2115 = vmatprep.mubr.bf16.mxu0 0
        %2116 = vmatmul.mubr.bf16.gmra.mxu0 %v867
        %v2117 = vpop.f32.mrf.mxu0
        %v2118 = vadd.f32 0.0, %v2117
        %v2119 = vpop.f32.mrf.mxu0
        %v2120 = vpop.f32.mrf.mxu0
        %v2121 = vadd.f32 0.0, %v2120
        %v2122 = vpop.f32.mrf.mxu0
        %2123 = vmatprep.mubr.bf16.mxu0 0
        %2124 = vmatmul.mubr.bf16.gmra.mxu0 %v870
        %v2125 = vpop.f32.mrf.mxu0
        %v2126 = vadd.f32 0.0, %v2125
        %v2127 = vpop.f32.mrf.mxu0
        %v2128 = vpop.f32.mrf.mxu0
        %v2129 = vadd.f32 0.0, %v2128
        %v2130 = vpop.f32.mrf.mxu0
        %2131 = vmatprep.mubr.bf16.mxu0 0
        %2132 = vmatmul.mubr.bf16.gmra.mxu0 %v873
        %v2133 = vpop.f32.mrf.mxu0
        %v2134 = vadd.f32 0.0, %v2133
        %v2135 = vpop.f32.mrf.mxu0
        %v2136 = vpop.f32.mrf.mxu0
        %v2137 = vadd.f32 0.0, %v2136
        %v2138 = vpop.f32.mrf.mxu0
        %2139 = vmatprep.mubr.bf16.mxu0 0
        %2140 = vmatmul.mubr.bf16.gmra.mxu0 %v876
        %v2141 = vpop.f32.mrf.mxu0
        %v2142 = vadd.f32 0.0, %v2141
        %v2143 = vpop.f32.mrf.mxu0
        %v2144 = vpop.f32.mrf.mxu0
        %v2145 = vadd.f32 0.0, %v2144
        %v2146 = vpop.f32.mrf.mxu0
        %2147 = vmatprep.mubr.bf16.mxu0 0
        %2148 = vmatmul.mubr.bf16.gmra.mxu0 %v1990
        %v2149 = vpop.f32.mrf.mxu0
        %v2150 = vadd.f32 0.0, %v2149
        %v2151 = vpop.f32.mrf.mxu0
        %v2152 = vpop.f32.mrf.mxu0
        %v2153 = vadd.f32 0.0, %v2152
        %v2154 = vpop.f32.mrf.mxu0
        %2155 = vdwg.mxu0
        %v2156 = vadd.f32 %v1930, %v2030
        %v2157 = vadd.f32 %v1931, %v2033
        %v2158 = vadd.f32 %v1932, %v2038
        %v2159 = vadd.f32 %v1933, %v2041
        %v2160 = vadd.f32 %v1934, %v2046
        %v2161 = vadd.f32 %v1935, %v2049
        %v2162 = vadd.f32 %v1936, %v2054
        %v2163 = vadd.f32 %v1937, %v2057
        %v2164 = vadd.f32 %v1938, %v2062
        %v2165 = vadd.f32 %v1939, %v2065
        %v2166 = vadd.f32 %v1940, %v2070
        %v2167 = vadd.f32 %v1941, %v2073
        %v2168 = vadd.f32 %v1942, %v2078
        %v2169 = vadd.f32 %v1943, %v2081
        %v2170 = vadd.f32 %v1944, %v2086
        %v2171 = vadd.f32 %v1945, %v2089
        %v2172 = vadd.f32 %v1946, %v2094
        %v2173 = vadd.f32 %v1947, %v2097
        %v2174 = vadd.f32 %v1948, %v2102
        %v2175 = vadd.f32 %v1949, %v2105
        %v2176 = vadd.f32 %v1950, %v2110
        %v2177 = vadd.f32 %v1951, %v2113
        %v2178 = vadd.f32 %v1952, %v2118
        %v2179 = vadd.f32 %v1953, %v2121
        %v2180 = vadd.f32 %v1954, %v2126
        %v2181 = vadd.f32 %v1955, %v2129
        %v2182 = vadd.f32 %v1956, %v2134
        %v2183 = vadd.f32 %v1957, %v2137
        %v2184 = vadd.f32 %v1958, %v2142
        %v2185 = vadd.f32 %v1959, %v2145
        %v2186 = vadd.f32 %v1960, %v2150
        %v2187 = vadd.f32 %v1961, %v2153
        %v2189 = vrot.slane %v379, 5
        %v2190 = vrot.slane %v2189, 4
        %v2191 = vrot.slane %v380, 5
        %v2192 = vsel %vm1353, %v2190, %v2191
        %v2193 = vrot.slane %v2191, 4
        %v2194 = vrot.slane %v381, 5
        %v2195 = vsel %vm1353, %v2193, %v2194
        %v2196 = vunpack.c.l.b16 %v2192
        %v2197 = vunpack.c.l.b16 %v2195
        %v2198 = vpack.c.b16 %v2197, %v2196
        %v2200 = vsel %vm829, %v2198, 0
        %v2203 = vsel %vm878, %v390, 0
        %2205 = vmatprep.subr.bf16.mxu0 0
        %2206 = vmatpush1.bf16.msra.mxu0 0
        %2207 = vmatprep.subr.bf16.mxu0 0
        %2208 = vmatpush1.bf16.msra.mxu0 0
        %2209 = vmatprep.subr.bf16.mxu0 0
        %2210 = vmatpush1.bf16.msra.mxu0 0
        %2211 = vmatprep.subr.bf16.mxu0 0
        %2212 = vmatpush1.bf16.msra.mxu0 0
        %2213 = vmatprep.subr.bf16.mxu0 0
        %2214 = vmatpush1.bf16.msra.mxu0 0
        %2215 = vmatprep.subr.bf16.mxu0 0
        %2216 = vmatpush1.bf16.msra.mxu0 0
        %2217 = vmatprep.subr.bf16.mxu0 0
        %2218 = vmatpush1.bf16.msra.mxu0 0
        %2219 = vmatprep.subr.bf16.mxu0 0
        %2220 = vmatpush1.bf16.msra.mxu0 %v2203
        %2221 = vmatprep.subr.bf16.mxu0 0
        %2222 = vmatpush2.bf16.msra.mxu0 0
        %2223 = vmatprep.subr.bf16.mxu0 0
        %2224 = vmatpush2.bf16.msra.mxu0 0
        %2225 = vmatprep.subr.bf16.mxu0 0
        %2226 = vmatpush2.bf16.msra.mxu0 0
        %2227 = vmatprep.subr.bf16.mxu0 0
        %2228 = vmatpush2.bf16.msra.mxu0 0
        %2229 = vmatprep.subr.bf16.mxu0 0
        %2230 = vmatpush2.bf16.msra.mxu0 0
        %2231 = vmatprep.subr.bf16.mxu0 0
        %2232 = vmatpush2.bf16.msra.mxu0 0
        %2233 = vmatprep.subr.bf16.mxu0 0
        %2234 = vmatpush2.bf16.msra.mxu0 0
        %2235 = vmatprep.subr.bf16.mxu0 0
        %2236 = vmatpush2.bf16.msra.mxu0 0
        %2237 = vmatprep.mubr.bf16.mxu0 0
        %2238 = vmatmul.mubr.bf16.gmra.mxu0 %v1518
        %v2239 = vpop.f32.mrf.mxu0
        %v2240 = vadd.f32 0.0, %v2239
        %v2241 = vpop.f32.mrf.mxu0
        %v2242 = vpop.f32.mrf.mxu0
        %v2243 = vadd.f32 0.0, %v2242
        %v2244 = vpop.f32.mrf.mxu0
        %2245 = vmatprep.mubr.bf16.mxu0 0
        %2246 = vmatmul.mubr.bf16.gmra.mxu0 %v1521
        %v2247 = vpop.f32.mrf.mxu0
        %v2248 = vadd.f32 0.0, %v2247
        %v2249 = vpop.f32.mrf.mxu0
        %v2250 = vpop.f32.mrf.mxu0
        %v2251 = vadd.f32 0.0, %v2250
        %v2252 = vpop.f32.mrf.mxu0
        %2253 = vmatprep.mubr.bf16.mxu0 0
        %2254 = vmatmul.mubr.bf16.gmra.mxu0 %v1524
        %v2255 = vpop.f32.mrf.mxu0
        %v2256 = vadd.f32 0.0, %v2255
        %v2257 = vpop.f32.mrf.mxu0
        %v2258 = vpop.f32.mrf.mxu0
        %v2259 = vadd.f32 0.0, %v2258
        %v2260 = vpop.f32.mrf.mxu0
        %2261 = vmatprep.mubr.bf16.mxu0 0
        %2262 = vmatmul.mubr.bf16.gmra.mxu0 %v1527
        %v2263 = vpop.f32.mrf.mxu0
        %v2264 = vadd.f32 0.0, %v2263
        %v2265 = vpop.f32.mrf.mxu0
        %v2266 = vpop.f32.mrf.mxu0
        %v2267 = vadd.f32 0.0, %v2266
        %v2268 = vpop.f32.mrf.mxu0
        %2269 = vmatprep.mubr.bf16.mxu0 0
        %2270 = vmatmul.mubr.bf16.gmra.mxu0 %v1530
        %v2271 = vpop.f32.mrf.mxu0
        %v2272 = vadd.f32 0.0, %v2271
        %v2273 = vpop.f32.mrf.mxu0
        %v2274 = vpop.f32.mrf.mxu0
        %v2275 = vadd.f32 0.0, %v2274
        %v2276 = vpop.f32.mrf.mxu0
        %2277 = vmatprep.mubr.bf16.mxu0 0
        %2278 = vmatmul.mubr.bf16.gmra.mxu0 %v1533
        %v2279 = vpop.f32.mrf.mxu0
        %v2280 = vadd.f32 0.0, %v2279
        %v2281 = vpop.f32.mrf.mxu0
        %v2282 = vpop.f32.mrf.mxu0
        %v2283 = vadd.f32 0.0, %v2282
        %v2284 = vpop.f32.mrf.mxu0
        %2285 = vmatprep.mubr.bf16.mxu0 0
        %2286 = vmatmul.mubr.bf16.gmra.mxu0 %v1536
        %v2287 = vpop.f32.mrf.mxu0
        %v2288 = vadd.f32 0.0, %v2287
        %v2289 = vpop.f32.mrf.mxu0
        %v2290 = vpop.f32.mrf.mxu0
        %v2291 = vadd.f32 0.0, %v2290
        %v2292 = vpop.f32.mrf.mxu0
        %2293 = vmatprep.mubr.bf16.mxu0 0
        %2294 = vmatmul.mubr.bf16.gmra.mxu0 %v1539
        %v2295 = vpop.f32.mrf.mxu0
        %v2296 = vadd.f32 0.0, %v2295
        %v2297 = vpop.f32.mrf.mxu0
        %v2298 = vpop.f32.mrf.mxu0
        %v2299 = vadd.f32 0.0, %v2298
        %v2300 = vpop.f32.mrf.mxu0
        %2301 = vmatprep.mubr.bf16.mxu0 0
        %2302 = vmatmul.mubr.bf16.gmra.mxu0 %v1542
        %v2303 = vpop.f32.mrf.mxu0
        %v2304 = vadd.f32 0.0, %v2303
        %v2305 = vpop.f32.mrf.mxu0
        %v2306 = vpop.f32.mrf.mxu0
        %v2307 = vadd.f32 0.0, %v2306
        %v2308 = vpop.f32.mrf.mxu0
        %2309 = vmatprep.mubr.bf16.mxu0 0
        %2310 = vmatmul.mubr.bf16.gmra.mxu0 %v1545
        %v2311 = vpop.f32.mrf.mxu0
        %v2312 = vadd.f32 0.0, %v2311
        %v2313 = vpop.f32.mrf.mxu0
        %v2314 = vpop.f32.mrf.mxu0
        %v2315 = vadd.f32 0.0, %v2314
        %v2316 = vpop.f32.mrf.mxu0
        %2317 = vmatprep.mubr.bf16.mxu0 0
        %2318 = vmatmul.mubr.bf16.gmra.mxu0 %v1548
        %v2319 = vpop.f32.mrf.mxu0
        %v2320 = vadd.f32 0.0, %v2319
        %v2321 = vpop.f32.mrf.mxu0
        %v2322 = vpop.f32.mrf.mxu0
        %v2323 = vadd.f32 0.0, %v2322
        %v2324 = vpop.f32.mrf.mxu0
        %2325 = vmatprep.mubr.bf16.mxu0 0
        %2326 = vmatmul.mubr.bf16.gmra.mxu0 %v1551
        %v2327 = vpop.f32.mrf.mxu0
        %v2328 = vadd.f32 0.0, %v2327
        %v2329 = vpop.f32.mrf.mxu0
        %v2330 = vpop.f32.mrf.mxu0
        %v2331 = vadd.f32 0.0, %v2330
        %v2332 = vpop.f32.mrf.mxu0
        %2333 = vmatprep.mubr.bf16.mxu0 0
        %2334 = vmatmul.mubr.bf16.gmra.mxu0 %v1554
        %v2335 = vpop.f32.mrf.mxu0
        %v2336 = vadd.f32 0.0, %v2335
        %v2337 = vpop.f32.mrf.mxu0
        %v2338 = vpop.f32.mrf.mxu0
        %v2339 = vadd.f32 0.0, %v2338
        %v2340 = vpop.f32.mrf.mxu0
        %2341 = vmatprep.mubr.bf16.mxu0 0
        %2342 = vmatmul.mubr.bf16.gmra.mxu0 %v1557
        %v2343 = vpop.f32.mrf.mxu0
        %v2344 = vadd.f32 0.0, %v2343
        %v2345 = vpop.f32.mrf.mxu0
        %v2346 = vpop.f32.mrf.mxu0
        %v2347 = vadd.f32 0.0, %v2346
        %v2348 = vpop.f32.mrf.mxu0
        %2349 = vmatprep.mubr.bf16.mxu0 0
        %2350 = vmatmul.mubr.bf16.gmra.mxu0 %v1560
        %v2351 = vpop.f32.mrf.mxu0
        %v2352 = vadd.f32 0.0, %v2351
        %v2353 = vpop.f32.mrf.mxu0
        %v2354 = vpop.f32.mrf.mxu0
        %v2355 = vadd.f32 0.0, %v2354
        %v2356 = vpop.f32.mrf.mxu0
        %2357 = vmatprep.mubr.bf16.mxu0 0
        %2358 = vmatmul.mubr.bf16.gmra.mxu0 %v2200
        %v2359 = vpop.f32.mrf.mxu0
        %v2360 = vadd.f32 0.0, %v2359
        %v2361 = vpop.f32.mrf.mxu0
        %v2362 = vpop.f32.mrf.mxu0
        %v2363 = vadd.f32 0.0, %v2362
        %v2364 = vpop.f32.mrf.mxu0
        %2365 = vdwg.mxu0
        %v2366 = vadd.f32 %v2156, %v2240
        %v2367 = vadd.f32 %v2157, %v2243
        %v2368 = vadd.f32 %v2158, %v2248
        %v2369 = vadd.f32 %v2159, %v2251
        %v2370 = vadd.f32 %v2160, %v2256
        %v2371 = vadd.f32 %v2161, %v2259
        %v2372 = vadd.f32 %v2162, %v2264
        %v2373 = vadd.f32 %v2163, %v2267
        %v2374 = vadd.f32 %v2164, %v2272
        %v2375 = vadd.f32 %v2165, %v2275
        %v2376 = vadd.f32 %v2166, %v2280
        %v2377 = vadd.f32 %v2167, %v2283
        %v2378 = vadd.f32 %v2168, %v2288
        %v2379 = vadd.f32 %v2169, %v2291
        %v2380 = vadd.f32 %v2170, %v2296
        %v2381 = vadd.f32 %v2171, %v2299
        %v2382 = vadd.f32 %v2172, %v2304
        %v2383 = vadd.f32 %v2173, %v2307
        %v2384 = vadd.f32 %v2174, %v2312
        %v2385 = vadd.f32 %v2175, %v2315
        %v2386 = vadd.f32 %v2176, %v2320
        %v2387 = vadd.f32 %v2177, %v2323
        %v2388 = vadd.f32 %v2178, %v2328
        %v2389 = vadd.f32 %v2179, %v2331
        %v2390 = vadd.f32 %v2180, %v2336
        %v2391 = vadd.f32 %v2181, %v2339
        %v2392 = vadd.f32 %v2182, %v2344
        %v2393 = vadd.f32 %v2183, %v2347
        %v2394 = vadd.f32 %v2184, %v2352
        %v2395 = vadd.f32 %v2185, %v2355
        %v2396 = vadd.f32 %v2186, %v2360
        %v2397 = vadd.f32 %v2187, %v2363
        %v2400 = vunpack.c.l.b16 %v382
        %v2401 = vunpack.c.l.b16 %v383
        %v2402 = vpack.c.b16 %v2401, %v2400
        %v2404 = vsel %vm829, %v2402, 0
        %v2407 = vsel %vm878, %v391, 0
        %2409 = vmatprep.subr.bf16.mxu0 0
        %2410 = vmatpush1.bf16.msra.mxu0 0
        %2411 = vmatprep.subr.bf16.mxu0 0
        %2412 = vmatpush1.bf16.msra.mxu0 0
        %2413 = vmatprep.subr.bf16.mxu0 0
        %2414 = vmatpush1.bf16.msra.mxu0 0
        %2415 = vmatprep.subr.bf16.mxu0 0
        %2416 = vmatpush1.bf16.msra.mxu0 0
        %2417 = vmatprep.subr.bf16.mxu0 0
        %2418 = vmatpush1.bf16.msra.mxu0 0
        %2419 = vmatprep.subr.bf16.mxu0 0
        %2420 = vmatpush1.bf16.msra.mxu0 0
        %2421 = vmatprep.subr.bf16.mxu0 0
        %2422 = vmatpush1.bf16.msra.mxu0 0
        %2423 = vmatprep.subr.bf16.mxu0 0
        %2424 = vmatpush1.bf16.msra.mxu0 %v2407
        %2425 = vmatprep.subr.bf16.mxu0 0
        %2426 = vmatpush2.bf16.msra.mxu0 0
        %2427 = vmatprep.subr.bf16.mxu0 0
        %2428 = vmatpush2.bf16.msra.mxu0 0
        %2429 = vmatprep.subr.bf16.mxu0 0
        %2430 = vmatpush2.bf16.msra.mxu0 0
        %2431 = vmatprep.subr.bf16.mxu0 0
        %2432 = vmatpush2.bf16.msra.mxu0 0
        %2433 = vmatprep.subr.bf16.mxu0 0
        %2434 = vmatpush2.bf16.msra.mxu0 0
        %2435 = vmatprep.subr.bf16.mxu0 0
        %2436 = vmatpush2.bf16.msra.mxu0 0
        %2437 = vmatprep.subr.bf16.mxu0 0
        %2438 = vmatpush2.bf16.msra.mxu0 0
        %2439 = vmatprep.subr.bf16.mxu0 0
        %2440 = vmatpush2.bf16.msra.mxu0 0
        %2441 = vmatprep.mubr.bf16.mxu0 0
        %2442 = vmatmul.mubr.bf16.gmra.mxu0 %v1130
        %v2443 = vpop.f32.mrf.mxu0
        %v2444 = vadd.f32 0.0, %v2443
        %v2445 = vpop.f32.mrf.mxu0
        %v2446 = vpop.f32.mrf.mxu0
        %v2447 = vadd.f32 0.0, %v2446
        %v2448 = vpop.f32.mrf.mxu0
        %2449 = vmatprep.mubr.bf16.mxu0 0
        %2450 = vmatmul.mubr.bf16.gmra.mxu0 %v1133
        %v2451 = vpop.f32.mrf.mxu0
        %v2452 = vadd.f32 0.0, %v2451
        %v2453 = vpop.f32.mrf.mxu0
        %v2454 = vpop.f32.mrf.mxu0
        %v2455 = vadd.f32 0.0, %v2454
        %v2456 = vpop.f32.mrf.mxu0
        %2457 = vmatprep.mubr.bf16.mxu0 0
        %2458 = vmatmul.mubr.bf16.gmra.mxu0 %v1136
        %v2459 = vpop.f32.mrf.mxu0
        %v2460 = vadd.f32 0.0, %v2459
        %v2461 = vpop.f32.mrf.mxu0
        %v2462 = vpop.f32.mrf.mxu0
        %v2463 = vadd.f32 0.0, %v2462
        %v2464 = vpop.f32.mrf.mxu0
        %2465 = vmatprep.mubr.bf16.mxu0 0
        %2466 = vmatmul.mubr.bf16.gmra.mxu0 %v1139
        %v2467 = vpop.f32.mrf.mxu0
        %v2468 = vadd.f32 0.0, %v2467
        %v2469 = vpop.f32.mrf.mxu0
        %v2470 = vpop.f32.mrf.mxu0
        %v2471 = vadd.f32 0.0, %v2470
        %v2472 = vpop.f32.mrf.mxu0
        %2473 = vmatprep.mubr.bf16.mxu0 0
        %2474 = vmatmul.mubr.bf16.gmra.mxu0 %v1142
        %v2475 = vpop.f32.mrf.mxu0
        %v2476 = vadd.f32 0.0, %v2475
        %v2477 = vpop.f32.mrf.mxu0
        %v2478 = vpop.f32.mrf.mxu0
        %v2479 = vadd.f32 0.0, %v2478
        %v2480 = vpop.f32.mrf.mxu0
        %2481 = vmatprep.mubr.bf16.mxu0 0
        %2482 = vmatmul.mubr.bf16.gmra.mxu0 %v1145
        %v2483 = vpop.f32.mrf.mxu0
        %v2484 = vadd.f32 0.0, %v2483
        %v2485 = vpop.f32.mrf.mxu0
        %v2486 = vpop.f32.mrf.mxu0
        %v2487 = vadd.f32 0.0, %v2486
        %v2488 = vpop.f32.mrf.mxu0
        %2489 = vmatprep.mubr.bf16.mxu0 0
        %2490 = vmatmul.mubr.bf16.gmra.mxu0 %v1148
        %v2491 = vpop.f32.mrf.mxu0
        %v2492 = vadd.f32 0.0, %v2491
        %v2493 = vpop.f32.mrf.mxu0
        %v2494 = vpop.f32.mrf.mxu0
        %v2495 = vadd.f32 0.0, %v2494
        %v2496 = vpop.f32.mrf.mxu0
        %2497 = vmatprep.mubr.bf16.mxu0 0
        %2498 = vmatmul.mubr.bf16.gmra.mxu0 %v1151
        %v2499 = vpop.f32.mrf.mxu0
        %v2500 = vadd.f32 0.0, %v2499
        %v2501 = vpop.f32.mrf.mxu0
        %v2502 = vpop.f32.mrf.mxu0
        %v2503 = vadd.f32 0.0, %v2502
        %v2504 = vpop.f32.mrf.mxu0
        %2505 = vmatprep.mubr.bf16.mxu0 0
        %2506 = vmatmul.mubr.bf16.gmra.mxu0 %v1154
        %v2507 = vpop.f32.mrf.mxu0
        %v2508 = vadd.f32 0.0, %v2507
        %v2509 = vpop.f32.mrf.mxu0
        %v2510 = vpop.f32.mrf.mxu0
        %v2511 = vadd.f32 0.0, %v2510
        %v2512 = vpop.f32.mrf.mxu0
        %2513 = vmatprep.mubr.bf16.mxu0 0
        %2514 = vmatmul.mubr.bf16.gmra.mxu0 %v1157
        %v2515 = vpop.f32.mrf.mxu0
        %v2516 = vadd.f32 0.0, %v2515
        %v2517 = vpop.f32.mrf.mxu0
        %v2518 = vpop.f32.mrf.mxu0
        %v2519 = vadd.f32 0.0, %v2518
        %v2520 = vpop.f32.mrf.mxu0
        %2521 = vmatprep.mubr.bf16.mxu0 0
        %2522 = vmatmul.mubr.bf16.gmra.mxu0 %v1160
        %v2523 = vpop.f32.mrf.mxu0
        %v2524 = vadd.f32 0.0, %v2523
        %v2525 = vpop.f32.mrf.mxu0
        %v2526 = vpop.f32.mrf.mxu0
        %v2527 = vadd.f32 0.0, %v2526
        %v2528 = vpop.f32.mrf.mxu0
        %2529 = vmatprep.mubr.bf16.mxu0 0
        %2530 = vmatmul.mubr.bf16.gmra.mxu0 %v1163
        %v2531 = vpop.f32.mrf.mxu0
        %v2532 = vadd.f32 0.0, %v2531
        %v2533 = vpop.f32.mrf.mxu0
        %v2534 = vpop.f32.mrf.mxu0
        %v2535 = vadd.f32 0.0, %v2534
        %v2536 = vpop.f32.mrf.mxu0
        %2537 = vmatprep.mubr.bf16.mxu0 0
        %2538 = vmatmul.mubr.bf16.gmra.mxu0 %v1166
        %v2539 = vpop.f32.mrf.mxu0
        %v2540 = vadd.f32 0.0, %v2539
        %v2541 = vpop.f32.mrf.mxu0
        %v2542 = vpop.f32.mrf.mxu0
        %v2543 = vadd.f32 0.0, %v2542
        %v2544 = vpop.f32.mrf.mxu0
        %2545 = vmatprep.mubr.bf16.mxu0 0
        %2546 = vmatmul.mubr.bf16.gmra.mxu0 %v1169
        %v2547 = vpop.f32.mrf.mxu0
        %v2548 = vadd.f32 0.0, %v2547
        %v2549 = vpop.f32.mrf.mxu0
        %v2550 = vpop.f32.mrf.mxu0
        %v2551 = vadd.f32 0.0, %v2550
        %v2552 = vpop.f32.mrf.mxu0
        %2553 = vmatprep.mubr.bf16.mxu0 0
        %2554 = vmatmul.mubr.bf16.gmra.mxu0 %v1764
        %v2555 = vpop.f32.mrf.mxu0
        %v2556 = vadd.f32 0.0, %v2555
        %v2557 = vpop.f32.mrf.mxu0
        %v2558 = vpop.f32.mrf.mxu0
        %v2559 = vadd.f32 0.0, %v2558
        %v2560 = vpop.f32.mrf.mxu0
        %2561 = vmatprep.mubr.bf16.mxu0 0
        %2562 = vmatmul.mubr.bf16.gmra.mxu0 %v2404
        %v2563 = vpop.f32.mrf.mxu0
        %v2564 = vadd.f32 0.0, %v2563
        %v2565 = vpop.f32.mrf.mxu0
        %v2566 = vpop.f32.mrf.mxu0
        %v2567 = vadd.f32 0.0, %v2566
        %v2568 = vpop.f32.mrf.mxu0
        %2569 = vdwg.mxu0
        %v2570 = vadd.f32 %v2366, %v2444
        %v2571 = vadd.f32 %v2367, %v2447
        %v2572 = vadd.f32 %v2368, %v2452
        %v2573 = vadd.f32 %v2369, %v2455
        %v2574 = vadd.f32 %v2370, %v2460
        %v2575 = vadd.f32 %v2371, %v2463
        %v2576 = vadd.f32 %v2372, %v2468
        %v2577 = vadd.f32 %v2373, %v2471
        %v2578 = vadd.f32 %v2374, %v2476
        %v2579 = vadd.f32 %v2375, %v2479
        %v2580 = vadd.f32 %v2376, %v2484
        %v2581 = vadd.f32 %v2377, %v2487
        %v2582 = vadd.f32 %v2378, %v2492
        %v2583 = vadd.f32 %v2379, %v2495
        %v2584 = vadd.f32 %v2380, %v2500
        %v2585 = vadd.f32 %v2381, %v2503
        %v2586 = vadd.f32 %v2382, %v2508
        %v2587 = vadd.f32 %v2383, %v2511
        %v2588 = vadd.f32 %v2384, %v2516
        %v2589 = vadd.f32 %v2385, %v2519
        %v2590 = vadd.f32 %v2386, %v2524
        %v2591 = vadd.f32 %v2387, %v2527
        %v2592 = vadd.f32 %v2388, %v2532
        %v2593 = vadd.f32 %v2389, %v2535
        %v2594 = vadd.f32 %v2390, %v2540
        %v2595 = vadd.f32 %v2391, %v2543
        %v2596 = vadd.f32 %v2392, %v2548
        %v2597 = vadd.f32 %v2393, %v2551
        %v2598 = vadd.f32 %v2394, %v2556
        %v2599 = vadd.f32 %v2395, %v2559
        %v2600 = vadd.f32 %v2396, %v2564
        %v2601 = vadd.f32 %v2397, %v2567
        %v2603 = vshrl.u32 %v382, 16
        %v2605 = vrot.slane %v2603, 4
        %v2606 = vshll.u32 %v382, 16
        %v2608 = vrot.slane %v2606, 5
        %v2609 = vor.u32 %v2605, %v2608
        %v2610 = vrot.slane %v2609, 4
        %v2612 = vshll.u32 %v383, 16
        %v2614 = vrot.slane %v2612, 5
        %v2615 = vsel %vm396, %v2610, %v2614
        %v2616 = vshrl.u32 %v383, 16
        %v2618 = vrot.slane %v2616, 4
        %v2619 = vor.u32 %v2618, %v2614
        %v2620 = vrot.slane %v2619, 4
        %v2622 = vshll.u32 %v384, 16
        %v2624 = vrot.slane %v2622, 5
        %v2625 = vsel %vm396, %v2620, %v2624
        %v2626 = vunpack.c.l.b16 %v2615
        %v2627 = vunpack.c.l.b16 %v2625
        %v2628 = vpack.c.b16 %v2627, %v2626
        %v2630 = vsel %vm829, %v2628, 0
        %v2633 = vsel %vm878, %v392, 0
        %2635 = vmatprep.subr.bf16.mxu0 0
        %2636 = vmatpush1.bf16.msra.mxu0 0
        %2637 = vmatprep.subr.bf16.mxu0 0
        %2638 = vmatpush1.bf16.msra.mxu0 0
        %2639 = vmatprep.subr.bf16.mxu0 0
        %2640 = vmatpush1.bf16.msra.mxu0 0
        %2641 = vmatprep.subr.bf16.mxu0 0
        %2642 = vmatpush1.bf16.msra.mxu0 0
        %2643 = vmatprep.subr.bf16.mxu0 0
        %2644 = vmatpush1.bf16.msra.mxu0 0
        %2645 = vmatprep.subr.bf16.mxu0 0
        %2646 = vmatpush1.bf16.msra.mxu0 0
        %2647 = vmatprep.subr.bf16.mxu0 0
        %2648 = vmatpush1.bf16.msra.mxu0 0
        %2649 = vmatprep.subr.bf16.mxu0 0
        %2650 = vmatpush1.bf16.msra.mxu0 %v2633
        %2651 = vmatprep.subr.bf16.mxu0 0
        %2652 = vmatpush2.bf16.msra.mxu0 0
        %2653 = vmatprep.subr.bf16.mxu0 0
        %2654 = vmatpush2.bf16.msra.mxu0 0
        %2655 = vmatprep.subr.bf16.mxu0 0
        %2656 = vmatpush2.bf16.msra.mxu0 0
        %2657 = vmatprep.subr.bf16.mxu0 0
        %2658 = vmatpush2.bf16.msra.mxu0 0
        %2659 = vmatprep.subr.bf16.mxu0 0
        %2660 = vmatpush2.bf16.msra.mxu0 0
        %2661 = vmatprep.subr.bf16.mxu0 0
        %2662 = vmatpush2.bf16.msra.mxu0 0
        %2663 = vmatprep.subr.bf16.mxu0 0
        %2664 = vmatpush2.bf16.msra.mxu0 0
        %2665 = vmatprep.subr.bf16.mxu0 0
        %2666 = vmatpush2.bf16.msra.mxu0 0
        %2667 = vmatprep.mubr.bf16.mxu0 0
        %2668 = vmatmul.mubr.bf16.gmra.mxu0 %v837
        %v2669 = vpop.f32.mrf.mxu0
        %v2670 = vadd.f32 0.0, %v2669
        %v2671 = vpop.f32.mrf.mxu0
        %v2672 = vpop.f32.mrf.mxu0
        %v2673 = vadd.f32 0.0, %v2672
        %v2674 = vpop.f32.mrf.mxu0
        %2675 = vmatprep.mubr.bf16.mxu0 0
        %2676 = vmatmul.mubr.bf16.gmra.mxu0 %v840
        %v2677 = vpop.f32.mrf.mxu0
        %v2678 = vadd.f32 0.0, %v2677
        %v2679 = vpop.f32.mrf.mxu0
        %v2680 = vpop.f32.mrf.mxu0
        %v2681 = vadd.f32 0.0, %v2680
        %v2682 = vpop.f32.mrf.mxu0
        %2683 = vmatprep.mubr.bf16.mxu0 0
        %2684 = vmatmul.mubr.bf16.gmra.mxu0 %v843
        %v2685 = vpop.f32.mrf.mxu0
        %v2686 = vadd.f32 0.0, %v2685
        %v2687 = vpop.f32.mrf.mxu0
        %v2688 = vpop.f32.mrf.mxu0
        %v2689 = vadd.f32 0.0, %v2688
        %v2690 = vpop.f32.mrf.mxu0
        %2691 = vmatprep.mubr.bf16.mxu0 0
        %2692 = vmatmul.mubr.bf16.gmra.mxu0 %v846
        %v2693 = vpop.f32.mrf.mxu0
        %v2694 = vadd.f32 0.0, %v2693
        %v2695 = vpop.f32.mrf.mxu0
        %v2696 = vpop.f32.mrf.mxu0
        %v2697 = vadd.f32 0.0, %v2696
        %v2698 = vpop.f32.mrf.mxu0
        %2699 = vmatprep.mubr.bf16.mxu0 0
        %2700 = vmatmul.mubr.bf16.gmra.mxu0 %v849
        %v2701 = vpop.f32.mrf.mxu0
        %v2702 = vadd.f32 0.0, %v2701
        %v2703 = vpop.f32.mrf.mxu0
        %v2704 = vpop.f32.mrf.mxu0
        %v2705 = vadd.f32 0.0, %v2704
        %v2706 = vpop.f32.mrf.mxu0
        %2707 = vmatprep.mubr.bf16.mxu0 0
        %2708 = vmatmul.mubr.bf16.gmra.mxu0 %v852
        %v2709 = vpop.f32.mrf.mxu0
        %v2710 = vadd.f32 0.0, %v2709
        %v2711 = vpop.f32.mrf.mxu0
        %v2712 = vpop.f32.mrf.mxu0
        %v2713 = vadd.f32 0.0, %v2712
        %v2714 = vpop.f32.mrf.mxu0
        %2715 = vmatprep.mubr.bf16.mxu0 0
        %2716 = vmatmul.mubr.bf16.gmra.mxu0 %v855
        %v2717 = vpop.f32.mrf.mxu0
        %v2718 = vadd.f32 0.0, %v2717
        %v2719 = vpop.f32.mrf.mxu0
        %v2720 = vpop.f32.mrf.mxu0
        %v2721 = vadd.f32 0.0, %v2720
        %v2722 = vpop.f32.mrf.mxu0
        %2723 = vmatprep.mubr.bf16.mxu0 0
        %2724 = vmatmul.mubr.bf16.gmra.mxu0 %v858
        %v2725 = vpop.f32.mrf.mxu0
        %v2726 = vadd.f32 0.0, %v2725
        %v2727 = vpop.f32.mrf.mxu0
        %v2728 = vpop.f32.mrf.mxu0
        %v2729 = vadd.f32 0.0, %v2728
        %v2730 = vpop.f32.mrf.mxu0
        %2731 = vmatprep.mubr.bf16.mxu0 0
        %2732 = vmatmul.mubr.bf16.gmra.mxu0 %v861
        %v2733 = vpop.f32.mrf.mxu0
        %v2734 = vadd.f32 0.0, %v2733
        %v2735 = vpop.f32.mrf.mxu0
        %v2736 = vpop.f32.mrf.mxu0
        %v2737 = vadd.f32 0.0, %v2736
        %v2738 = vpop.f32.mrf.mxu0
        %2739 = vmatprep.mubr.bf16.mxu0 0
        %2740 = vmatmul.mubr.bf16.gmra.mxu0 %v864
        %v2741 = vpop.f32.mrf.mxu0
        %v2742 = vadd.f32 0.0, %v2741
        %v2743 = vpop.f32.mrf.mxu0
        %v2744 = vpop.f32.mrf.mxu0
        %v2745 = vadd.f32 0.0, %v2744
        %v2746 = vpop.f32.mrf.mxu0
        %2747 = vmatprep.mubr.bf16.mxu0 0
        %2748 = vmatmul.mubr.bf16.gmra.mxu0 %v867
        %v2749 = vpop.f32.mrf.mxu0
        %v2750 = vadd.f32 0.0, %v2749
        %v2751 = vpop.f32.mrf.mxu0
        %v2752 = vpop.f32.mrf.mxu0
        %v2753 = vadd.f32 0.0, %v2752
        %v2754 = vpop.f32.mrf.mxu0
        %2755 = vmatprep.mubr.bf16.mxu0 0
        %2756 = vmatmul.mubr.bf16.gmra.mxu0 %v870
        %v2757 = vpop.f32.mrf.mxu0
        %v2758 = vadd.f32 0.0, %v2757
        %v2759 = vpop.f32.mrf.mxu0
        %v2760 = vpop.f32.mrf.mxu0
        %v2761 = vadd.f32 0.0, %v2760
        %v2762 = vpop.f32.mrf.mxu0
        %2763 = vmatprep.mubr.bf16.mxu0 0
        %2764 = vmatmul.mubr.bf16.gmra.mxu0 %v873
        %v2765 = vpop.f32.mrf.mxu0
        %v2766 = vadd.f32 0.0, %v2765
        %v2767 = vpop.f32.mrf.mxu0
        %v2768 = vpop.f32.mrf.mxu0
        %v2769 = vadd.f32 0.0, %v2768
        %v2770 = vpop.f32.mrf.mxu0
        %2771 = vmatprep.mubr.bf16.mxu0 0
        %2772 = vmatmul.mubr.bf16.gmra.mxu0 %v876
        %v2773 = vpop.f32.mrf.mxu0
        %v2774 = vadd.f32 0.0, %v2773
        %v2775 = vpop.f32.mrf.mxu0
        %v2776 = vpop.f32.mrf.mxu0
        %v2777 = vadd.f32 0.0, %v2776
        %v2778 = vpop.f32.mrf.mxu0
        %2779 = vmatprep.mubr.bf16.mxu0 0
        %2780 = vmatmul.mubr.bf16.gmra.mxu0 %v1990
        %v2781 = vpop.f32.mrf.mxu0
        %v2782 = vadd.f32 0.0, %v2781
        %v2783 = vpop.f32.mrf.mxu0
        %v2784 = vpop.f32.mrf.mxu0
        %v2785 = vadd.f32 0.0, %v2784
        %v2786 = vpop.f32.mrf.mxu0
        %2787 = vmatprep.mubr.bf16.mxu0 0
        %2788 = vmatmul.mubr.bf16.gmra.mxu0 %v2630
        %v2789 = vpop.f32.mrf.mxu0
        %v2790 = vadd.f32 0.0, %v2789
        %v2791 = vpop.f32.mrf.mxu0
        %v2792 = vpop.f32.mrf.mxu0
        %v2793 = vadd.f32 0.0, %v2792
        %v2794 = vpop.f32.mrf.mxu0
        %2795 = vdwg.mxu0
        %v2796 = vadd.f32 %v2570, %v2670
        %v2797 = vadd.f32 %v2571, %v2673
        %v2798 = vadd.f32 %v2572, %v2678
        %v2799 = vadd.f32 %v2573, %v2681
        %v2800 = vadd.f32 %v2574, %v2686
        %v2801 = vadd.f32 %v2575, %v2689
        %v2802 = vadd.f32 %v2576, %v2694
        %v2803 = vadd.f32 %v2577, %v2697
        %v2804 = vadd.f32 %v2578, %v2702
        %v2805 = vadd.f32 %v2579, %v2705
        %v2806 = vadd.f32 %v2580, %v2710
        %v2807 = vadd.f32 %v2581, %v2713
        %v2808 = vadd.f32 %v2582, %v2718
        %v2809 = vadd.f32 %v2583, %v2721
        %v2810 = vadd.f32 %v2584, %v2726
        %v2811 = vadd.f32 %v2585, %v2729
        %v2812 = vadd.f32 %v2586, %v2734
        %v2813 = vadd.f32 %v2587, %v2737
        %v2814 = vadd.f32 %v2588, %v2742
        %v2815 = vadd.f32 %v2589, %v2745
        %v2816 = vadd.f32 %v2590, %v2750
        %v2817 = vadd.f32 %v2591, %v2753
        %v2818 = vadd.f32 %v2592, %v2758
        %v2819 = vadd.f32 %v2593, %v2761
        %v2820 = vadd.f32 %v2594, %v2766
        %v2821 = vadd.f32 %v2595, %v2769
        %v2822 = vadd.f32 %v2596, %v2774
        %v2823 = vadd.f32 %v2597, %v2777
        %v2824 = vadd.f32 %v2598, %v2782
        %v2825 = vadd.f32 %v2599, %v2785
        %v2826 = vadd.f32 %v2600, %v2790
        %v2827 = vadd.f32 %v2601, %v2793
        %v2829 = vrot.slane %v382, 5
        %v2830 = vrot.slane %v2829, 4
        %v2831 = vrot.slane %v383, 5
        %v2832 = vsel %vm1353, %v2830, %v2831
        %v2833 = vrot.slane %v2831, 4
        %v2834 = vrot.slane %v384, 5
        %v2835 = vsel %vm1353, %v2833, %v2834
        %v2836 = vunpack.c.l.b16 %v2832
        %v2837 = vunpack.c.l.b16 %v2835
        %v2838 = vpack.c.b16 %v2837, %v2836
        %v2840 = vsel %vm829, %v2838, 0
        %v2843 = vsel %vm878, %v393, 0
        %2845 = vmatprep.subr.bf16.mxu0 0
        %2846 = vmatpush1.bf16.msra.mxu0 0
        %2847 = vmatprep.subr.bf16.mxu0 0
        %2848 = vmatpush1.bf16.msra.mxu0 0
        %2849 = vmatprep.subr.bf16.mxu0 0
        %2850 = vmatpush1.bf16.msra.mxu0 0
        %2851 = vmatprep.subr.bf16.mxu0 0
        %2852 = vmatpush1.bf16.msra.mxu0 0
        %2853 = vmatprep.subr.bf16.mxu0 0
        %2854 = vmatpush1.bf16.msra.mxu0 0
        %2855 = vmatprep.subr.bf16.mxu0 0
        %2856 = vmatpush1.bf16.msra.mxu0 0
        %2857 = vmatprep.subr.bf16.mxu0 0
        %2858 = vmatpush1.bf16.msra.mxu0 0
        %2859 = vmatprep.subr.bf16.mxu0 0
        %2860 = vmatpush1.bf16.msra.mxu0 %v2843
        %2861 = vmatprep.subr.bf16.mxu0 0
        %2862 = vmatpush2.bf16.msra.mxu0 0
        %2863 = vmatprep.subr.bf16.mxu0 0
        %2864 = vmatpush2.bf16.msra.mxu0 0
        %2865 = vmatprep.subr.bf16.mxu0 0
        %2866 = vmatpush2.bf16.msra.mxu0 0
        %2867 = vmatprep.subr.bf16.mxu0 0
        %2868 = vmatpush2.bf16.msra.mxu0 0
        %2869 = vmatprep.subr.bf16.mxu0 0
        %2870 = vmatpush2.bf16.msra.mxu0 0
        %2871 = vmatprep.subr.bf16.mxu0 0
        %2872 = vmatpush2.bf16.msra.mxu0 0
        %2873 = vmatprep.subr.bf16.mxu0 0
        %2874 = vmatpush2.bf16.msra.mxu0 0
        %2875 = vmatprep.subr.bf16.mxu0 0
        %2876 = vmatpush2.bf16.msra.mxu0 0
        %2877 = vmatprep.mubr.bf16.mxu0 0
        %2878 = vmatmul.mubr.bf16.gmra.mxu0 %v1521
        %v2879 = vpop.f32.mrf.mxu0
        %v2880 = vadd.f32 0.0, %v2879
        %v2881 = vpop.f32.mrf.mxu0
        %v2882 = vpop.f32.mrf.mxu0
        %v2883 = vadd.f32 0.0, %v2882
        %v2884 = vpop.f32.mrf.mxu0
        %2885 = vmatprep.mubr.bf16.mxu0 0
        %2886 = vmatmul.mubr.bf16.gmra.mxu0 %v1524
        %v2887 = vpop.f32.mrf.mxu0
        %v2888 = vadd.f32 0.0, %v2887
        %v2889 = vpop.f32.mrf.mxu0
        %v2890 = vpop.f32.mrf.mxu0
        %v2891 = vadd.f32 0.0, %v2890
        %v2892 = vpop.f32.mrf.mxu0
        %2893 = vmatprep.mubr.bf16.mxu0 0
        %2894 = vmatmul.mubr.bf16.gmra.mxu0 %v1527
        %v2895 = vpop.f32.mrf.mxu0
        %v2896 = vadd.f32 0.0, %v2895
        %v2897 = vpop.f32.mrf.mxu0
        %v2898 = vpop.f32.mrf.mxu0
        %v2899 = vadd.f32 0.0, %v2898
        %v2900 = vpop.f32.mrf.mxu0
        %2901 = vmatprep.mubr.bf16.mxu0 0
        %2902 = vmatmul.mubr.bf16.gmra.mxu0 %v1530
        %v2903 = vpop.f32.mrf.mxu0
        %v2904 = vadd.f32 0.0, %v2903
        %v2905 = vpop.f32.mrf.mxu0
        %v2906 = vpop.f32.mrf.mxu0
        %v2907 = vadd.f32 0.0, %v2906
        %v2908 = vpop.f32.mrf.mxu0
        %2909 = vmatprep.mubr.bf16.mxu0 0
        %2910 = vmatmul.mubr.bf16.gmra.mxu0 %v1533
        %v2911 = vpop.f32.mrf.mxu0
        %v2912 = vadd.f32 0.0, %v2911
        %v2913 = vpop.f32.mrf.mxu0
        %v2914 = vpop.f32.mrf.mxu0
        %v2915 = vadd.f32 0.0, %v2914
        %v2916 = vpop.f32.mrf.mxu0
        %2917 = vmatprep.mubr.bf16.mxu0 0
        %2918 = vmatmul.mubr.bf16.gmra.mxu0 %v1536
        %v2919 = vpop.f32.mrf.mxu0
        %v2920 = vadd.f32 0.0, %v2919
        %v2921 = vpop.f32.mrf.mxu0
        %v2922 = vpop.f32.mrf.mxu0
        %v2923 = vadd.f32 0.0, %v2922
        %v2924 = vpop.f32.mrf.mxu0
        %2925 = vmatprep.mubr.bf16.mxu0 0
        %2926 = vmatmul.mubr.bf16.gmra.mxu0 %v1539
        %v2927 = vpop.f32.mrf.mxu0
        %v2928 = vadd.f32 0.0, %v2927
        %v2929 = vpop.f32.mrf.mxu0
        %v2930 = vpop.f32.mrf.mxu0
        %v2931 = vadd.f32 0.0, %v2930
        %v2932 = vpop.f32.mrf.mxu0
        %2933 = vmatprep.mubr.bf16.mxu0 0
        %2934 = vmatmul.mubr.bf16.gmra.mxu0 %v1542
        %v2935 = vpop.f32.mrf.mxu0
        %v2936 = vadd.f32 0.0, %v2935
        %v2937 = vpop.f32.mrf.mxu0
        %v2938 = vpop.f32.mrf.mxu0
        %v2939 = vadd.f32 0.0, %v2938
        %v2940 = vpop.f32.mrf.mxu0
        %2941 = vmatprep.mubr.bf16.mxu0 0
        %2942 = vmatmul.mubr.bf16.gmra.mxu0 %v1545
        %v2943 = vpop.f32.mrf.mxu0
        %v2944 = vadd.f32 0.0, %v2943
        %v2945 = vpop.f32.mrf.mxu0
        %v2946 = vpop.f32.mrf.mxu0
        %v2947 = vadd.f32 0.0, %v2946
        %v2948 = vpop.f32.mrf.mxu0
        %2949 = vmatprep.mubr.bf16.mxu0 0
        %2950 = vmatmul.mubr.bf16.gmra.mxu0 %v1548
        %v2951 = vpop.f32.mrf.mxu0
        %v2952 = vadd.f32 0.0, %v2951
        %v2953 = vpop.f32.mrf.mxu0
        %v2954 = vpop.f32.mrf.mxu0
        %v2955 = vadd.f32 0.0, %v2954
        %v2956 = vpop.f32.mrf.mxu0
        %2957 = vmatprep.mubr.bf16.mxu0 0
        %2958 = vmatmul.mubr.bf16.gmra.mxu0 %v1551
        %v2959 = vpop.f32.mrf.mxu0
        %v2960 = vadd.f32 0.0, %v2959
        %v2961 = vpop.f32.mrf.mxu0
        %v2962 = vpop.f32.mrf.mxu0
        %v2963 = vadd.f32 0.0, %v2962
        %v2964 = vpop.f32.mrf.mxu0
        %2965 = vmatprep.mubr.bf16.mxu0 0
        %2966 = vmatmul.mubr.bf16.gmra.mxu0 %v1554
        %v2967 = vpop.f32.mrf.mxu0
        %v2968 = vadd.f32 0.0, %v2967
        %v2969 = vpop.f32.mrf.mxu0
        %v2970 = vpop.f32.mrf.mxu0
        %v2971 = vadd.f32 0.0, %v2970
        %v2972 = vpop.f32.mrf.mxu0
        %2973 = vmatprep.mubr.bf16.mxu0 0
        %2974 = vmatmul.mubr.bf16.gmra.mxu0 %v1557
        %v2975 = vpop.f32.mrf.mxu0
        %v2976 = vadd.f32 0.0, %v2975
        %v2977 = vpop.f32.mrf.mxu0
        %v2978 = vpop.f32.mrf.mxu0
        %v2979 = vadd.f32 0.0, %v2978
        %v2980 = vpop.f32.mrf.mxu0
        %2981 = vmatprep.mubr.bf16.mxu0 0
        %2982 = vmatmul.mubr.bf16.gmra.mxu0 %v1560
        %v2983 = vpop.f32.mrf.mxu0
        %v2984 = vadd.f32 0.0, %v2983
        %v2985 = vpop.f32.mrf.mxu0
        %v2986 = vpop.f32.mrf.mxu0
        %v2987 = vadd.f32 0.0, %v2986
        %v2988 = vpop.f32.mrf.mxu0
        %2989 = vmatprep.mubr.bf16.mxu0 0
        %2990 = vmatmul.mubr.bf16.gmra.mxu0 %v2200
        %v2991 = vpop.f32.mrf.mxu0
        %v2992 = vadd.f32 0.0, %v2991
        %v2993 = vpop.f32.mrf.mxu0
        %v2994 = vpop.f32.mrf.mxu0
        %v2995 = vadd.f32 0.0, %v2994
        %v2996 = vpop.f32.mrf.mxu0
        %2997 = vmatprep.mubr.bf16.mxu0 0
        %2998 = vmatmul.mubr.bf16.gmra.mxu0 %v2840
        %v2999 = vpop.f32.mrf.mxu0
        %v3000 = vadd.f32 0.0, %v2999
        %v3001 = vpop.f32.mrf.mxu0
        %v3002 = vpop.f32.mrf.mxu0
        %v3003 = vadd.f32 0.0, %v3002
        %v3004 = vpop.f32.mrf.mxu0
        %3005 = vdwg.mxu0
        %v3006 = vadd.f32 %v2796, %v2880
        %v3007 = vadd.f32 %v2797, %v2883
        %v3008 = vadd.f32 %v2798, %v2888
        %v3009 = vadd.f32 %v2799, %v2891
        %v3010 = vadd.f32 %v2800, %v2896
        %v3011 = vadd.f32 %v2801, %v2899
        %v3012 = vadd.f32 %v2802, %v2904
        %v3013 = vadd.f32 %v2803, %v2907
        %v3014 = vadd.f32 %v2804, %v2912
        %v3015 = vadd.f32 %v2805, %v2915
        %v3016 = vadd.f32 %v2806, %v2920
        %v3017 = vadd.f32 %v2807, %v2923
        %v3018 = vadd.f32 %v2808, %v2928
        %v3019 = vadd.f32 %v2809, %v2931
        %v3020 = vadd.f32 %v2810, %v2936
        %v3021 = vadd.f32 %v2811, %v2939
        %v3022 = vadd.f32 %v2812, %v2944
        %v3023 = vadd.f32 %v2813, %v2947
        %v3024 = vadd.f32 %v2814, %v2952
        %v3025 = vadd.f32 %v2815, %v2955
        %v3026 = vadd.f32 %v2816, %v2960
        %v3027 = vadd.f32 %v2817, %v2963
        %v3028 = vadd.f32 %v2818, %v2968
        %v3029 = vadd.f32 %v2819, %v2971
        %v3030 = vadd.f32 %v2820, %v2976
        %v3031 = vadd.f32 %v2821, %v2979
        %v3032 = vadd.f32 %v2822, %v2984
        %v3033 = vadd.f32 %v2823, %v2987
        %v3034 = vadd.f32 %v2824, %v2992
        %v3035 = vadd.f32 %v2825, %v2995
        %v3036 = vadd.f32 %v2826, %v3000
        %v3037 = vadd.f32 %v2827, %v3003
        %v3038 = vld [vmem:[%s2] sm:$0x1]
        %v3040 = vlaneseq
        %v3041 = vshrl.u32 %v3040, 7
        %v3042 = vsub.s32 0, %v3041
        %v3043 = vrot.slane %v3038, %v3042
        %v3045 = vadd.f32 %v3006, %v3043
        %v3046 = vadd.f32 %v3007, %v3043
        %v3047 = vadd.f32 %v3008, %v3043
        %v3048 = vadd.f32 %v3009, %v3043
        %v3049 = vadd.f32 %v3010, %v3043
        %v3050 = vadd.f32 %v3011, %v3043
        %v3051 = vadd.f32 %v3012, %v3043
        %v3052 = vadd.f32 %v3013, %v3043
        %v3053 = vadd.f32 %v3014, %v3043
        %v3054 = vadd.f32 %v3015, %v3043
        %v3055 = vadd.f32 %v3016, %v3043
        %v3056 = vadd.f32 %v3017, %v3043
        %v3057 = vadd.f32 %v3018, %v3043
        %v3058 = vadd.f32 %v3019, %v3043
        %v3059 = vadd.f32 %v3020, %v3043
        %v3060 = vadd.f32 %v3021, %v3043
        %v3061 = vadd.f32 %v3022, %v3043
        %v3062 = vadd.f32 %v3023, %v3043
        %v3063 = vadd.f32 %v3024, %v3043
        %v3064 = vadd.f32 %v3025, %v3043
        %v3065 = vadd.f32 %v3026, %v3043
        %v3066 = vadd.f32 %v3027, %v3043
        %v3067 = vadd.f32 %v3028, %v3043
        %v3068 = vadd.f32 %v3029, %v3043
        %v3069 = vadd.f32 %v3030, %v3043
        %v3070 = vadd.f32 %v3031, %v3043
        %v3071 = vadd.f32 %v3032, %v3043
        %v3072 = vadd.f32 %v3033, %v3043
        %v3073 = vadd.f32 %v3034, %v3043
        %v3074 = vadd.f32 %v3035, %v3043
        %v3075 = vadd.f32 %v3036, %v3043
        %v3076 = vadd.f32 %v3037, %v3043
        %v3077 = vmax.f32 %v3045, 0.0
        %v3078 = vmax.f32 %v3046, 0.0
        %v3079 = vmax.f32 %v3047, 0.0
        %v3080 = vmax.f32 %v3048, 0.0
        %v3081 = vmax.f32 %v3049, 0.0
        %v3082 = vmax.f32 %v3050, 0.0
        %v3083 = vmax.f32 %v3051, 0.0
        %v3084 = vmax.f32 %v3052, 0.0
        %v3085 = vmax.f32 %v3053, 0.0
        %v3086 = vmax.f32 %v3054, 0.0
        %v3087 = vmax.f32 %v3055, 0.0
        %v3088 = vmax.f32 %v3056, 0.0
        %v3089 = vmax.f32 %v3057, 0.0
        %v3090 = vmax.f32 %v3058, 0.0
        %v3091 = vmax.f32 %v3059, 0.0
        %v3092 = vmax.f32 %v3060, 0.0
        %v3093 = vmax.f32 %v3061, 0.0
        %v3094 = vmax.f32 %v3062, 0.0
        %v3095 = vmax.f32 %v3063, 0.0
        %v3096 = vmax.f32 %v3064, 0.0
        %v3097 = vmax.f32 %v3065, 0.0
        %v3098 = vmax.f32 %v3066, 0.0
        %v3099 = vmax.f32 %v3067, 0.0
        %v3100 = vmax.f32 %v3068, 0.0
        %v3101 = vmax.f32 %v3069, 0.0
        %v3102 = vmax.f32 %v3070, 0.0
        %v3103 = vmax.f32 %v3071, 0.0
        %v3104 = vmax.f32 %v3072, 0.0
        %v3105 = vmax.f32 %v3073, 0.0
        %v3106 = vmax.f32 %v3074, 0.0
        %v3107 = vmax.f32 %v3075, 0.0
        %v3108 = vmax.f32 %v3076, 0.0
        %vm3109 = vcmask 261120
        %3110 = vst.msk [vmem:[#allocation2] sm:$0xff] %vm3109, 0.0
        %3111 = vst.msk [vmem:[#allocation2 + $0x8] sm:$0xff] %vm3109, 0.0
        %vm3112 = vcmask 254976
        %3113 = vst.msk [vmem:[#allocation2 + $0x10] sm:$0x3] %vm3112, 0.0
        %3114 = vst.msk [vmem:[#allocation2 + $0x18] sm:$0xff] %vm3109, 0.0
        %3115 = vst.msk [vmem:[#allocation2 + $0x20] sm:$0xff] %vm3109, 0.0
        %3116 = vst.msk [vmem:[#allocation2 + $0x28] sm:$0x3] %vm3112, 0.0
        %3117 = vst.msk [vmem:[#allocation2 + $0x30] sm:$0xff] %vm3109, 0.0
        %3118 = vst.msk [vmem:[#allocation2 + $0x38] sm:$0xff] %vm3109, 0.0
        %3119 = vst.msk [vmem:[#allocation2 + $0x40] sm:$0x3] %vm3112, 0.0
        %3120 = vst.msk [vmem:[#allocation2 + $0x48] sm:$0xff] %vm3109, 0.0
        %3121 = vst.msk [vmem:[#allocation2 + $0x50] sm:$0xff] %vm3109, 0.0
        %3122 = vst.msk [vmem:[#allocation2 + $0x58] sm:$0x3] %vm3112, 0.0
        %3123 = vst.msk [vmem:[#allocation2 + $0x60] sm:$0xff] %vm3109, 0.0
        %3124 = vst.msk [vmem:[#allocation2 + $0x68] sm:$0xff] %vm3109, 0.0
        %3125 = vst.msk [vmem:[#allocation2 + $0x70] sm:$0x3] %vm3112, 0.0
        %3126 = vst.msk [vmem:[#allocation2 + $0x78] sm:$0xff] %vm3109, 0.0
        %3127 = vst.msk [vmem:[#allocation2 + $0x80] sm:$0xff] %vm3109, 0.0
        %3128 = vst.msk [vmem:[#allocation2 + $0x88] sm:$0x3] %vm3112, 0.0
        %3129 = vst.msk [vmem:[#allocation2 + $0x90] sm:$0xff] %vm3109, 0.0
        %3130 = vst.msk [vmem:[#allocation2 + $0x98] sm:$0xff] %vm3109, 0.0
        %3131 = vst.msk [vmem:[#allocation2 + $0xa0] sm:$0x3] %vm3112, 0.0
        %3132 = vst.msk [vmem:[#allocation2 + $0xa8] sm:$0xff] %vm3109, 0.0
        %3133 = vst.msk [vmem:[#allocation2 + $0xb0] sm:$0xff] %vm3109, 0.0
        %3134 = vst.msk [vmem:[#allocation2 + $0xb8] sm:$0x3] %vm3112, 0.0
        %3135 = vst.msk [vmem:[#allocation2 + $0xc0] sm:$0xff] %vm3109, 0.0
        %3136 = vst.msk [vmem:[#allocation2 + $0xc8] sm:$0xff] %vm3109, 0.0
        %3137 = vst.msk [vmem:[#allocation2 + $0xd0] sm:$0x3] %vm3112, 0.0
        %3138 = vst.msk [vmem:[#allocation2 + $0xd8] sm:$0xff] %vm3109, 0.0
        %3139 = vst.msk [vmem:[#allocation2 + $0xe0] sm:$0xff] %vm3109, 0.0
        %3140 = vst.msk [vmem:[#allocation2 + $0xe8] sm:$0x3] %vm3112, 0.0
        %3141 = vst.msk [vmem:[#allocation2 + $0xf0] sm:$0xff] %vm3109, 0.0
        %3142 = vst.msk [vmem:[#allocation2 + $0xf8] sm:$0xff] %vm3109, 0.0
        %3143 = vst.msk [vmem:[#allocation2 + $0x100] sm:$0x3] %vm3112, 0.0
        %3144 = vst.msk [vmem:[#allocation2 + $0x108] sm:$0xff] %vm3109, 0.0
        %3145 = vst.msk [vmem:[#allocation2 + $0x110] sm:$0xff] %vm3109, 0.0
        %3146 = vst.msk [vmem:[#allocation2 + $0x118] sm:$0x3] %vm3112, 0.0
        %3147 = vst.msk [vmem:[#allocation2 + $0x120] sm:$0xff] %vm3109, 0.0
        %3148 = vst.msk [vmem:[#allocation2 + $0x128] sm:$0xff] %vm3109, 0.0
        %3149 = vst.msk [vmem:[#allocation2 + $0x130] sm:$0x3] %vm3112, 0.0
        %3150 = vst.msk [vmem:[#allocation2 + $0x138] sm:$0xff] %vm3109, 0.0
        %3151 = vst.msk [vmem:[#allocation2 + $0x140] sm:$0xff] %vm3109, 0.0
        %3152 = vst.msk [vmem:[#allocation2 + $0x148] sm:$0x3] %vm3112, 0.0
        %3153 = vst.msk [vmem:[#allocation2 + $0x150] sm:$0xff] %vm3109, 0.0
        %3154 = vst.msk [vmem:[#allocation2 + $0x158] sm:$0xff] %vm3109, 0.0
        %3155 = vst.msk [vmem:[#allocation2 + $0x160] sm:$0x3] %vm3112, 0.0
        %3156 = vst.msk [vmem:[#allocation2 + $0x168] sm:$0xff] %vm3109, 0.0
        %3157 = vst.msk [vmem:[#allocation2 + $0x170] sm:$0xff] %vm3109, 0.0
        %3158 = vst.msk [vmem:[#allocation2 + $0x178] sm:$0x3] %vm3112, 0.0
        %3159 = vst.msk [vmem:[#allocation2 + $0x180] sm:$0xff] %vm3109, 0.0
        %3160 = vst.msk [vmem:[#allocation2 + $0x188] sm:$0xff] %vm3109, 0.0
        %3161 = vst.msk [vmem:[#allocation2 + $0x190] sm:$0x3] %vm3112, 0.0
        %3162 = vst.msk [vmem:[#allocation2 + $0x198] sm:$0xff] %vm3109, 0.0
        %3163 = vst.msk [vmem:[#allocation2 + $0x1a0] sm:$0xff] %vm3109, 0.0
        %3164 = vst.msk [vmem:[#allocation2 + $0x1a8] sm:$0x3] %vm3112, 0.0
        %s3165 = scalar_lea.vmem [#allocation2], 24
        %3166 = vst.msk [vmem:[%s3165 + $0x1] sm:$0xff] %vm3109, %v3077
        %3167 = vst.msk [vmem:[%s3165 + $0x9] sm:$0xff] %vm3109, %v3078
        %3168 = vst.msk [vmem:[%s3165 + $0x19] sm:$0xff] %vm3109, %v3079
        %3169 = vst.msk [vmem:[%s3165 + $0x21] sm:$0xff] %vm3109, %v3080
        %3170 = vst.msk [vmem:[%s3165 + $0x31] sm:$0xff] %vm3109, %v3081
        %3171 = vst.msk [vmem:[%s3165 + $0x39] sm:$0xff] %vm3109, %v3082
        %3172 = vst.msk [vmem:[%s3165 + $0x49] sm:$0xff] %vm3109, %v3083
        %3173 = vst.msk [vmem:[%s3165 + $0x51] sm:$0xff] %vm3109, %v3084
        %3174 = vst.msk [vmem:[%s3165 + $0x61] sm:$0xff] %vm3109, %v3085
        %3175 = vst.msk [vmem:[%s3165 + $0x69] sm:$0xff] %vm3109, %v3086
        %3176 = vst.msk [vmem:[%s3165 + $0x79] sm:$0xff] %vm3109, %v3087
        %3177 = vst.msk [vmem:[%s3165 + $0x81] sm:$0xff] %vm3109, %v3088
        %3178 = vst.msk [vmem:[%s3165 + $0x91] sm:$0xff] %vm3109, %v3089
        %3179 = vst.msk [vmem:[%s3165 + $0x99] sm:$0xff] %vm3109, %v3090
        %3180 = vst.msk [vmem:[%s3165 + $0xa9] sm:$0xff] %vm3109, %v3091
        %3181 = vst.msk [vmem:[%s3165 + $0xb1] sm:$0xff] %vm3109, %v3092
        %3182 = vst.msk [vmem:[%s3165 + $0xc1] sm:$0xff] %vm3109, %v3093
        %3183 = vst.msk [vmem:[%s3165 + $0xc9] sm:$0xff] %vm3109, %v3094
        %3184 = vst.msk [vmem:[%s3165 + $0xd9] sm:$0xff] %vm3109, %v3095
        %3185 = vst.msk [vmem:[%s3165 + $0xe1] sm:$0xff] %vm3109, %v3096
        %3186 = vst.msk [vmem:[%s3165 + $0xf1] sm:$0xff] %vm3109, %v3097
        %3187 = vst.msk [vmem:[%s3165 + $0xf9] sm:$0xff] %vm3109, %v3098
        %3188 = vst.msk [vmem:[%s3165 + $0x109] sm:$0xff] %vm3109, %v3099
        %3189 = vst.msk [vmem:[%s3165 + $0x111] sm:$0xff] %vm3109, %v3100
        %3190 = vst.msk [vmem:[%s3165 + $0x121] sm:$0xff] %vm3109, %v3101
        %3191 = vst.msk [vmem:[%s3165 + $0x129] sm:$0xff] %vm3109, %v3102
        %3192 = vst.msk [vmem:[%s3165 + $0x139] sm:$0xff] %vm3109, %v3103
        %3193 = vst.msk [vmem:[%s3165 + $0x141] sm:$0xff] %vm3109, %v3104
        %3194 = vst.msk [vmem:[%s3165 + $0x151] sm:$0xff] %vm3109, %v3105
        %3195 = vst.msk [vmem:[%s3165 + $0x159] sm:$0xff] %vm3109, %v3106
        %3196 = vst.msk [vmem:[%s3165 + $0x169] sm:$0xff] %vm3109, %v3107
        %3197 = vst.msk [vmem:[%s3165 + $0x171] sm:$0xff] %vm3109, %v3108
        %v3198 = vld [vmem:[%s3] sm:$0xf]
        %v3199 = vld [vmem:[%s3 + $0x4] sm:$0xf]
        %v3200 = vld [vmem:[%s3 + $0x8] sm:$0xf]
        %v3201 = vld [vmem:[%s3 + $0xc] sm:$0xf]
        %v3202 = vld [vmem:[%s3 + $0x10] sm:$0xf]
        %v3203 = vld [vmem:[%s3 + $0x14] sm:$0xf]
        %v3204 = vld [vmem:[%s3 + $0x18] sm:$0xf]
        %v3205 = vld [vmem:[%s3 + $0x1c] sm:$0xf]
        %v3206 = vld [vmem:[%s3 + $0x20] sm:$0xf]
        %v3207 = vld [vmem:[%s3 + $0x24] sm:$0xf]
        %v3208 = vld [vmem:[%s3 + $0x28] sm:$0xf]
        %v3209 = vld [vmem:[%s3 + $0x2c] sm:$0xf]
        %v3210 = vld [vmem:[%s3 + $0x30] sm:$0xf]
        %v3211 = vld [vmem:[%s3 + $0x34] sm:$0xf]
        %v3212 = vld [vmem:[%s3 + $0x38] sm:$0xf]
        %v3213 = vld [vmem:[%s3 + $0x3c] sm:$0xf]
        %v3214 = vld [vmem:[%s3 + $0x40] sm:$0xf]
        %v3215 = vld [vmem:[%s3 + $0x44] sm:$0xf]
        %v3216 = vld [vmem:[%s3 + $0x48] sm:$0xf]
        %v3217 = vld [vmem:[%s3 + $0x4c] sm:$0xf]
        %v3218 = vld [vmem:[%s3 + $0x50] sm:$0xf]
        %v3219 = vld [vmem:[%s3 + $0x54] sm:$0xf]
        %v3220 = vld [vmem:[%s3 + $0x58] sm:$0xf]
        %v3221 = vld [vmem:[%s3 + $0x5c] sm:$0xf]
        %v3222 = vld [vmem:[%s3 + $0x60] sm:$0xf]
        %v3223 = vld [vmem:[%s3 + $0x64] sm:$0xf]
        %v3224 = vld [vmem:[%s3 + $0x68] sm:$0xf]
        %v3225 = vld [vmem:[%s3 + $0x6c] sm:$0xf]
        %v3226 = vld [vmem:[%s3 + $0x70] sm:$0xf]
        %v3227 = vld [vmem:[%s3 + $0x74] sm:$0xf]
        %v3228 = vld [vmem:[%s3 + $0x78] sm:$0xf]
        %v3229 = vld [vmem:[%s3 + $0x7c] sm:$0xf]
        %v3230 = vld [vmem:[%s3 + $0x80] sm:$0xf]
        %v3231 = vld [vmem:[%s3 + $0x84] sm:$0xf]
        %v3232 = vld [vmem:[%s3 + $0x88] sm:$0xf]
        %v3233 = vld [vmem:[%s3 + $0x8c] sm:$0xf]
        %v3234 = vld [vmem:[#allocation2] sm:$0xff]
        %v3235 = vld [vmem:[#allocation2 + $0x8] sm:$0xff]
        %v3236 = vld [vmem:[#allocation2 + $0x18] sm:$0xff]
        %v3237 = vld [vmem:[#allocation2 + $0x20] sm:$0xff]
        %v3238 = vld [vmem:[#allocation2 + $0x30] sm:$0xff]
        %v3239 = vld [vmem:[#allocation2 + $0x38] sm:$0xff]
        %v3240 = vld [vmem:[#allocation2 + $0x48] sm:$0xff]
        %v3241 = vld [vmem:[#allocation2 + $0x50] sm:$0xff]
        %v3242 = vld [vmem:[#allocation2 + $0x60] sm:$0xff]
        %v3243 = vld [vmem:[#allocation2 + $0x68] sm:$0xff]
        %v3244 = vld [vmem:[#allocation2 + $0x78] sm:$0xff]
        %v3245 = vld [vmem:[#allocation2 + $0x80] sm:$0xff]
        %v3246 = vld [vmem:[#allocation2 + $0x90] sm:$0xff]
        %v3247 = vld [vmem:[#allocation2 + $0x98] sm:$0xff]
        %v3248 = vld [vmem:[#allocation2 + $0xa8] sm:$0xff]
        %v3249 = vld [vmem:[#allocation2 + $0xb0] sm:$0xff]
        %v3250 = vld [vmem:[#allocation2 + $0xc0] sm:$0xff]
        %v3251 = vld [vmem:[#allocation2 + $0xc8] sm:$0xff]
        %v3252 = vld [vmem:[#allocation2 + $0xd8] sm:$0xff]
        %v3253 = vld [vmem:[#allocation2 + $0xe0] sm:$0xff]
        %v3254 = vld [vmem:[#allocation2 + $0xf0] sm:$0xff]
        %v3255 = vld [vmem:[#allocation2 + $0xf8] sm:$0xff]
        %v3256 = vld [vmem:[#allocation2 + $0x108] sm:$0xff]
        %v3257 = vld [vmem:[#allocation2 + $0x110] sm:$0xff]
        %v3258 = vld [vmem:[#allocation2 + $0x120] sm:$0xff]
        %v3259 = vld [vmem:[#allocation2 + $0x128] sm:$0xff]
        %v3260 = vld [vmem:[#allocation2 + $0x138] sm:$0xff]
        %v3261 = vld [vmem:[#allocation2 + $0x140] sm:$0xff]
        %v3262 = vld [vmem:[#allocation2 + $0x150] sm:$0xff]
        %v3263 = vld [vmem:[#allocation2 + $0x158] sm:$0xff]
        %v3264 = vld [vmem:[#allocation2 + $0x168] sm:$0xff]
        %v3265 = vld [vmem:[#allocation2 + $0x170] sm:$0xff]
        %v3266 = vpack.c.bf16 %v3235, %v3234
        %v3267 = vpack.c.bf16 %v3237, %v3236
        %v3268 = vpack.c.bf16 %v3239, %v3238
        %v3269 = vpack.c.bf16 %v3241, %v3240
        %v3270 = vpack.c.bf16 %v3243, %v3242
        %v3271 = vpack.c.bf16 %v3245, %v3244
        %v3272 = vpack.c.bf16 %v3247, %v3246
        %v3273 = vpack.c.bf16 %v3249, %v3248
        %v3274 = vpack.c.bf16 %v3251, %v3250
        %v3275 = vpack.c.bf16 %v3253, %v3252
        %v3276 = vpack.c.bf16 %v3255, %v3254
        %v3277 = vpack.c.bf16 %v3257, %v3256
        %v3278 = vpack.c.bf16 %v3259, %v3258
        %v3279 = vpack.c.bf16 %v3261, %v3260
        %v3280 = vpack.c.bf16 %v3263, %v3262
        %v3281 = vpack.c.bf16 %v3265, %v3264
        %v3282 = vld [vmem:[#allocation2 + $0x1] sm:$0xff]
        %v3283 = vld [vmem:[#allocation2 + $0x9] sm:$0xff]
        %v3284 = vld [vmem:[#allocation2 + $0x19] sm:$0xff]
        %v3285 = vld [vmem:[#allocation2 + $0x21] sm:$0xff]
        %v3286 = vld [vmem:[#allocation2 + $0x31] sm:$0xff]
        %v3287 = vld [vmem:[#allocation2 + $0x39] sm:$0xff]
        %v3288 = vld [vmem:[#allocation2 + $0x49] sm:$0xff]
        %v3289 = vld [vmem:[#allocation2 + $0x51] sm:$0xff]
        %v3290 = vld [vmem:[#allocation2 + $0x61] sm:$0xff]
        %v3291 = vld [vmem:[#allocation2 + $0x69] sm:$0xff]
        %v3292 = vld [vmem:[#allocation2 + $0x79] sm:$0xff]
        %v3293 = vld [vmem:[#allocation2 + $0x81] sm:$0xff]
        %v3294 = vld [vmem:[#allocation2 + $0x91] sm:$0xff]
        %v3295 = vld [vmem:[#allocation2 + $0x99] sm:$0xff]
        %v3296 = vld [vmem:[#allocation2 + $0xa9] sm:$0xff]
        %v3297 = vld [vmem:[#allocation2 + $0xb1] sm:$0xff]
        %v3298 = vld [vmem:[#allocation2 + $0xc1] sm:$0xff]
        %v3299 = vld [vmem:[#allocation2 + $0xc9] sm:$0xff]
        %v3300 = vld [vmem:[#allocation2 + $0xd9] sm:$0xff]
        %v3301 = vld [vmem:[#allocation2 + $0xe1] sm:$0xff]
        %v3302 = vld [vmem:[#allocation2 + $0xf1] sm:$0xff]
        %v3303 = vld [vmem:[#allocation2 + $0xf9] sm:$0xff]
        %v3304 = vld [vmem:[#allocation2 + $0x109] sm:$0xff]
        %v3305 = vld [vmem:[#allocation2 + $0x111] sm:$0xff]
        %v3306 = vld [vmem:[#allocation2 + $0x121] sm:$0xff]
        %v3307 = vld [vmem:[#allocation2 + $0x129] sm:$0xff]
        %v3308 = vld [vmem:[#allocation2 + $0x139] sm:$0xff]
        %v3309 = vld [vmem:[#allocation2 + $0x141] sm:$0xff]
        %v3310 = vld [vmem:[#allocation2 + $0x151] sm:$0xff]
        %v3311 = vld [vmem:[#allocation2 + $0x159] sm:$0xff]
        %v3312 = vld [vmem:[#allocation2 + $0x169] sm:$0xff]
        %v3313 = vld [vmem:[#allocation2 + $0x171] sm:$0xff]
        %v3314 = vpack.c.bf16 %v3283, %v3282
        %v3315 = vpack.c.bf16 %v3285, %v3284
        %v3316 = vpack.c.bf16 %v3287, %v3286
        %v3317 = vpack.c.bf16 %v3289, %v3288
        %v3318 = vpack.c.bf16 %v3291, %v3290
        %v3319 = vpack.c.bf16 %v3293, %v3292
        %v3320 = vpack.c.bf16 %v3295, %v3294
        %v3321 = vpack.c.bf16 %v3297, %v3296
        %v3322 = vpack.c.bf16 %v3299, %v3298
        %v3323 = vpack.c.bf16 %v3301, %v3300
        %v3324 = vpack.c.bf16 %v3303, %v3302
        %v3325 = vpack.c.bf16 %v3305, %v3304
        %v3326 = vpack.c.bf16 %v3307, %v3306
        %v3327 = vpack.c.bf16 %v3309, %v3308
        %v3328 = vpack.c.bf16 %v3311, %v3310
        %v3329 = vpack.c.bf16 %v3313, %v3312
        %v3334 = vunpack.c.l.b16 %v3202
        %v3335 = vunpack.c.l.b16 %v3203
        %v3336 = vunpack.c.l.b16 %v3204
        %v3337 = vunpack.c.l.b16 %v3205
        %v3338 = vpack.c.b16 %v3335, %v3334
        %v3339 = vpack.c.b16 %v3337, %v3336
        %v3343 = vsel %vm3109, %v3314, 0
        %v3346 = vsel %vm3109, %v3315, 0
        %v3349 = vsel %vm3109, %v3316, 0
        %v3352 = vsel %vm3109, %v3317, 0
        %v3355 = vsel %vm3109, %v3318, 0
        %v3358 = vsel %vm3109, %v3319, 0
        %v3361 = vsel %vm3109, %v3320, 0
        %v3364 = vsel %vm3109, %v3321, 0
        %v3367 = vsel %vm3109, %v3322, 0
        %v3370 = vsel %vm3109, %v3323, 0
        %v3373 = vsel %vm3109, %v3324, 0
        %v3376 = vsel %vm3109, %v3325, 0
        %v3379 = vsel %vm3109, %v3326, 0
        %v3382 = vsel %vm3109, %v3327, 0
        %v3385 = vsel %vm3109, %v3328, 0
        %v3388 = vsel %vm3109, %v3329, 0
        %3390 = vmatprep.subr.bf16.mxu0 0
        %3391 = vmatpush1.bf16.msra.mxu0 0
        %3392 = vmatprep.subr.bf16.mxu0 0
        %3393 = vmatpush1.bf16.msra.mxu0 0
        %3394 = vmatprep.subr.bf16.mxu0 0
        %3395 = vmatpush1.bf16.msra.mxu0 0
        %3396 = vmatprep.subr.bf16.mxu0 0
        %3397 = vmatpush1.bf16.msra.mxu0 0
        %3398 = vmatprep.subr.bf16.mxu0 0
        %3399 = vmatpush1.bf16.msra.mxu0 0
        %3400 = vmatprep.subr.bf16.mxu0 0
        %3401 = vmatpush1.bf16.msra.mxu0 0
        %3402 = vmatprep.subr.bf16.mxu0 0
        %3403 = vmatpush1.bf16.msra.mxu0 %v3339
        %3404 = vmatprep.subr.bf16.mxu0 0
        %3405 = vmatpush1.bf16.msra.mxu0 %v3338
        %3406 = vmatprep.subr.bf16.mxu0 0
        %3407 = vmatpush2.bf16.msra.mxu0 0
        %3408 = vmatprep.subr.bf16.mxu0 0
        %3409 = vmatpush2.bf16.msra.mxu0 0
        %3410 = vmatprep.subr.bf16.mxu0 0
        %3411 = vmatpush2.bf16.msra.mxu0 0
        %3412 = vmatprep.subr.bf16.mxu0 0
        %3413 = vmatpush2.bf16.msra.mxu0 0
        %3414 = vmatprep.subr.bf16.mxu0 0
        %3415 = vmatpush2.bf16.msra.mxu0 0
        %3416 = vmatprep.subr.bf16.mxu0 0
        %3417 = vmatpush2.bf16.msra.mxu0 0
        %3418 = vmatprep.subr.bf16.mxu0 0
        %3419 = vmatpush2.bf16.msra.mxu0 0
        %3420 = vmatprep.subr.bf16.mxu0 0
        %3421 = vmatpush2.bf16.msra.mxu0 0
        %3422 = vmatprep.mubr.bf16.mxu0 0
        %3423 = vmatmul.mubr.bf16.gmra.mxu0 %v3343
        %v3424 = vpop.f32.mrf.mxu0
        %v3425 = vadd.f32 0.0, %v3424
        %v3426 = vpop.f32.mrf.mxu0
        %v3427 = vpop.f32.mrf.mxu0
        %v3428 = vadd.f32 0.0, %v3427
        %v3429 = vpop.f32.mrf.mxu0
        %3430 = vmatprep.mubr.bf16.mxu0 0
        %3431 = vmatmul.mubr.bf16.gmra.mxu0 %v3346
        %v3432 = vpop.f32.mrf.mxu0
        %v3433 = vadd.f32 0.0, %v3432
        %v3434 = vpop.f32.mrf.mxu0
        %v3435 = vpop.f32.mrf.mxu0
        %v3436 = vadd.f32 0.0, %v3435
        %v3437 = vpop.f32.mrf.mxu0
        %3438 = vmatprep.mubr.bf16.mxu0 0
        %3439 = vmatmul.mubr.bf16.gmra.mxu0 %v3349
        %v3440 = vpop.f32.mrf.mxu0
        %v3441 = vadd.f32 0.0, %v3440
        %v3442 = vpop.f32.mrf.mxu0
        %v3443 = vpop.f32.mrf.mxu0
        %v3444 = vadd.f32 0.0, %v3443
        %v3445 = vpop.f32.mrf.mxu0
        %3446 = vmatprep.mubr.bf16.mxu0 0
        %3447 = vmatmul.mubr.bf16.gmra.mxu0 %v3352
        %v3448 = vpop.f32.mrf.mxu0
        %v3449 = vadd.f32 0.0, %v3448
        %v3450 = vpop.f32.mrf.mxu0
        %v3451 = vpop.f32.mrf.mxu0
        %v3452 = vadd.f32 0.0, %v3451
        %v3453 = vpop.f32.mrf.mxu0
        %3454 = vmatprep.mubr.bf16.mxu0 0
        %3455 = vmatmul.mubr.bf16.gmra.mxu0 %v3355
        %v3456 = vpop.f32.mrf.mxu0
        %v3457 = vadd.f32 0.0, %v3456
        %v3458 = vpop.f32.mrf.mxu0
        %v3459 = vpop.f32.mrf.mxu0
        %v3460 = vadd.f32 0.0, %v3459
        %v3461 = vpop.f32.mrf.mxu0
        %3462 = vmatprep.mubr.bf16.mxu0 0
        %3463 = vmatmul.mubr.bf16.gmra.mxu0 %v3358
        %v3464 = vpop.f32.mrf.mxu0
        %v3465 = vadd.f32 0.0, %v3464
        %v3466 = vpop.f32.mrf.mxu0
        %v3467 = vpop.f32.mrf.mxu0
        %v3468 = vadd.f32 0.0, %v3467
        %v3469 = vpop.f32.mrf.mxu0
        %3470 = vmatprep.mubr.bf16.mxu0 0
        %3471 = vmatmul.mubr.bf16.gmra.mxu0 %v3361
        %v3472 = vpop.f32.mrf.mxu0
        %v3473 = vadd.f32 0.0, %v3472
        %v3474 = vpop.f32.mrf.mxu0
        %v3475 = vpop.f32.mrf.mxu0
        %v3476 = vadd.f32 0.0, %v3475
        %v3477 = vpop.f32.mrf.mxu0
        %3478 = vmatprep.mubr.bf16.mxu0 0
        %3479 = vmatmul.mubr.bf16.gmra.mxu0 %v3364
        %v3480 = vpop.f32.mrf.mxu0
        %v3481 = vadd.f32 0.0, %v3480
        %v3482 = vpop.f32.mrf.mxu0
        %v3483 = vpop.f32.mrf.mxu0
        %v3484 = vadd.f32 0.0, %v3483
        %v3485 = vpop.f32.mrf.mxu0
        %3486 = vmatprep.mubr.bf16.mxu0 0
        %3487 = vmatmul.mubr.bf16.gmra.mxu0 %v3367
        %v3488 = vpop.f32.mrf.mxu0
        %v3489 = vadd.f32 0.0, %v3488
        %v3490 = vpop.f32.mrf.mxu0
        %v3491 = vpop.f32.mrf.mxu0
        %v3492 = vadd.f32 0.0, %v3491
        %v3493 = vpop.f32.mrf.mxu0
        %3494 = vmatprep.mubr.bf16.mxu0 0
        %3495 = vmatmul.mubr.bf16.gmra.mxu0 %v3370
        %v3496 = vpop.f32.mrf.mxu0
        %v3497 = vadd.f32 0.0, %v3496
        %v3498 = vpop.f32.mrf.mxu0
        %v3499 = vpop.f32.mrf.mxu0
        %v3500 = vadd.f32 0.0, %v3499
        %v3501 = vpop.f32.mrf.mxu0
        %3502 = vmatprep.mubr.bf16.mxu0 0
        %3503 = vmatmul.mubr.bf16.gmra.mxu0 %v3373
        %v3504 = vpop.f32.mrf.mxu0
        %v3505 = vadd.f32 0.0, %v3504
        %v3506 = vpop.f32.mrf.mxu0
        %v3507 = vpop.f32.mrf.mxu0
        %v3508 = vadd.f32 0.0, %v3507
        %v3509 = vpop.f32.mrf.mxu0
        %3510 = vmatprep.mubr.bf16.mxu0 0
        %3511 = vmatmul.mubr.bf16.gmra.mxu0 %v3376
        %v3512 = vpop.f32.mrf.mxu0
        %v3513 = vadd.f32 0.0, %v3512
        %v3514 = vpop.f32.mrf.mxu0
        %v3515 = vpop.f32.mrf.mxu0
        %v3516 = vadd.f32 0.0, %v3515
        %v3517 = vpop.f32.mrf.mxu0
        %3518 = vmatprep.mubr.bf16.mxu0 0
        %3519 = vmatmul.mubr.bf16.gmra.mxu0 %v3379
        %v3520 = vpop.f32.mrf.mxu0
        %v3521 = vadd.f32 0.0, %v3520
        %v3522 = vpop.f32.mrf.mxu0
        %v3523 = vpop.f32.mrf.mxu0
        %v3524 = vadd.f32 0.0, %v3523
        %v3525 = vpop.f32.mrf.mxu0
        %3526 = vmatprep.mubr.bf16.mxu0 0
        %3527 = vmatmul.mubr.bf16.gmra.mxu0 %v3382
        %v3528 = vpop.f32.mrf.mxu0
        %v3529 = vadd.f32 0.0, %v3528
        %v3530 = vpop.f32.mrf.mxu0
        %v3531 = vpop.f32.mrf.mxu0
        %v3532 = vadd.f32 0.0, %v3531
        %v3533 = vpop.f32.mrf.mxu0
        %3534 = vmatprep.mubr.bf16.mxu0 0
        %3535 = vmatmul.mubr.bf16.gmra.mxu0 %v3385
        %v3536 = vpop.f32.mrf.mxu0
        %v3537 = vadd.f32 0.0, %v3536
        %v3538 = vpop.f32.mrf.mxu0
        %v3539 = vpop.f32.mrf.mxu0
        %v3540 = vadd.f32 0.0, %v3539
        %v3541 = vpop.f32.mrf.mxu0
        %3542 = vmatprep.mubr.bf16.mxu0 0
        %3543 = vmatmul.mubr.bf16.gmra.mxu0 %v3388
        %v3544 = vpop.f32.mrf.mxu0
        %v3545 = vadd.f32 0.0, %v3544
        %v3546 = vpop.f32.mrf.mxu0
        %v3547 = vpop.f32.mrf.mxu0
        %v3548 = vadd.f32 0.0, %v3547
        %v3549 = vpop.f32.mrf.mxu0
        %3550 = vdwg.mxu0
        %v3555 = vunpack.c.l.b16 %v3198
        %v3556 = vunpack.c.l.b16 %v3199
        %v3557 = vunpack.c.l.b16 %v3200
        %v3558 = vunpack.c.l.b16 %v3201
        %v3559 = vpack.c.b16 %v3556, %v3555
        %v3560 = vpack.c.b16 %v3558, %v3557
        %v3564 = vsel %vm3109, %v3266, 0
        %v3567 = vsel %vm3109, %v3267, 0
        %v3570 = vsel %vm3109, %v3268, 0
        %v3573 = vsel %vm3109, %v3269, 0
        %v3576 = vsel %vm3109, %v3270, 0
        %v3579 = vsel %vm3109, %v3271, 0
        %v3582 = vsel %vm3109, %v3272, 0
        %v3585 = vsel %vm3109, %v3273, 0
        %v3588 = vsel %vm3109, %v3274, 0
        %v3591 = vsel %vm3109, %v3275, 0
        %v3594 = vsel %vm3109, %v3276, 0
        %v3597 = vsel %vm3109, %v3277, 0
        %v3600 = vsel %vm3109, %v3278, 0
        %v3603 = vsel %vm3109, %v3279, 0
        %v3606 = vsel %vm3109, %v3280, 0
        %v3609 = vsel %vm3109, %v3281, 0
        %3611 = vmatprep.subr.bf16.mxu0 0
        %3612 = vmatpush1.bf16.msra.mxu0 0
        %3613 = vmatprep.subr.bf16.mxu0 0
        %3614 = vmatpush1.bf16.msra.mxu0 0
        %3615 = vmatprep.subr.bf16.mxu0 0
        %3616 = vmatpush1.bf16.msra.mxu0 0
        %3617 = vmatprep.subr.bf16.mxu0 0
        %3618 = vmatpush1.bf16.msra.mxu0 0
        %3619 = vmatprep.subr.bf16.mxu0 0
        %3620 = vmatpush1.bf16.msra.mxu0 0
        %3621 = vmatprep.subr.bf16.mxu0 0
        %3622 = vmatpush1.bf16.msra.mxu0 0
        %3623 = vmatprep.subr.bf16.mxu0 0
        %3624 = vmatpush1.bf16.msra.mxu0 %v3560
        %3625 = vmatprep.subr.bf16.mxu0 0
        %3626 = vmatpush1.bf16.msra.mxu0 %v3559
        %3627 = vmatprep.subr.bf16.mxu0 0
        %3628 = vmatpush2.bf16.msra.mxu0 0
        %3629 = vmatprep.subr.bf16.mxu0 0
        %3630 = vmatpush2.bf16.msra.mxu0 0
        %3631 = vmatprep.subr.bf16.mxu0 0
        %3632 = vmatpush2.bf16.msra.mxu0 0
        %3633 = vmatprep.subr.bf16.mxu0 0
        %3634 = vmatpush2.bf16.msra.mxu0 0
        %3635 = vmatprep.subr.bf16.mxu0 0
        %3636 = vmatpush2.bf16.msra.mxu0 0
        %3637 = vmatprep.subr.bf16.mxu0 0
        %3638 = vmatpush2.bf16.msra.mxu0 0
        %3639 = vmatprep.subr.bf16.mxu0 0
        %3640 = vmatpush2.bf16.msra.mxu0 0
        %3641 = vmatprep.subr.bf16.mxu0 0
        %3642 = vmatpush2.bf16.msra.mxu0 0
        %3643 = vmatprep.mubr.bf16.mxu0 0
        %3644 = vmatmul.mubr.bf16.gmra.mxu0 %v3564
        %v3645 = vpop.f32.mrf.mxu0
        %v3646 = vadd.f32 %v3425, %v3645
        %v3647 = vpop.f32.mrf.mxu0
        %v3648 = vpop.f32.mrf.mxu0
        %v3649 = vadd.f32 %v3428, %v3648
        %v3650 = vpop.f32.mrf.mxu0
        %3651 = vmatprep.mubr.bf16.mxu0 0
        %3652 = vmatmul.mubr.bf16.gmra.mxu0 %v3567
        %v3653 = vpop.f32.mrf.mxu0
        %v3654 = vadd.f32 %v3433, %v3653
        %v3655 = vpop.f32.mrf.mxu0
        %v3656 = vpop.f32.mrf.mxu0
        %v3657 = vadd.f32 %v3436, %v3656
        %v3658 = vpop.f32.mrf.mxu0
        %3659 = vmatprep.mubr.bf16.mxu0 0
        %3660 = vmatmul.mubr.bf16.gmra.mxu0 %v3570
        %v3661 = vpop.f32.mrf.mxu0
        %v3662 = vadd.f32 %v3441, %v3661
        %v3663 = vpop.f32.mrf.mxu0
        %v3664 = vpop.f32.mrf.mxu0
        %v3665 = vadd.f32 %v3444, %v3664
        %v3666 = vpop.f32.mrf.mxu0
        %3667 = vmatprep.mubr.bf16.mxu0 0
        %3668 = vmatmul.mubr.bf16.gmra.mxu0 %v3573
        %v3669 = vpop.f32.mrf.mxu0
        %v3670 = vadd.f32 %v3449, %v3669
        %v3671 = vpop.f32.mrf.mxu0
        %v3672 = vpop.f32.mrf.mxu0
        %v3673 = vadd.f32 %v3452, %v3672
        %v3674 = vpop.f32.mrf.mxu0
        %3675 = vmatprep.mubr.bf16.mxu0 0
        %3676 = vmatmul.mubr.bf16.gmra.mxu0 %v3576
        %v3677 = vpop.f32.mrf.mxu0
        %v3678 = vadd.f32 %v3457, %v3677
        %v3679 = vpop.f32.mrf.mxu0
        %v3680 = vpop.f32.mrf.mxu0
        %v3681 = vadd.f32 %v3460, %v3680
        %v3682 = vpop.f32.mrf.mxu0
        %3683 = vmatprep.mubr.bf16.mxu0 0
        %3684 = vmatmul.mubr.bf16.gmra.mxu0 %v3579
        %v3685 = vpop.f32.mrf.mxu0
        %v3686 = vadd.f32 %v3465, %v3685
        %v3687 = vpop.f32.mrf.mxu0
        %v3688 = vpop.f32.mrf.mxu0
        %v3689 = vadd.f32 %v3468, %v3688
        %v3690 = vpop.f32.mrf.mxu0
        %3691 = vmatprep.mubr.bf16.mxu0 0
        %3692 = vmatmul.mubr.bf16.gmra.mxu0 %v3582
        %v3693 = vpop.f32.mrf.mxu0
        %v3694 = vadd.f32 %v3473, %v3693
        %v3695 = vpop.f32.mrf.mxu0
        %v3696 = vpop.f32.mrf.mxu0
        %v3697 = vadd.f32 %v3476, %v3696
        %v3698 = vpop.f32.mrf.mxu0
        %3699 = vmatprep.mubr.bf16.mxu0 0
        %3700 = vmatmul.mubr.bf16.gmra.mxu0 %v3585
        %v3701 = vpop.f32.mrf.mxu0
        %v3702 = vadd.f32 %v3481, %v3701
        %v3703 = vpop.f32.mrf.mxu0
        %v3704 = vpop.f32.mrf.mxu0
        %v3705 = vadd.f32 %v3484, %v3704
        %v3706 = vpop.f32.mrf.mxu0
        %3707 = vmatprep.mubr.bf16.mxu0 0
        %3708 = vmatmul.mubr.bf16.gmra.mxu0 %v3588
        %v3709 = vpop.f32.mrf.mxu0
        %v3710 = vadd.f32 %v3489, %v3709
        %v3711 = vpop.f32.mrf.mxu0
        %v3712 = vpop.f32.mrf.mxu0
        %v3713 = vadd.f32 %v3492, %v3712
        %v3714 = vpop.f32.mrf.mxu0
        %3715 = vmatprep.mubr.bf16.mxu0 0
        %3716 = vmatmul.mubr.bf16.gmra.mxu0 %v3591
        %v3717 = vpop.f32.mrf.mxu0
        %v3718 = vadd.f32 %v3497, %v3717
        %v3719 = vpop.f32.mrf.mxu0
        %v3720 = vpop.f32.mrf.mxu0
        %v3721 = vadd.f32 %v3500, %v3720
        %v3722 = vpop.f32.mrf.mxu0
        %3723 = vmatprep.mubr.bf16.mxu0 0
        %3724 = vmatmul.mubr.bf16.gmra.mxu0 %v3594
        %v3725 = vpop.f32.mrf.mxu0
        %v3726 = vadd.f32 %v3505, %v3725
        %v3727 = vpop.f32.mrf.mxu0
        %v3728 = vpop.f32.mrf.mxu0
        %v3729 = vadd.f32 %v3508, %v3728
        %v3730 = vpop.f32.mrf.mxu0
        %3731 = vmatprep.mubr.bf16.mxu0 0
        %3732 = vmatmul.mubr.bf16.gmra.mxu0 %v3597
        %v3733 = vpop.f32.mrf.mxu0
        %v3734 = vadd.f32 %v3513, %v3733
        %v3735 = vpop.f32.mrf.mxu0
        %v3736 = vpop.f32.mrf.mxu0
        %v3737 = vadd.f32 %v3516, %v3736
        %v3738 = vpop.f32.mrf.mxu0
        %3739 = vmatprep.mubr.bf16.mxu0 0
        %3740 = vmatmul.mubr.bf16.gmra.mxu0 %v3600
        %v3741 = vpop.f32.mrf.mxu0
        %v3742 = vadd.f32 %v3521, %v3741
        %v3743 = vpop.f32.mrf.mxu0
        %v3744 = vpop.f32.mrf.mxu0
        %v3745 = vadd.f32 %v3524, %v3744
        %v3746 = vpop.f32.mrf.mxu0
        %3747 = vmatprep.mubr.bf16.mxu0 0
        %3748 = vmatmul.mubr.bf16.gmra.mxu0 %v3603
        %v3749 = vpop.f32.mrf.mxu0
        %v3750 = vadd.f32 %v3529, %v3749
        %v3751 = vpop.f32.mrf.mxu0
        %v3752 = vpop.f32.mrf.mxu0
        %v3753 = vadd.f32 %v3532, %v3752
        %v3754 = vpop.f32.mrf.mxu0
        %3755 = vmatprep.mubr.bf16.mxu0 0
        %3756 = vmatmul.mubr.bf16.gmra.mxu0 %v3606
        %v3757 = vpop.f32.mrf.mxu0
        %v3758 = vadd.f32 %v3537, %v3757
        %v3759 = vpop.f32.mrf.mxu0
        %v3760 = vpop.f32.mrf.mxu0
        %v3761 = vadd.f32 %v3540, %v3760
        %v3762 = vpop.f32.mrf.mxu0
        %3763 = vmatprep.mubr.bf16.mxu0 0
        %3764 = vmatmul.mubr.bf16.gmra.mxu0 %v3609
        %v3765 = vpop.f32.mrf.mxu0
        %v3766 = vadd.f32 %v3545, %v3765
        %v3767 = vpop.f32.mrf.mxu0
        %v3768 = vpop.f32.mrf.mxu0
        %v3769 = vadd.f32 %v3548, %v3768
        %v3770 = vpop.f32.mrf.mxu0
        %3771 = vdwg.mxu0
        %v3772 = vld [vmem:[#allocation2 + $0x2] sm:$0xff]
        %v3773 = vld [vmem:[#allocation2 + $0xa] sm:$0xff]
        %v3774 = vld [vmem:[#allocation2 + $0x1a] sm:$0xff]
        %v3775 = vld [vmem:[#allocation2 + $0x22] sm:$0xff]
        %v3776 = vld [vmem:[#allocation2 + $0x32] sm:$0xff]
        %v3777 = vld [vmem:[#allocation2 + $0x3a] sm:$0xff]
        %v3778 = vld [vmem:[#allocation2 + $0x4a] sm:$0xff]
        %v3779 = vld [vmem:[#allocation2 + $0x52] sm:$0xff]
        %v3780 = vld [vmem:[#allocation2 + $0x62] sm:$0xff]
        %v3781 = vld [vmem:[#allocation2 + $0x6a] sm:$0xff]
        %v3782 = vld [vmem:[#allocation2 + $0x7a] sm:$0xff]
        %v3783 = vld [vmem:[#allocation2 + $0x82] sm:$0xff]
        %v3784 = vld [vmem:[#allocation2 + $0x92] sm:$0xff]
        %v3785 = vld [vmem:[#allocation2 + $0x9a] sm:$0xff]
        %v3786 = vld [vmem:[#allocation2 + $0xaa] sm:$0xff]
        %v3787 = vld [vmem:[#allocation2 + $0xb2] sm:$0xff]
        %v3788 = vld [vmem:[#allocation2 + $0xc2] sm:$0xff]
        %v3789 = vld [vmem:[#allocation2 + $0xca] sm:$0xff]
        %v3790 = vld [vmem:[#allocation2 + $0xda] sm:$0xff]
        %v3791 = vld [vmem:[#allocation2 + $0xe2] sm:$0xff]
        %v3792 = vld [vmem:[#allocation2 + $0xf2] sm:$0xff]
        %v3793 = vld [vmem:[#allocation2 + $0xfa] sm:$0xff]
        %v3794 = vld [vmem:[#allocation2 + $0x10a] sm:$0xff]
        %v3795 = vld [vmem:[#allocation2 + $0x112] sm:$0xff]
        %v3796 = vld [vmem:[#allocation2 + $0x122] sm:$0xff]
        %v3797 = vld [vmem:[#allocation2 + $0x12a] sm:$0xff]
        %v3798 = vld [vmem:[#allocation2 + $0x13a] sm:$0xff]
        %v3799 = vld [vmem:[#allocation2 + $0x142] sm:$0xff]
        %v3800 = vld [vmem:[#allocation2 + $0x152] sm:$0xff]
        %v3801 = vld [vmem:[#allocation2 + $0x15a] sm:$0xff]
        %v3802 = vld [vmem:[#allocation2 + $0x16a] sm:$0xff]
        %v3803 = vld [vmem:[#allocation2 + $0x172] sm:$0xff]
        %v3804 = vpack.c.bf16 %v3773, %v3772
        %v3805 = vpack.c.bf16 %v3775, %v3774
        %v3806 = vpack.c.bf16 %v3777, %v3776
        %v3807 = vpack.c.bf16 %v3779, %v3778
        %v3808 = vpack.c.bf16 %v3781, %v3780
        %v3809 = vpack.c.bf16 %v3783, %v3782
        %v3810 = vpack.c.bf16 %v3785, %v3784
        %v3811 = vpack.c.bf16 %v3787, %v3786
        %v3812 = vpack.c.bf16 %v3789, %v3788
        %v3813 = vpack.c.bf16 %v3791, %v3790
        %v3814 = vpack.c.bf16 %v3793, %v3792
        %v3815 = vpack.c.bf16 %v3795, %v3794
        %v3816 = vpack.c.bf16 %v3797, %v3796
        %v3817 = vpack.c.bf16 %v3799, %v3798
        %v3818 = vpack.c.bf16 %v3801, %v3800
        %v3819 = vpack.c.bf16 %v3803, %v3802
        %v3824 = vunpack.c.l.b16 %v3206
        %v3825 = vunpack.c.l.b16 %v3207
        %v3826 = vunpack.c.l.b16 %v3208
        %v3827 = vunpack.c.l.b16 %v3209
        %v3828 = vpack.c.b16 %v3825, %v3824
        %v3829 = vpack.c.b16 %v3827, %v3826
        %v3833 = vsel %vm3109, %v3804, 0
        %v3836 = vsel %vm3109, %v3805, 0
        %v3839 = vsel %vm3109, %v3806, 0
        %v3842 = vsel %vm3109, %v3807, 0
        %v3845 = vsel %vm3109, %v3808, 0
        %v3848 = vsel %vm3109, %v3809, 0
        %v3851 = vsel %vm3109, %v3810, 0
        %v3854 = vsel %vm3109, %v3811, 0
        %v3857 = vsel %vm3109, %v3812, 0
        %v3860 = vsel %vm3109, %v3813, 0
        %v3863 = vsel %vm3109, %v3814, 0
        %v3866 = vsel %vm3109, %v3815, 0
        %v3869 = vsel %vm3109, %v3816, 0
        %v3872 = vsel %vm3109, %v3817, 0
        %v3875 = vsel %vm3109, %v3818, 0
        %v3878 = vsel %vm3109, %v3819, 0
        %3880 = vmatprep.subr.bf16.mxu0 0
        %3881 = vmatpush1.bf16.msra.mxu0 0
        %3882 = vmatprep.subr.bf16.mxu0 0
        %3883 = vmatpush1.bf16.msra.mxu0 0
        %3884 = vmatprep.subr.bf16.mxu0 0
        %3885 = vmatpush1.bf16.msra.mxu0 0
        %3886 = vmatprep.subr.bf16.mxu0 0
        %3887 = vmatpush1.bf16.msra.mxu0 0
        %3888 = vmatprep.subr.bf16.mxu0 0
        %3889 = vmatpush1.bf16.msra.mxu0 0
        %3890 = vmatprep.subr.bf16.mxu0 0
        %3891 = vmatpush1.bf16.msra.mxu0 0
        %3892 = vmatprep.subr.bf16.mxu0 0
        %3893 = vmatpush1.bf16.msra.mxu0 %v3829
        %3894 = vmatprep.subr.bf16.mxu0 0
        %3895 = vmatpush1.bf16.msra.mxu0 %v3828
        %3896 = vmatprep.subr.bf16.mxu0 0
        %3897 = vmatpush2.bf16.msra.mxu0 0
        %3898 = vmatprep.subr.bf16.mxu0 0
        %3899 = vmatpush2.bf16.msra.mxu0 0
        %3900 = vmatprep.subr.bf16.mxu0 0
        %3901 = vmatpush2.bf16.msra.mxu0 0
        %3902 = vmatprep.subr.bf16.mxu0 0
        %3903 = vmatpush2.bf16.msra.mxu0 0
        %3904 = vmatprep.subr.bf16.mxu0 0
        %3905 = vmatpush2.bf16.msra.mxu0 0
        %3906 = vmatprep.subr.bf16.mxu0 0
        %3907 = vmatpush2.bf16.msra.mxu0 0
        %3908 = vmatprep.subr.bf16.mxu0 0
        %3909 = vmatpush2.bf16.msra.mxu0 0
        %3910 = vmatprep.subr.bf16.mxu0 0
        %3911 = vmatpush2.bf16.msra.mxu0 0
        %3912 = vmatprep.mubr.bf16.mxu0 0
        %3913 = vmatmul.mubr.bf16.gmra.mxu0 %v3833
        %v3914 = vpop.f32.mrf.mxu0
        %v3915 = vadd.f32 0.0, %v3914
        %v3916 = vpop.f32.mrf.mxu0
        %v3917 = vpop.f32.mrf.mxu0
        %v3918 = vadd.f32 0.0, %v3917
        %v3919 = vpop.f32.mrf.mxu0
        %3920 = vmatprep.mubr.bf16.mxu0 0
        %3921 = vmatmul.mubr.bf16.gmra.mxu0 %v3836
        %v3922 = vpop.f32.mrf.mxu0
        %v3923 = vadd.f32 0.0, %v3922
        %v3924 = vpop.f32.mrf.mxu0
        %v3925 = vpop.f32.mrf.mxu0
        %v3926 = vadd.f32 0.0, %v3925
        %v3927 = vpop.f32.mrf.mxu0
        %3928 = vmatprep.mubr.bf16.mxu0 0
        %3929 = vmatmul.mubr.bf16.gmra.mxu0 %v3839
        %v3930 = vpop.f32.mrf.mxu0
        %v3931 = vadd.f32 0.0, %v3930
        %v3932 = vpop.f32.mrf.mxu0
        %v3933 = vpop.f32.mrf.mxu0
        %v3934 = vadd.f32 0.0, %v3933
        %v3935 = vpop.f32.mrf.mxu0
        %3936 = vmatprep.mubr.bf16.mxu0 0
        %3937 = vmatmul.mubr.bf16.gmra.mxu0 %v3842
        %v3938 = vpop.f32.mrf.mxu0
        %v3939 = vadd.f32 0.0, %v3938
        %v3940 = vpop.f32.mrf.mxu0
        %v3941 = vpop.f32.mrf.mxu0
        %v3942 = vadd.f32 0.0, %v3941
        %v3943 = vpop.f32.mrf.mxu0
        %3944 = vmatprep.mubr.bf16.mxu0 0
        %3945 = vmatmul.mubr.bf16.gmra.mxu0 %v3845
        %v3946 = vpop.f32.mrf.mxu0
        %v3947 = vadd.f32 0.0, %v3946
        %v3948 = vpop.f32.mrf.mxu0
        %v3949 = vpop.f32.mrf.mxu0
        %v3950 = vadd.f32 0.0, %v3949
        %v3951 = vpop.f32.mrf.mxu0
        %3952 = vmatprep.mubr.bf16.mxu0 0
        %3953 = vmatmul.mubr.bf16.gmra.mxu0 %v3848
        %v3954 = vpop.f32.mrf.mxu0
        %v3955 = vadd.f32 0.0, %v3954
        %v3956 = vpop.f32.mrf.mxu0
        %v3957 = vpop.f32.mrf.mxu0
        %v3958 = vadd.f32 0.0, %v3957
        %v3959 = vpop.f32.mrf.mxu0
        %3960 = vmatprep.mubr.bf16.mxu0 0
        %3961 = vmatmul.mubr.bf16.gmra.mxu0 %v3851
        %v3962 = vpop.f32.mrf.mxu0
        %v3963 = vadd.f32 0.0, %v3962
        %v3964 = vpop.f32.mrf.mxu0
        %v3965 = vpop.f32.mrf.mxu0
        %v3966 = vadd.f32 0.0, %v3965
        %v3967 = vpop.f32.mrf.mxu0
        %3968 = vmatprep.mubr.bf16.mxu0 0
        %3969 = vmatmul.mubr.bf16.gmra.mxu0 %v3854
        %v3970 = vpop.f32.mrf.mxu0
        %v3971 = vadd.f32 0.0, %v3970
        %v3972 = vpop.f32.mrf.mxu0
        %v3973 = vpop.f32.mrf.mxu0
        %v3974 = vadd.f32 0.0, %v3973
        %v3975 = vpop.f32.mrf.mxu0
        %3976 = vmatprep.mubr.bf16.mxu0 0
        %3977 = vmatmul.mubr.bf16.gmra.mxu0 %v3857
        %v3978 = vpop.f32.mrf.mxu0
        %v3979 = vadd.f32 0.0, %v3978
        %v3980 = vpop.f32.mrf.mxu0
        %v3981 = vpop.f32.mrf.mxu0
        %v3982 = vadd.f32 0.0, %v3981
        %v3983 = vpop.f32.mrf.mxu0
        %3984 = vmatprep.mubr.bf16.mxu0 0
        %3985 = vmatmul.mubr.bf16.gmra.mxu0 %v3860
        %v3986 = vpop.f32.mrf.mxu0
        %v3987 = vadd.f32 0.0, %v3986
        %v3988 = vpop.f32.mrf.mxu0
        %v3989 = vpop.f32.mrf.mxu0
        %v3990 = vadd.f32 0.0, %v3989
        %v3991 = vpop.f32.mrf.mxu0
        %3992 = vmatprep.mubr.bf16.mxu0 0
        %3993 = vmatmul.mubr.bf16.gmra.mxu0 %v3863
        %v3994 = vpop.f32.mrf.mxu0
        %v3995 = vadd.f32 0.0, %v3994
        %v3996 = vpop.f32.mrf.mxu0
        %v3997 = vpop.f32.mrf.mxu0
        %v3998 = vadd.f32 0.0, %v3997
        %v3999 = vpop.f32.mrf.mxu0
        %4000 = vmatprep.mubr.bf16.mxu0 0
        %4001 = vmatmul.mubr.bf16.gmra.mxu0 %v3866
        %v4002 = vpop.f32.mrf.mxu0
        %v4003 = vadd.f32 0.0, %v4002
        %v4004 = vpop.f32.mrf.mxu0
        %v4005 = vpop.f32.mrf.mxu0
        %v4006 = vadd.f32 0.0, %v4005
        %v4007 = vpop.f32.mrf.mxu0
        %4008 = vmatprep.mubr.bf16.mxu0 0
        %4009 = vmatmul.mubr.bf16.gmra.mxu0 %v3869
        %v4010 = vpop.f32.mrf.mxu0
        %v4011 = vadd.f32 0.0, %v4010
        %v4012 = vpop.f32.mrf.mxu0
        %v4013 = vpop.f32.mrf.mxu0
        %v4014 = vadd.f32 0.0, %v4013
        %v4015 = vpop.f32.mrf.mxu0
        %4016 = vmatprep.mubr.bf16.mxu0 0
        %4017 = vmatmul.mubr.bf16.gmra.mxu0 %v3872
        %v4018 = vpop.f32.mrf.mxu0
        %v4019 = vadd.f32 0.0, %v4018
        %v4020 = vpop.f32.mrf.mxu0
        %v4021 = vpop.f32.mrf.mxu0
        %v4022 = vadd.f32 0.0, %v4021
        %v4023 = vpop.f32.mrf.mxu0
        %4024 = vmatprep.mubr.bf16.mxu0 0
        %4025 = vmatmul.mubr.bf16.gmra.mxu0 %v3875
        %v4026 = vpop.f32.mrf.mxu0
        %v4027 = vadd.f32 0.0, %v4026
        %v4028 = vpop.f32.mrf.mxu0
        %v4029 = vpop.f32.mrf.mxu0
        %v4030 = vadd.f32 0.0, %v4029
        %v4031 = vpop.f32.mrf.mxu0
        %4032 = vmatprep.mubr.bf16.mxu0 0
        %4033 = vmatmul.mubr.bf16.gmra.mxu0 %v3878
        %v4034 = vpop.f32.mrf.mxu0
        %v4035 = vadd.f32 0.0, %v4034
        %v4036 = vpop.f32.mrf.mxu0
        %v4037 = vpop.f32.mrf.mxu0
        %v4038 = vadd.f32 0.0, %v4037
        %v4039 = vpop.f32.mrf.mxu0
        %4040 = vdwg.mxu0
        %v4041 = vadd.f32 %v3646, %v3915
        %v4042 = vadd.f32 %v3649, %v3918
        %v4043 = vadd.f32 %v3654, %v3923
        %v4044 = vadd.f32 %v3657, %v3926
        %v4045 = vadd.f32 %v3662, %v3931
        %v4046 = vadd.f32 %v3665, %v3934
        %v4047 = vadd.f32 %v3670, %v3939
        %v4048 = vadd.f32 %v3673, %v3942
        %v4049 = vadd.f32 %v3678, %v3947
        %v4050 = vadd.f32 %v3681, %v3950
        %v4051 = vadd.f32 %v3686, %v3955
        %v4052 = vadd.f32 %v3689, %v3958
        %v4053 = vadd.f32 %v3694, %v3963
        %v4054 = vadd.f32 %v3697, %v3966
        %v4055 = vadd.f32 %v3702, %v3971
        %v4056 = vadd.f32 %v3705, %v3974
        %v4057 = vadd.f32 %v3710, %v3979
        %v4058 = vadd.f32 %v3713, %v3982
        %v4059 = vadd.f32 %v3718, %v3987
        %v4060 = vadd.f32 %v3721, %v3990
        %v4061 = vadd.f32 %v3726, %v3995
        %v4062 = vadd.f32 %v3729, %v3998
        %v4063 = vadd.f32 %v3734, %v4003
        %v4064 = vadd.f32 %v3737, %v4006
        %v4065 = vadd.f32 %v3742, %v4011
        %v4066 = vadd.f32 %v3745, %v4014
        %v4067 = vadd.f32 %v3750, %v4019
        %v4068 = vadd.f32 %v3753, %v4022
        %v4069 = vadd.f32 %v3758, %v4027
        %v4070 = vadd.f32 %v3761, %v4030
        %v4071 = vadd.f32 %v3766, %v4035
        %v4072 = vadd.f32 %v3769, %v4038
        %v4073 = vld [vmem:[%s3165] sm:$0xff]
        %v4074 = vld [vmem:[%s3165 + $0x8] sm:$0xff]
        %v4075 = vld [vmem:[%s3165 + $0x18] sm:$0xff]
        %v4076 = vld [vmem:[%s3165 + $0x20] sm:$0xff]
        %v4077 = vld [vmem:[%s3165 + $0x30] sm:$0xff]
        %v4078 = vld [vmem:[%s3165 + $0x38] sm:$0xff]
        %v4079 = vld [vmem:[%s3165 + $0x48] sm:$0xff]
        %v4080 = vld [vmem:[%s3165 + $0x50] sm:$0xff]
        %v4081 = vld [vmem:[%s3165 + $0x60] sm:$0xff]
        %v4082 = vld [vmem:[%s3165 + $0x68] sm:$0xff]
        %v4083 = vld [vmem:[%s3165 + $0x78] sm:$0xff]
        %v4084 = vld [vmem:[%s3165 + $0x80] sm:$0xff]
        %v4085 = vld [vmem:[%s3165 + $0x90] sm:$0xff]
        %v4086 = vld [vmem:[%s3165 + $0x98] sm:$0xff]
        %v4087 = vld [vmem:[%s3165 + $0xa8] sm:$0xff]
        %v4088 = vld [vmem:[%s3165 + $0xb0] sm:$0xff]
        %v4089 = vld [vmem:[%s3165 + $0xc0] sm:$0xff]
        %v4090 = vld [vmem:[%s3165 + $0xc8] sm:$0xff]
        %v4091 = vld [vmem:[%s3165 + $0xd8] sm:$0xff]
        %v4092 = vld [vmem:[%s3165 + $0xe0] sm:$0xff]
        %v4093 = vld [vmem:[%s3165 + $0xf0] sm:$0xff]
        %v4094 = vld [vmem:[%s3165 + $0xf8] sm:$0xff]
        %v4095 = vld [vmem:[%s3165 + $0x108] sm:$0xff]
        %v4096 = vld [vmem:[%s3165 + $0x110] sm:$0xff]
        %v4097 = vld [vmem:[%s3165 + $0x120] sm:$0xff]
        %v4098 = vld [vmem:[%s3165 + $0x128] sm:$0xff]
        %v4099 = vld [vmem:[%s3165 + $0x138] sm:$0xff]
        %v4100 = vld [vmem:[%s3165 + $0x140] sm:$0xff]
        %v4101 = vld [vmem:[%s3165 + $0x150] sm:$0xff]
        %v4102 = vld [vmem:[%s3165 + $0x158] sm:$0xff]
        %v4103 = vld [vmem:[%s3165 + $0x168] sm:$0xff]
        %v4104 = vld [vmem:[%s3165 + $0x170] sm:$0xff]
        %v4105 = vpack.c.bf16 %v4074, %v4073
        %v4106 = vpack.c.bf16 %v4076, %v4075
        %v4107 = vpack.c.bf16 %v4078, %v4077
        %v4108 = vpack.c.bf16 %v4080, %v4079
        %v4109 = vpack.c.bf16 %v4082, %v4081
        %v4110 = vpack.c.bf16 %v4084, %v4083
        %v4111 = vpack.c.bf16 %v4086, %v4085
        %v4112 = vpack.c.bf16 %v4088, %v4087
        %v4113 = vpack.c.bf16 %v4090, %v4089
        %v4114 = vpack.c.bf16 %v4092, %v4091
        %v4115 = vpack.c.bf16 %v4094, %v4093
        %v4116 = vpack.c.bf16 %v4096, %v4095
        %v4117 = vpack.c.bf16 %v4098, %v4097
        %v4118 = vpack.c.bf16 %v4100, %v4099
        %v4119 = vpack.c.bf16 %v4102, %v4101
        %v4120 = vpack.c.bf16 %v4104, %v4103
        %v4125 = vunpack.c.l.b16 %v3210
        %v4126 = vunpack.c.l.b16 %v3211
        %v4127 = vunpack.c.l.b16 %v3212
        %v4128 = vunpack.c.l.b16 %v3213
        %v4129 = vpack.c.b16 %v4126, %v4125
        %v4130 = vpack.c.b16 %v4128, %v4127
        %v4134 = vsel %vm3109, %v4105, 0
        %v4137 = vsel %vm3109, %v4106, 0
        %v4140 = vsel %vm3109, %v4107, 0
        %v4143 = vsel %vm3109, %v4108, 0
        %v4146 = vsel %vm3109, %v4109, 0
        %v4149 = vsel %vm3109, %v4110, 0
        %v4152 = vsel %vm3109, %v4111, 0
        %v4155 = vsel %vm3109, %v4112, 0
        %v4158 = vsel %vm3109, %v4113, 0
        %v4161 = vsel %vm3109, %v4114, 0
        %v4164 = vsel %vm3109, %v4115, 0
        %v4167 = vsel %vm3109, %v4116, 0
        %v4170 = vsel %vm3109, %v4117, 0
        %v4173 = vsel %vm3109, %v4118, 0
        %v4176 = vsel %vm3109, %v4119, 0
        %v4179 = vsel %vm3109, %v4120, 0
        %4181 = vmatprep.subr.bf16.mxu0 0
        %4182 = vmatpush1.bf16.msra.mxu0 0
        %4183 = vmatprep.subr.bf16.mxu0 0
        %4184 = vmatpush1.bf16.msra.mxu0 0
        %4185 = vmatprep.subr.bf16.mxu0 0
        %4186 = vmatpush1.bf16.msra.mxu0 0
        %4187 = vmatprep.subr.bf16.mxu0 0
        %4188 = vmatpush1.bf16.msra.mxu0 0
        %4189 = vmatprep.subr.bf16.mxu0 0
        %4190 = vmatpush1.bf16.msra.mxu0 0
        %4191 = vmatprep.subr.bf16.mxu0 0
        %4192 = vmatpush1.bf16.msra.mxu0 0
        %4193 = vmatprep.subr.bf16.mxu0 0
        %4194 = vmatpush1.bf16.msra.mxu0 %v4130
        %4195 = vmatprep.subr.bf16.mxu0 0
        %4196 = vmatpush1.bf16.msra.mxu0 %v4129
        %4197 = vmatprep.subr.bf16.mxu0 0
        %4198 = vmatpush2.bf16.msra.mxu0 0
        %4199 = vmatprep.subr.bf16.mxu0 0
        %4200 = vmatpush2.bf16.msra.mxu0 0
        %4201 = vmatprep.subr.bf16.mxu0 0
        %4202 = vmatpush2.bf16.msra.mxu0 0
        %4203 = vmatprep.subr.bf16.mxu0 0
        %4204 = vmatpush2.bf16.msra.mxu0 0
        %4205 = vmatprep.subr.bf16.mxu0 0
        %4206 = vmatpush2.bf16.msra.mxu0 0
        %4207 = vmatprep.subr.bf16.mxu0 0
        %4208 = vmatpush2.bf16.msra.mxu0 0
        %4209 = vmatprep.subr.bf16.mxu0 0
        %4210 = vmatpush2.bf16.msra.mxu0 0
        %4211 = vmatprep.subr.bf16.mxu0 0
        %4212 = vmatpush2.bf16.msra.mxu0 0
        %4213 = vmatprep.mubr.bf16.mxu0 0
        %4214 = vmatmul.mubr.bf16.gmra.mxu0 %v4134
        %v4215 = vpop.f32.mrf.mxu0
        %v4216 = vadd.f32 0.0, %v4215
        %v4217 = vpop.f32.mrf.mxu0
        %v4218 = vpop.f32.mrf.mxu0
        %v4219 = vadd.f32 0.0, %v4218
        %v4220 = vpop.f32.mrf.mxu0
        %4221 = vmatprep.mubr.bf16.mxu0 0
        %4222 = vmatmul.mubr.bf16.gmra.mxu0 %v4137
        %v4223 = vpop.f32.mrf.mxu0
        %v4224 = vadd.f32 0.0, %v4223
        %v4225 = vpop.f32.mrf.mxu0
        %v4226 = vpop.f32.mrf.mxu0
        %v4227 = vadd.f32 0.0, %v4226
        %v4228 = vpop.f32.mrf.mxu0
        %4229 = vmatprep.mubr.bf16.mxu0 0
        %4230 = vmatmul.mubr.bf16.gmra.mxu0 %v4140
        %v4231 = vpop.f32.mrf.mxu0
        %v4232 = vadd.f32 0.0, %v4231
        %v4233 = vpop.f32.mrf.mxu0
        %v4234 = vpop.f32.mrf.mxu0
        %v4235 = vadd.f32 0.0, %v4234
        %v4236 = vpop.f32.mrf.mxu0
        %4237 = vmatprep.mubr.bf16.mxu0 0
        %4238 = vmatmul.mubr.bf16.gmra.mxu0 %v4143
        %v4239 = vpop.f32.mrf.mxu0
        %v4240 = vadd.f32 0.0, %v4239
        %v4241 = vpop.f32.mrf.mxu0
        %v4242 = vpop.f32.mrf.mxu0
        %v4243 = vadd.f32 0.0, %v4242
        %v4244 = vpop.f32.mrf.mxu0
        %4245 = vmatprep.mubr.bf16.mxu0 0
        %4246 = vmatmul.mubr.bf16.gmra.mxu0 %v4146
        %v4247 = vpop.f32.mrf.mxu0
        %v4248 = vadd.f32 0.0, %v4247
        %v4249 = vpop.f32.mrf.mxu0
        %v4250 = vpop.f32.mrf.mxu0
        %v4251 = vadd.f32 0.0, %v4250
        %v4252 = vpop.f32.mrf.mxu0
        %4253 = vmatprep.mubr.bf16.mxu0 0
        %4254 = vmatmul.mubr.bf16.gmra.mxu0 %v4149
        %v4255 = vpop.f32.mrf.mxu0
        %v4256 = vadd.f32 0.0, %v4255
        %v4257 = vpop.f32.mrf.mxu0
        %v4258 = vpop.f32.mrf.mxu0
        %v4259 = vadd.f32 0.0, %v4258
        %v4260 = vpop.f32.mrf.mxu0
        %4261 = vmatprep.mubr.bf16.mxu0 0
        %4262 = vmatmul.mubr.bf16.gmra.mxu0 %v4152
        %v4263 = vpop.f32.mrf.mxu0
        %v4264 = vadd.f32 0.0, %v4263
        %v4265 = vpop.f32.mrf.mxu0
        %v4266 = vpop.f32.mrf.mxu0
        %v4267 = vadd.f32 0.0, %v4266
        %v4268 = vpop.f32.mrf.mxu0
        %4269 = vmatprep.mubr.bf16.mxu0 0
        %4270 = vmatmul.mubr.bf16.gmra.mxu0 %v4155
        %v4271 = vpop.f32.mrf.mxu0
        %v4272 = vadd.f32 0.0, %v4271
        %v4273 = vpop.f32.mrf.mxu0
        %v4274 = vpop.f32.mrf.mxu0
        %v4275 = vadd.f32 0.0, %v4274
        %v4276 = vpop.f32.mrf.mxu0
        %4277 = vmatprep.mubr.bf16.mxu0 0
        %4278 = vmatmul.mubr.bf16.gmra.mxu0 %v4158
        %v4279 = vpop.f32.mrf.mxu0
        %v4280 = vadd.f32 0.0, %v4279
        %v4281 = vpop.f32.mrf.mxu0
        %v4282 = vpop.f32.mrf.mxu0
        %v4283 = vadd.f32 0.0, %v4282
        %v4284 = vpop.f32.mrf.mxu0
        %4285 = vmatprep.mubr.bf16.mxu0 0
        %4286 = vmatmul.mubr.bf16.gmra.mxu0 %v4161
        %v4287 = vpop.f32.mrf.mxu0
        %v4288 = vadd.f32 0.0, %v4287
        %v4289 = vpop.f32.mrf.mxu0
        %v4290 = vpop.f32.mrf.mxu0
        %v4291 = vadd.f32 0.0, %v4290
        %v4292 = vpop.f32.mrf.mxu0
        %4293 = vmatprep.mubr.bf16.mxu0 0
        %4294 = vmatmul.mubr.bf16.gmra.mxu0 %v4164
        %v4295 = vpop.f32.mrf.mxu0
        %v4296 = vadd.f32 0.0, %v4295
        %v4297 = vpop.f32.mrf.mxu0
        %v4298 = vpop.f32.mrf.mxu0
        %v4299 = vadd.f32 0.0, %v4298
        %v4300 = vpop.f32.mrf.mxu0
        %4301 = vmatprep.mubr.bf16.mxu0 0
        %4302 = vmatmul.mubr.bf16.gmra.mxu0 %v4167
        %v4303 = vpop.f32.mrf.mxu0
        %v4304 = vadd.f32 0.0, %v4303
        %v4305 = vpop.f32.mrf.mxu0
        %v4306 = vpop.f32.mrf.mxu0
        %v4307 = vadd.f32 0.0, %v4306
        %v4308 = vpop.f32.mrf.mxu0
        %4309 = vmatprep.mubr.bf16.mxu0 0
        %4310 = vmatmul.mubr.bf16.gmra.mxu0 %v4170
        %v4311 = vpop.f32.mrf.mxu0
        %v4312 = vadd.f32 0.0, %v4311
        %v4313 = vpop.f32.mrf.mxu0
        %v4314 = vpop.f32.mrf.mxu0
        %v4315 = vadd.f32 0.0, %v4314
        %v4316 = vpop.f32.mrf.mxu0
        %4317 = vmatprep.mubr.bf16.mxu0 0
        %4318 = vmatmul.mubr.bf16.gmra.mxu0 %v4173
        %v4319 = vpop.f32.mrf.mxu0
        %v4320 = vadd.f32 0.0, %v4319
        %v4321 = vpop.f32.mrf.mxu0
        %v4322 = vpop.f32.mrf.mxu0
        %v4323 = vadd.f32 0.0, %v4322
        %v4324 = vpop.f32.mrf.mxu0
        %4325 = vmatprep.mubr.bf16.mxu0 0
        %4326 = vmatmul.mubr.bf16.gmra.mxu0 %v4176
        %v4327 = vpop.f32.mrf.mxu0
        %v4328 = vadd.f32 0.0, %v4327
        %v4329 = vpop.f32.mrf.mxu0
        %v4330 = vpop.f32.mrf.mxu0
        %v4331 = vadd.f32 0.0, %v4330
        %v4332 = vpop.f32.mrf.mxu0
        %4333 = vmatprep.mubr.bf16.mxu0 0
        %4334 = vmatmul.mubr.bf16.gmra.mxu0 %v4179
        %v4335 = vpop.f32.mrf.mxu0
        %v4336 = vadd.f32 0.0, %v4335
        %v4337 = vpop.f32.mrf.mxu0
        %v4338 = vpop.f32.mrf.mxu0
        %v4339 = vadd.f32 0.0, %v4338
        %v4340 = vpop.f32.mrf.mxu0
        %4341 = vdwg.mxu0
        %v4342 = vadd.f32 %v4041, %v4216
        %v4343 = vadd.f32 %v4042, %v4219
        %v4344 = vadd.f32 %v4043, %v4224
        %v4345 = vadd.f32 %v4044, %v4227
        %v4346 = vadd.f32 %v4045, %v4232
        %v4347 = vadd.f32 %v4046, %v4235
        %v4348 = vadd.f32 %v4047, %v4240
        %v4349 = vadd.f32 %v4048, %v4243
        %v4350 = vadd.f32 %v4049, %v4248
        %v4351 = vadd.f32 %v4050, %v4251
        %v4352 = vadd.f32 %v4051, %v4256
        %v4353 = vadd.f32 %v4052, %v4259
        %v4354 = vadd.f32 %v4053, %v4264
        %v4355 = vadd.f32 %v4054, %v4267
        %v4356 = vadd.f32 %v4055, %v4272
        %v4357 = vadd.f32 %v4056, %v4275
        %v4358 = vadd.f32 %v4057, %v4280
        %v4359 = vadd.f32 %v4058, %v4283
        %v4360 = vadd.f32 %v4059, %v4288
        %v4361 = vadd.f32 %v4060, %v4291
        %v4362 = vadd.f32 %v4061, %v4296
        %v4363 = vadd.f32 %v4062, %v4299
        %v4364 = vadd.f32 %v4063, %v4304
        %v4365 = vadd.f32 %v4064, %v4307
        %v4366 = vadd.f32 %v4065, %v4312
        %v4367 = vadd.f32 %v4066, %v4315
        %v4368 = vadd.f32 %v4067, %v4320
        %v4369 = vadd.f32 %v4068, %v4323
        %v4370 = vadd.f32 %v4069, %v4328
        %v4371 = vadd.f32 %v4070, %v4331
        %v4372 = vadd.f32 %v4071, %v4336
        %v4373 = vadd.f32 %v4072, %v4339
        %v4374 = vld [vmem:[%s3165 + $0x1] sm:$0xff]
        %v4375 = vld [vmem:[%s3165 + $0x9] sm:$0xff]
        %v4376 = vld [vmem:[%s3165 + $0x19] sm:$0xff]
        %v4377 = vld [vmem:[%s3165 + $0x21] sm:$0xff]
        %v4378 = vld [vmem:[%s3165 + $0x31] sm:$0xff]
        %v4379 = vld [vmem:[%s3165 + $0x39] sm:$0xff]
        %v4380 = vld [vmem:[%s3165 + $0x49] sm:$0xff]
        %v4381 = vld [vmem:[%s3165 + $0x51] sm:$0xff]
        %v4382 = vld [vmem:[%s3165 + $0x61] sm:$0xff]
        %v4383 = vld [vmem:[%s3165 + $0x69] sm:$0xff]
        %v4384 = vld [vmem:[%s3165 + $0x79] sm:$0xff]
        %v4385 = vld [vmem:[%s3165 + $0x81] sm:$0xff]
        %v4386 = vld [vmem:[%s3165 + $0x91] sm:$0xff]
        %v4387 = vld [vmem:[%s3165 + $0x99] sm:$0xff]
        %v4388 = vld [vmem:[%s3165 + $0xa9] sm:$0xff]
        %v4389 = vld [vmem:[%s3165 + $0xb1] sm:$0xff]
        %v4390 = vld [vmem:[%s3165 + $0xc1] sm:$0xff]
        %v4391 = vld [vmem:[%s3165 + $0xc9] sm:$0xff]
        %v4392 = vld [vmem:[%s3165 + $0xd9] sm:$0xff]
        %v4393 = vld [vmem:[%s3165 + $0xe1] sm:$0xff]
        %v4394 = vld [vmem:[%s3165 + $0xf1] sm:$0xff]
        %v4395 = vld [vmem:[%s3165 + $0xf9] sm:$0xff]
        %v4396 = vld [vmem:[%s3165 + $0x109] sm:$0xff]
        %v4397 = vld [vmem:[%s3165 + $0x111] sm:$0xff]
        %v4398 = vld [vmem:[%s3165 + $0x121] sm:$0xff]
        %v4399 = vld [vmem:[%s3165 + $0x129] sm:$0xff]
        %v4400 = vld [vmem:[%s3165 + $0x139] sm:$0xff]
        %v4401 = vld [vmem:[%s3165 + $0x141] sm:$0xff]
        %v4402 = vld [vmem:[%s3165 + $0x151] sm:$0xff]
        %v4403 = vld [vmem:[%s3165 + $0x159] sm:$0xff]
        %v4404 = vld [vmem:[%s3165 + $0x169] sm:$0xff]
        %v4405 = vld [vmem:[%s3165 + $0x171] sm:$0xff]
        %v4406 = vpack.c.bf16 %v4375, %v4374
        %v4407 = vpack.c.bf16 %v4377, %v4376
        %v4408 = vpack.c.bf16 %v4379, %v4378
        %v4409 = vpack.c.bf16 %v4381, %v4380
        %v4410 = vpack.c.bf16 %v4383, %v4382
        %v4411 = vpack.c.bf16 %v4385, %v4384
        %v4412 = vpack.c.bf16 %v4387, %v4386
        %v4413 = vpack.c.bf16 %v4389, %v4388
        %v4414 = vpack.c.bf16 %v4391, %v4390
        %v4415 = vpack.c.bf16 %v4393, %v4392
        %v4416 = vpack.c.bf16 %v4395, %v4394
        %v4417 = vpack.c.bf16 %v4397, %v4396
        %v4418 = vpack.c.bf16 %v4399, %v4398
        %v4419 = vpack.c.bf16 %v4401, %v4400
        %v4420 = vpack.c.bf16 %v4403, %v4402
        %v4421 = vpack.c.bf16 %v4405, %v4404
        %v4426 = vunpack.c.l.b16 %v3214
        %v4427 = vunpack.c.l.b16 %v3215
        %v4428 = vunpack.c.l.b16 %v3216
        %v4429 = vunpack.c.l.b16 %v3217
        %v4430 = vpack.c.b16 %v4427, %v4426
        %v4431 = vpack.c.b16 %v4429, %v4428
        %v4435 = vsel %vm3109, %v4406, 0
        %v4438 = vsel %vm3109, %v4407, 0
        %v4441 = vsel %vm3109, %v4408, 0
        %v4444 = vsel %vm3109, %v4409, 0
        %v4447 = vsel %vm3109, %v4410, 0
        %v4450 = vsel %vm3109, %v4411, 0
        %v4453 = vsel %vm3109, %v4412, 0
        %v4456 = vsel %vm3109, %v4413, 0
        %v4459 = vsel %vm3109, %v4414, 0
        %v4462 = vsel %vm3109, %v4415, 0
        %v4465 = vsel %vm3109, %v4416, 0
        %v4468 = vsel %vm3109, %v4417, 0
        %v4471 = vsel %vm3109, %v4418, 0
        %v4474 = vsel %vm3109, %v4419, 0
        %v4477 = vsel %vm3109, %v4420, 0
        %v4480 = vsel %vm3109, %v4421, 0
        %4482 = vmatprep.subr.bf16.mxu0 0
        %4483 = vmatpush1.bf16.msra.mxu0 0
        %4484 = vmatprep.subr.bf16.mxu0 0
        %4485 = vmatpush1.bf16.msra.mxu0 0
        %4486 = vmatprep.subr.bf16.mxu0 0
        %4487 = vmatpush1.bf16.msra.mxu0 0
        %4488 = vmatprep.subr.bf16.mxu0 0
        %4489 = vmatpush1.bf16.msra.mxu0 0
        %4490 = vmatprep.subr.bf16.mxu0 0
        %4491 = vmatpush1.bf16.msra.mxu0 0
        %4492 = vmatprep.subr.bf16.mxu0 0
        %4493 = vmatpush1.bf16.msra.mxu0 0
        %4494 = vmatprep.subr.bf16.mxu0 0
        %4495 = vmatpush1.bf16.msra.mxu0 %v4431
        %4496 = vmatprep.subr.bf16.mxu0 0
        %4497 = vmatpush1.bf16.msra.mxu0 %v4430
        %4498 = vmatprep.subr.bf16.mxu0 0
        %4499 = vmatpush2.bf16.msra.mxu0 0
        %4500 = vmatprep.subr.bf16.mxu0 0
        %4501 = vmatpush2.bf16.msra.mxu0 0
        %4502 = vmatprep.subr.bf16.mxu0 0
        %4503 = vmatpush2.bf16.msra.mxu0 0
        %4504 = vmatprep.subr.bf16.mxu0 0
        %4505 = vmatpush2.bf16.msra.mxu0 0
        %4506 = vmatprep.subr.bf16.mxu0 0
        %4507 = vmatpush2.bf16.msra.mxu0 0
        %4508 = vmatprep.subr.bf16.mxu0 0
        %4509 = vmatpush2.bf16.msra.mxu0 0
        %4510 = vmatprep.subr.bf16.mxu0 0
        %4511 = vmatpush2.bf16.msra.mxu0 0
        %4512 = vmatprep.subr.bf16.mxu0 0
        %4513 = vmatpush2.bf16.msra.mxu0 0
        %4514 = vmatprep.mubr.bf16.mxu0 0
        %4515 = vmatmul.mubr.bf16.gmra.mxu0 %v4435
        %v4516 = vpop.f32.mrf.mxu0
        %v4517 = vadd.f32 0.0, %v4516
        %v4518 = vpop.f32.mrf.mxu0
        %v4519 = vpop.f32.mrf.mxu0
        %v4520 = vadd.f32 0.0, %v4519
        %v4521 = vpop.f32.mrf.mxu0
        %4522 = vmatprep.mubr.bf16.mxu0 0
        %4523 = vmatmul.mubr.bf16.gmra.mxu0 %v4438
        %v4524 = vpop.f32.mrf.mxu0
        %v4525 = vadd.f32 0.0, %v4524
        %v4526 = vpop.f32.mrf.mxu0
        %v4527 = vpop.f32.mrf.mxu0
        %v4528 = vadd.f32 0.0, %v4527
        %v4529 = vpop.f32.mrf.mxu0
        %4530 = vmatprep.mubr.bf16.mxu0 0
        %4531 = vmatmul.mubr.bf16.gmra.mxu0 %v4441
        %v4532 = vpop.f32.mrf.mxu0
        %v4533 = vadd.f32 0.0, %v4532
        %v4534 = vpop.f32.mrf.mxu0
        %v4535 = vpop.f32.mrf.mxu0
        %v4536 = vadd.f32 0.0, %v4535
        %v4537 = vpop.f32.mrf.mxu0
        %4538 = vmatprep.mubr.bf16.mxu0 0
        %4539 = vmatmul.mubr.bf16.gmra.mxu0 %v4444
        %v4540 = vpop.f32.mrf.mxu0
        %v4541 = vadd.f32 0.0, %v4540
        %v4542 = vpop.f32.mrf.mxu0
        %v4543 = vpop.f32.mrf.mxu0
        %v4544 = vadd.f32 0.0, %v4543
        %v4545 = vpop.f32.mrf.mxu0
        %4546 = vmatprep.mubr.bf16.mxu0 0
        %4547 = vmatmul.mubr.bf16.gmra.mxu0 %v4447
        %v4548 = vpop.f32.mrf.mxu0
        %v4549 = vadd.f32 0.0, %v4548
        %v4550 = vpop.f32.mrf.mxu0
        %v4551 = vpop.f32.mrf.mxu0
        %v4552 = vadd.f32 0.0, %v4551
        %v4553 = vpop.f32.mrf.mxu0
        %4554 = vmatprep.mubr.bf16.mxu0 0
        %4555 = vmatmul.mubr.bf16.gmra.mxu0 %v4450
        %v4556 = vpop.f32.mrf.mxu0
        %v4557 = vadd.f32 0.0, %v4556
        %v4558 = vpop.f32.mrf.mxu0
        %v4559 = vpop.f32.mrf.mxu0
        %v4560 = vadd.f32 0.0, %v4559
        %v4561 = vpop.f32.mrf.mxu0
        %4562 = vmatprep.mubr.bf16.mxu0 0
        %4563 = vmatmul.mubr.bf16.gmra.mxu0 %v4453
        %v4564 = vpop.f32.mrf.mxu0
        %v4565 = vadd.f32 0.0, %v4564
        %v4566 = vpop.f32.mrf.mxu0
        %v4567 = vpop.f32.mrf.mxu0
        %v4568 = vadd.f32 0.0, %v4567
        %v4569 = vpop.f32.mrf.mxu0
        %4570 = vmatprep.mubr.bf16.mxu0 0
        %4571 = vmatmul.mubr.bf16.gmra.mxu0 %v4456
        %v4572 = vpop.f32.mrf.mxu0
        %v4573 = vadd.f32 0.0, %v4572
        %v4574 = vpop.f32.mrf.mxu0
        %v4575 = vpop.f32.mrf.mxu0
        %v4576 = vadd.f32 0.0, %v4575
        %v4577 = vpop.f32.mrf.mxu0
        %4578 = vmatprep.mubr.bf16.mxu0 0
        %4579 = vmatmul.mubr.bf16.gmra.mxu0 %v4459
        %v4580 = vpop.f32.mrf.mxu0
        %v4581 = vadd.f32 0.0, %v4580
        %v4582 = vpop.f32.mrf.mxu0
        %v4583 = vpop.f32.mrf.mxu0
        %v4584 = vadd.f32 0.0, %v4583
        %v4585 = vpop.f32.mrf.mxu0
        %4586 = vmatprep.mubr.bf16.mxu0 0
        %4587 = vmatmul.mubr.bf16.gmra.mxu0 %v4462
        %v4588 = vpop.f32.mrf.mxu0
        %v4589 = vadd.f32 0.0, %v4588
        %v4590 = vpop.f32.mrf.mxu0
        %v4591 = vpop.f32.mrf.mxu0
        %v4592 = vadd.f32 0.0, %v4591
        %v4593 = vpop.f32.mrf.mxu0
        %4594 = vmatprep.mubr.bf16.mxu0 0
        %4595 = vmatmul.mubr.bf16.gmra.mxu0 %v4465
        %v4596 = vpop.f32.mrf.mxu0
        %v4597 = vadd.f32 0.0, %v4596
        %v4598 = vpop.f32.mrf.mxu0
        %v4599 = vpop.f32.mrf.mxu0
        %v4600 = vadd.f32 0.0, %v4599
        %v4601 = vpop.f32.mrf.mxu0
        %4602 = vmatprep.mubr.bf16.mxu0 0
        %4603 = vmatmul.mubr.bf16.gmra.mxu0 %v4468
        %v4604 = vpop.f32.mrf.mxu0
        %v4605 = vadd.f32 0.0, %v4604
        %v4606 = vpop.f32.mrf.mxu0
        %v4607 = vpop.f32.mrf.mxu0
        %v4608 = vadd.f32 0.0, %v4607
        %v4609 = vpop.f32.mrf.mxu0
        %4610 = vmatprep.mubr.bf16.mxu0 0
        %4611 = vmatmul.mubr.bf16.gmra.mxu0 %v4471
        %v4612 = vpop.f32.mrf.mxu0
        %v4613 = vadd.f32 0.0, %v4612
        %v4614 = vpop.f32.mrf.mxu0
        %v4615 = vpop.f32.mrf.mxu0
        %v4616 = vadd.f32 0.0, %v4615
        %v4617 = vpop.f32.mrf.mxu0
        %4618 = vmatprep.mubr.bf16.mxu0 0
        %4619 = vmatmul.mubr.bf16.gmra.mxu0 %v4474
        %v4620 = vpop.f32.mrf.mxu0
        %v4621 = vadd.f32 0.0, %v4620
        %v4622 = vpop.f32.mrf.mxu0
        %v4623 = vpop.f32.mrf.mxu0
        %v4624 = vadd.f32 0.0, %v4623
        %v4625 = vpop.f32.mrf.mxu0
        %4626 = vmatprep.mubr.bf16.mxu0 0
        %4627 = vmatmul.mubr.bf16.gmra.mxu0 %v4477
        %v4628 = vpop.f32.mrf.mxu0
        %v4629 = vadd.f32 0.0, %v4628
        %v4630 = vpop.f32.mrf.mxu0
        %v4631 = vpop.f32.mrf.mxu0
        %v4632 = vadd.f32 0.0, %v4631
        %v4633 = vpop.f32.mrf.mxu0
        %4634 = vmatprep.mubr.bf16.mxu0 0
        %4635 = vmatmul.mubr.bf16.gmra.mxu0 %v4480
        %v4636 = vpop.f32.mrf.mxu0
        %v4637 = vadd.f32 0.0, %v4636
        %v4638 = vpop.f32.mrf.mxu0
        %v4639 = vpop.f32.mrf.mxu0
        %v4640 = vadd.f32 0.0, %v4639
        %v4641 = vpop.f32.mrf.mxu0
        %4642 = vdwg.mxu0
        %v4643 = vadd.f32 %v4342, %v4517
        %v4644 = vadd.f32 %v4343, %v4520
        %v4645 = vadd.f32 %v4344, %v4525
        %v4646 = vadd.f32 %v4345, %v4528
        %v4647 = vadd.f32 %v4346, %v4533
        %v4648 = vadd.f32 %v4347, %v4536
        %v4649 = vadd.f32 %v4348, %v4541
        %v4650 = vadd.f32 %v4349, %v4544
        %v4651 = vadd.f32 %v4350, %v4549
        %v4652 = vadd.f32 %v4351, %v4552
        %v4653 = vadd.f32 %v4352, %v4557
        %v4654 = vadd.f32 %v4353, %v4560
        %v4655 = vadd.f32 %v4354, %v4565
        %v4656 = vadd.f32 %v4355, %v4568
        %v4657 = vadd.f32 %v4356, %v4573
        %v4658 = vadd.f32 %v4357, %v4576
        %v4659 = vadd.f32 %v4358, %v4581
        %v4660 = vadd.f32 %v4359, %v4584
        %v4661 = vadd.f32 %v4360, %v4589
        %v4662 = vadd.f32 %v4361, %v4592
        %v4663 = vadd.f32 %v4362, %v4597
        %v4664 = vadd.f32 %v4363, %v4600
        %v4665 = vadd.f32 %v4364, %v4605
        %v4666 = vadd.f32 %v4365, %v4608
        %v4667 = vadd.f32 %v4366, %v4613
        %v4668 = vadd.f32 %v4367, %v4616
        %v4669 = vadd.f32 %v4368, %v4621
        %v4670 = vadd.f32 %v4369, %v4624
        %v4671 = vadd.f32 %v4370, %v4629
        %v4672 = vadd.f32 %v4371, %v4632
        %v4673 = vadd.f32 %v4372, %v4637
        %v4674 = vadd.f32 %v4373, %v4640
        %v4675 = vld [vmem:[%s3165 + $0x2] sm:$0xff]
        %v4676 = vld [vmem:[%s3165 + $0xa] sm:$0xff]
        %v4677 = vld [vmem:[%s3165 + $0x1a] sm:$0xff]
        %v4678 = vld [vmem:[%s3165 + $0x22] sm:$0xff]
        %v4679 = vld [vmem:[%s3165 + $0x32] sm:$0xff]
        %v4680 = vld [vmem:[%s3165 + $0x3a] sm:$0xff]
        %v4681 = vld [vmem:[%s3165 + $0x4a] sm:$0xff]
        %v4682 = vld [vmem:[%s3165 + $0x52] sm:$0xff]
        %v4683 = vld [vmem:[%s3165 + $0x62] sm:$0xff]
        %v4684 = vld [vmem:[%s3165 + $0x6a] sm:$0xff]
        %v4685 = vld [vmem:[%s3165 + $0x7a] sm:$0xff]
        %v4686 = vld [vmem:[%s3165 + $0x82] sm:$0xff]
        %v4687 = vld [vmem:[%s3165 + $0x92] sm:$0xff]
        %v4688 = vld [vmem:[%s3165 + $0x9a] sm:$0xff]
        %v4689 = vld [vmem:[%s3165 + $0xaa] sm:$0xff]
        %v4690 = vld [vmem:[%s3165 + $0xb2] sm:$0xff]
        %v4691 = vld [vmem:[%s3165 + $0xc2] sm:$0xff]
        %v4692 = vld [vmem:[%s3165 + $0xca] sm:$0xff]
        %v4693 = vld [vmem:[%s3165 + $0xda] sm:$0xff]
        %v4694 = vld [vmem:[%s3165 + $0xe2] sm:$0xff]
        %v4695 = vld [vmem:[%s3165 + $0xf2] sm:$0xff]
        %v4696 = vld [vmem:[%s3165 + $0xfa] sm:$0xff]
        %v4697 = vld [vmem:[%s3165 + $0x10a] sm:$0xff]
        %v4698 = vld [vmem:[%s3165 + $0x112] sm:$0xff]
        %v4699 = vld [vmem:[%s3165 + $0x122] sm:$0xff]
        %v4700 = vld [vmem:[%s3165 + $0x12a] sm:$0xff]
        %v4701 = vld [vmem:[%s3165 + $0x13a] sm:$0xff]
        %v4702 = vld [vmem:[%s3165 + $0x142] sm:$0xff]
        %v4703 = vld [vmem:[%s3165 + $0x152] sm:$0xff]
        %v4704 = vld [vmem:[%s3165 + $0x15a] sm:$0xff]
        %v4705 = vld [vmem:[%s3165 + $0x16a] sm:$0xff]
        %v4706 = vld [vmem:[%s3165 + $0x172] sm:$0xff]
        %v4707 = vpack.c.bf16 %v4676, %v4675
        %v4708 = vpack.c.bf16 %v4678, %v4677
        %v4709 = vpack.c.bf16 %v4680, %v4679
        %v4710 = vpack.c.bf16 %v4682, %v4681
        %v4711 = vpack.c.bf16 %v4684, %v4683
        %v4712 = vpack.c.bf16 %v4686, %v4685
        %v4713 = vpack.c.bf16 %v4688, %v4687
        %v4714 = vpack.c.bf16 %v4690, %v4689
        %v4715 = vpack.c.bf16 %v4692, %v4691
        %v4716 = vpack.c.bf16 %v4694, %v4693
        %v4717 = vpack.c.bf16 %v4696, %v4695
        %v4718 = vpack.c.bf16 %v4698, %v4697
        %v4719 = vpack.c.bf16 %v4700, %v4699
        %v4720 = vpack.c.bf16 %v4702, %v4701
        %v4721 = vpack.c.bf16 %v4704, %v4703
        %v4722 = vpack.c.bf16 %v4706, %v4705
        %v4727 = vunpack.c.l.b16 %v3218
        %v4728 = vunpack.c.l.b16 %v3219
        %v4729 = vunpack.c.l.b16 %v3220
        %v4730 = vunpack.c.l.b16 %v3221
        %v4731 = vpack.c.b16 %v4728, %v4727
        %v4732 = vpack.c.b16 %v4730, %v4729
        %v4736 = vsel %vm3109, %v4707, 0
        %v4739 = vsel %vm3109, %v4708, 0
        %v4742 = vsel %vm3109, %v4709, 0
        %v4745 = vsel %vm3109, %v4710, 0
        %v4748 = vsel %vm3109, %v4711, 0
        %v4751 = vsel %vm3109, %v4712, 0
        %v4754 = vsel %vm3109, %v4713, 0
        %v4757 = vsel %vm3109, %v4714, 0
        %v4760 = vsel %vm3109, %v4715, 0
        %v4763 = vsel %vm3109, %v4716, 0
        %v4766 = vsel %vm3109, %v4717, 0
        %v4769 = vsel %vm3109, %v4718, 0
        %v4772 = vsel %vm3109, %v4719, 0
        %v4775 = vsel %vm3109, %v4720, 0
        %v4778 = vsel %vm3109, %v4721, 0
        %v4781 = vsel %vm3109, %v4722, 0
        %4783 = vmatprep.subr.bf16.mxu0 0
        %4784 = vmatpush1.bf16.msra.mxu0 0
        %4785 = vmatprep.subr.bf16.mxu0 0
        %4786 = vmatpush1.bf16.msra.mxu0 0
        %4787 = vmatprep.subr.bf16.mxu0 0
        %4788 = vmatpush1.bf16.msra.mxu0 0
        %4789 = vmatprep.subr.bf16.mxu0 0
        %4790 = vmatpush1.bf16.msra.mxu0 0
        %4791 = vmatprep.subr.bf16.mxu0 0
        %4792 = vmatpush1.bf16.msra.mxu0 0
        %4793 = vmatprep.subr.bf16.mxu0 0
        %4794 = vmatpush1.bf16.msra.mxu0 0
        %4795 = vmatprep.subr.bf16.mxu0 0
        %4796 = vmatpush1.bf16.msra.mxu0 %v4732
        %4797 = vmatprep.subr.bf16.mxu0 0
        %4798 = vmatpush1.bf16.msra.mxu0 %v4731
        %4799 = vmatprep.subr.bf16.mxu0 0
        %4800 = vmatpush2.bf16.msra.mxu0 0
        %4801 = vmatprep.subr.bf16.mxu0 0
        %4802 = vmatpush2.bf16.msra.mxu0 0
        %4803 = vmatprep.subr.bf16.mxu0 0
        %4804 = vmatpush2.bf16.msra.mxu0 0
        %4805 = vmatprep.subr.bf16.mxu0 0
        %4806 = vmatpush2.bf16.msra.mxu0 0
        %4807 = vmatprep.subr.bf16.mxu0 0
        %4808 = vmatpush2.bf16.msra.mxu0 0
        %4809 = vmatprep.subr.bf16.mxu0 0
        %4810 = vmatpush2.bf16.msra.mxu0 0
        %4811 = vmatprep.subr.bf16.mxu0 0
        %4812 = vmatpush2.bf16.msra.mxu0 0
        %4813 = vmatprep.subr.bf16.mxu0 0
        %4814 = vmatpush2.bf16.msra.mxu0 0
        %4815 = vmatprep.mubr.bf16.mxu0 0
        %4816 = vmatmul.mubr.bf16.gmra.mxu0 %v4736
        %v4817 = vpop.f32.mrf.mxu0
        %v4818 = vadd.f32 0.0, %v4817
        %v4819 = vpop.f32.mrf.mxu0
        %v4820 = vpop.f32.mrf.mxu0
        %v4821 = vadd.f32 0.0, %v4820
        %v4822 = vpop.f32.mrf.mxu0
        %4823 = vmatprep.mubr.bf16.mxu0 0
        %4824 = vmatmul.mubr.bf16.gmra.mxu0 %v4739
        %v4825 = vpop.f32.mrf.mxu0
        %v4826 = vadd.f32 0.0, %v4825
        %v4827 = vpop.f32.mrf.mxu0
        %v4828 = vpop.f32.mrf.mxu0
        %v4829 = vadd.f32 0.0, %v4828
        %v4830 = vpop.f32.mrf.mxu0
        %4831 = vmatprep.mubr.bf16.mxu0 0
        %4832 = vmatmul.mubr.bf16.gmra.mxu0 %v4742
        %v4833 = vpop.f32.mrf.mxu0
        %v4834 = vadd.f32 0.0, %v4833
        %v4835 = vpop.f32.mrf.mxu0
        %v4836 = vpop.f32.mrf.mxu0
        %v4837 = vadd.f32 0.0, %v4836
        %v4838 = vpop.f32.mrf.mxu0
        %4839 = vmatprep.mubr.bf16.mxu0 0
        %4840 = vmatmul.mubr.bf16.gmra.mxu0 %v4745
        %v4841 = vpop.f32.mrf.mxu0
        %v4842 = vadd.f32 0.0, %v4841
        %v4843 = vpop.f32.mrf.mxu0
        %v4844 = vpop.f32.mrf.mxu0
        %v4845 = vadd.f32 0.0, %v4844
        %v4846 = vpop.f32.mrf.mxu0
        %4847 = vmatprep.mubr.bf16.mxu0 0
        %4848 = vmatmul.mubr.bf16.gmra.mxu0 %v4748
        %v4849 = vpop.f32.mrf.mxu0
        %v4850 = vadd.f32 0.0, %v4849
        %v4851 = vpop.f32.mrf.mxu0
        %v4852 = vpop.f32.mrf.mxu0
        %v4853 = vadd.f32 0.0, %v4852
        %v4854 = vpop.f32.mrf.mxu0
        %4855 = vmatprep.mubr.bf16.mxu0 0
        %4856 = vmatmul.mubr.bf16.gmra.mxu0 %v4751
        %v4857 = vpop.f32.mrf.mxu0
        %v4858 = vadd.f32 0.0, %v4857
        %v4859 = vpop.f32.mrf.mxu0
        %v4860 = vpop.f32.mrf.mxu0
        %v4861 = vadd.f32 0.0, %v4860
        %v4862 = vpop.f32.mrf.mxu0
        %4863 = vmatprep.mubr.bf16.mxu0 0
        %4864 = vmatmul.mubr.bf16.gmra.mxu0 %v4754
        %v4865 = vpop.f32.mrf.mxu0
        %v4866 = vadd.f32 0.0, %v4865
        %v4867 = vpop.f32.mrf.mxu0
        %v4868 = vpop.f32.mrf.mxu0
        %v4869 = vadd.f32 0.0, %v4868
        %v4870 = vpop.f32.mrf.mxu0
        %4871 = vmatprep.mubr.bf16.mxu0 0
        %4872 = vmatmul.mubr.bf16.gmra.mxu0 %v4757
        %v4873 = vpop.f32.mrf.mxu0
        %v4874 = vadd.f32 0.0, %v4873
        %v4875 = vpop.f32.mrf.mxu0
        %v4876 = vpop.f32.mrf.mxu0
        %v4877 = vadd.f32 0.0, %v4876
        %v4878 = vpop.f32.mrf.mxu0
        %4879 = vmatprep.mubr.bf16.mxu0 0
        %4880 = vmatmul.mubr.bf16.gmra.mxu0 %v4760
        %v4881 = vpop.f32.mrf.mxu0
        %v4882 = vadd.f32 0.0, %v4881
        %v4883 = vpop.f32.mrf.mxu0
        %v4884 = vpop.f32.mrf.mxu0
        %v4885 = vadd.f32 0.0, %v4884
        %v4886 = vpop.f32.mrf.mxu0
        %4887 = vmatprep.mubr.bf16.mxu0 0
        %4888 = vmatmul.mubr.bf16.gmra.mxu0 %v4763
        %v4889 = vpop.f32.mrf.mxu0
        %v4890 = vadd.f32 0.0, %v4889
        %v4891 = vpop.f32.mrf.mxu0
        %v4892 = vpop.f32.mrf.mxu0
        %v4893 = vadd.f32 0.0, %v4892
        %v4894 = vpop.f32.mrf.mxu0
        %4895 = vmatprep.mubr.bf16.mxu0 0
        %4896 = vmatmul.mubr.bf16.gmra.mxu0 %v4766
        %v4897 = vpop.f32.mrf.mxu0
        %v4898 = vadd.f32 0.0, %v4897
        %v4899 = vpop.f32.mrf.mxu0
        %v4900 = vpop.f32.mrf.mxu0
        %v4901 = vadd.f32 0.0, %v4900
        %v4902 = vpop.f32.mrf.mxu0
        %4903 = vmatprep.mubr.bf16.mxu0 0
        %4904 = vmatmul.mubr.bf16.gmra.mxu0 %v4769
        %v4905 = vpop.f32.mrf.mxu0
        %v4906 = vadd.f32 0.0, %v4905
        %v4907 = vpop.f32.mrf.mxu0
        %v4908 = vpop.f32.mrf.mxu0
        %v4909 = vadd.f32 0.0, %v4908
        %v4910 = vpop.f32.mrf.mxu0
        %4911 = vmatprep.mubr.bf16.mxu0 0
        %4912 = vmatmul.mubr.bf16.gmra.mxu0 %v4772
        %v4913 = vpop.f32.mrf.mxu0
        %v4914 = vadd.f32 0.0, %v4913
        %v4915 = vpop.f32.mrf.mxu0
        %v4916 = vpop.f32.mrf.mxu0
        %v4917 = vadd.f32 0.0, %v4916
        %v4918 = vpop.f32.mrf.mxu0
        %4919 = vmatprep.mubr.bf16.mxu0 0
        %4920 = vmatmul.mubr.bf16.gmra.mxu0 %v4775
        %v4921 = vpop.f32.mrf.mxu0
        %v4922 = vadd.f32 0.0, %v4921
        %v4923 = vpop.f32.mrf.mxu0
        %v4924 = vpop.f32.mrf.mxu0
        %v4925 = vadd.f32 0.0, %v4924
        %v4926 = vpop.f32.mrf.mxu0
        %4927 = vmatprep.mubr.bf16.mxu0 0
        %4928 = vmatmul.mubr.bf16.gmra.mxu0 %v4778
        %v4929 = vpop.f32.mrf.mxu0
        %v4930 = vadd.f32 0.0, %v4929
        %v4931 = vpop.f32.mrf.mxu0
        %v4932 = vpop.f32.mrf.mxu0
        %v4933 = vadd.f32 0.0, %v4932
        %v4934 = vpop.f32.mrf.mxu0
        %4935 = vmatprep.mubr.bf16.mxu0 0
        %4936 = vmatmul.mubr.bf16.gmra.mxu0 %v4781
        %v4937 = vpop.f32.mrf.mxu0
        %v4938 = vadd.f32 0.0, %v4937
        %v4939 = vpop.f32.mrf.mxu0
        %v4940 = vpop.f32.mrf.mxu0
        %v4941 = vadd.f32 0.0, %v4940
        %v4942 = vpop.f32.mrf.mxu0
        %4943 = vdwg.mxu0
        %v4944 = vadd.f32 %v4643, %v4818
        %v4945 = vadd.f32 %v4644, %v4821
        %v4946 = vadd.f32 %v4645, %v4826
        %v4947 = vadd.f32 %v4646, %v4829
        %v4948 = vadd.f32 %v4647, %v4834
        %v4949 = vadd.f32 %v4648, %v4837
        %v4950 = vadd.f32 %v4649, %v4842
        %v4951 = vadd.f32 %v4650, %v4845
        %v4952 = vadd.f32 %v4651, %v4850
        %v4953 = vadd.f32 %v4652, %v4853
        %v4954 = vadd.f32 %v4653, %v4858
        %v4955 = vadd.f32 %v4654, %v4861
        %v4956 = vadd.f32 %v4655, %v4866
        %v4957 = vadd.f32 %v4656, %v4869
        %v4958 = vadd.f32 %v4657, %v4874
        %v4959 = vadd.f32 %v4658, %v4877
        %v4960 = vadd.f32 %v4659, %v4882
        %v4961 = vadd.f32 %v4660, %v4885
        %v4962 = vadd.f32 %v4661, %v4890
        %v4963 = vadd.f32 %v4662, %v4893
        %v4964 = vadd.f32 %v4663, %v4898
        %v4965 = vadd.f32 %v4664, %v4901
        %v4966 = vadd.f32 %v4665, %v4906
        %v4967 = vadd.f32 %v4666, %v4909
        %v4968 = vadd.f32 %v4667, %v4914
        %v4969 = vadd.f32 %v4668, %v4917
        %v4970 = vadd.f32 %v4669, %v4922
        %v4971 = vadd.f32 %v4670, %v4925
        %v4972 = vadd.f32 %v4671, %v4930
        %v4973 = vadd.f32 %v4672, %v4933
        %v4974 = vadd.f32 %v4673, %v4938
        %v4975 = vadd.f32 %v4674, %v4941
        %s4976 = scalar_lea.vmem [#allocation2], 48
        %v4977 = vld [vmem:[%s4976] sm:$0xff]
        %v4978 = vld [vmem:[%s4976 + $0x8] sm:$0xff]
        %v4979 = vld [vmem:[%s4976 + $0x18] sm:$0xff]
        %v4980 = vld [vmem:[%s4976 + $0x20] sm:$0xff]
        %v4981 = vld [vmem:[%s4976 + $0x30] sm:$0xff]
        %v4982 = vld [vmem:[%s4976 + $0x38] sm:$0xff]
        %v4983 = vld [vmem:[%s4976 + $0x48] sm:$0xff]
        %v4984 = vld [vmem:[%s4976 + $0x50] sm:$0xff]
        %v4985 = vld [vmem:[%s4976 + $0x60] sm:$0xff]
        %v4986 = vld [vmem:[%s4976 + $0x68] sm:$0xff]
        %v4987 = vld [vmem:[%s4976 + $0x78] sm:$0xff]
        %v4988 = vld [vmem:[%s4976 + $0x80] sm:$0xff]
        %v4989 = vld [vmem:[%s4976 + $0x90] sm:$0xff]
        %v4990 = vld [vmem:[%s4976 + $0x98] sm:$0xff]
        %v4991 = vld [vmem:[%s4976 + $0xa8] sm:$0xff]
        %v4992 = vld [vmem:[%s4976 + $0xb0] sm:$0xff]
        %v4993 = vld [vmem:[%s4976 + $0xc0] sm:$0xff]
        %v4994 = vld [vmem:[%s4976 + $0xc8] sm:$0xff]
        %v4995 = vld [vmem:[%s4976 + $0xd8] sm:$0xff]
        %v4996 = vld [vmem:[%s4976 + $0xe0] sm:$0xff]
        %v4997 = vld [vmem:[%s4976 + $0xf0] sm:$0xff]
        %v4998 = vld [vmem:[%s4976 + $0xf8] sm:$0xff]
        %v4999 = vld [vmem:[%s4976 + $0x108] sm:$0xff]
        %v5000 = vld [vmem:[%s4976 + $0x110] sm:$0xff]
        %v5001 = vld [vmem:[%s4976 + $0x120] sm:$0xff]
        %v5002 = vld [vmem:[%s4976 + $0x128] sm:$0xff]
        %v5003 = vld [vmem:[%s4976 + $0x138] sm:$0xff]
        %v5004 = vld [vmem:[%s4976 + $0x140] sm:$0xff]
        %v5005 = vld [vmem:[%s4976 + $0x150] sm:$0xff]
        %v5006 = vld [vmem:[%s4976 + $0x158] sm:$0xff]
        %v5007 = vld [vmem:[%s4976 + $0x168] sm:$0xff]
        %v5008 = vld [vmem:[%s4976 + $0x170] sm:$0xff]
        %v5009 = vpack.c.bf16 %v4978, %v4977
        %v5010 = vpack.c.bf16 %v4980, %v4979
        %v5011 = vpack.c.bf16 %v4982, %v4981
        %v5012 = vpack.c.bf16 %v4984, %v4983
        %v5013 = vpack.c.bf16 %v4986, %v4985
        %v5014 = vpack.c.bf16 %v4988, %v4987
        %v5015 = vpack.c.bf16 %v4990, %v4989
        %v5016 = vpack.c.bf16 %v4992, %v4991
        %v5017 = vpack.c.bf16 %v4994, %v4993
        %v5018 = vpack.c.bf16 %v4996, %v4995
        %v5019 = vpack.c.bf16 %v4998, %v4997
        %v5020 = vpack.c.bf16 %v5000, %v4999
        %v5021 = vpack.c.bf16 %v5002, %v5001
        %v5022 = vpack.c.bf16 %v5004, %v5003
        %v5023 = vpack.c.bf16 %v5006, %v5005
        %v5024 = vpack.c.bf16 %v5008, %v5007
        %v5029 = vunpack.c.l.b16 %v3222
        %v5030 = vunpack.c.l.b16 %v3223
        %v5031 = vunpack.c.l.b16 %v3224
        %v5032 = vunpack.c.l.b16 %v3225
        %v5033 = vpack.c.b16 %v5030, %v5029
        %v5034 = vpack.c.b16 %v5032, %v5031
        %v5038 = vsel %vm3109, %v5009, 0
        %v5041 = vsel %vm3109, %v5010, 0
        %v5044 = vsel %vm3109, %v5011, 0
        %v5047 = vsel %vm3109, %v5012, 0
        %v5050 = vsel %vm3109, %v5013, 0
        %v5053 = vsel %vm3109, %v5014, 0
        %v5056 = vsel %vm3109, %v5015, 0
        %v5059 = vsel %vm3109, %v5016, 0
        %v5062 = vsel %vm3109, %v5017, 0
        %v5065 = vsel %vm3109, %v5018, 0
        %v5068 = vsel %vm3109, %v5019, 0
        %v5071 = vsel %vm3109, %v5020, 0
        %v5074 = vsel %vm3109, %v5021, 0
        %v5077 = vsel %vm3109, %v5022, 0
        %v5080 = vsel %vm3109, %v5023, 0
        %v5083 = vsel %vm3109, %v5024, 0
        %5085 = vmatprep.subr.bf16.mxu0 0
        %5086 = vmatpush1.bf16.msra.mxu0 0
        %5087 = vmatprep.subr.bf16.mxu0 0
        %5088 = vmatpush1.bf16.msra.mxu0 0
        %5089 = vmatprep.subr.bf16.mxu0 0
        %5090 = vmatpush1.bf16.msra.mxu0 0
        %5091 = vmatprep.subr.bf16.mxu0 0
        %5092 = vmatpush1.bf16.msra.mxu0 0
        %5093 = vmatprep.subr.bf16.mxu0 0
        %5094 = vmatpush1.bf16.msra.mxu0 0
        %5095 = vmatprep.subr.bf16.mxu0 0
        %5096 = vmatpush1.bf16.msra.mxu0 0
        %5097 = vmatprep.subr.bf16.mxu0 0
        %5098 = vmatpush1.bf16.msra.mxu0 %v5034
        %5099 = vmatprep.subr.bf16.mxu0 0
        %5100 = vmatpush1.bf16.msra.mxu0 %v5033
        %5101 = vmatprep.subr.bf16.mxu0 0
        %5102 = vmatpush2.bf16.msra.mxu0 0
        %5103 = vmatprep.subr.bf16.mxu0 0
        %5104 = vmatpush2.bf16.msra.mxu0 0
        %5105 = vmatprep.subr.bf16.mxu0 0
        %5106 = vmatpush2.bf16.msra.mxu0 0
        %5107 = vmatprep.subr.bf16.mxu0 0
        %5108 = vmatpush2.bf16.msra.mxu0 0
        %5109 = vmatprep.subr.bf16.mxu0 0
        %5110 = vmatpush2.bf16.msra.mxu0 0
        %5111 = vmatprep.subr.bf16.mxu0 0
        %5112 = vmatpush2.bf16.msra.mxu0 0
        %5113 = vmatprep.subr.bf16.mxu0 0
        %5114 = vmatpush2.bf16.msra.mxu0 0
        %5115 = vmatprep.subr.bf16.mxu0 0
        %5116 = vmatpush2.bf16.msra.mxu0 0
        %5117 = vmatprep.mubr.bf16.mxu0 0
        %5118 = vmatmul.mubr.bf16.gmra.mxu0 %v5038
        %v5119 = vpop.f32.mrf.mxu0
        %v5120 = vadd.f32 0.0, %v5119
        %v5121 = vpop.f32.mrf.mxu0
        %v5122 = vpop.f32.mrf.mxu0
        %v5123 = vadd.f32 0.0, %v5122
        %v5124 = vpop.f32.mrf.mxu0
        %5125 = vmatprep.mubr.bf16.mxu0 0
        %5126 = vmatmul.mubr.bf16.gmra.mxu0 %v5041
        %v5127 = vpop.f32.mrf.mxu0
        %v5128 = vadd.f32 0.0, %v5127
        %v5129 = vpop.f32.mrf.mxu0
        %v5130 = vpop.f32.mrf.mxu0
        %v5131 = vadd.f32 0.0, %v5130
        %v5132 = vpop.f32.mrf.mxu0
        %5133 = vmatprep.mubr.bf16.mxu0 0
        %5134 = vmatmul.mubr.bf16.gmra.mxu0 %v5044
        %v5135 = vpop.f32.mrf.mxu0
        %v5136 = vadd.f32 0.0, %v5135
        %v5137 = vpop.f32.mrf.mxu0
        %v5138 = vpop.f32.mrf.mxu0
        %v5139 = vadd.f32 0.0, %v5138
        %v5140 = vpop.f32.mrf.mxu0
        %5141 = vmatprep.mubr.bf16.mxu0 0
        %5142 = vmatmul.mubr.bf16.gmra.mxu0 %v5047
        %v5143 = vpop.f32.mrf.mxu0
        %v5144 = vadd.f32 0.0, %v5143
        %v5145 = vpop.f32.mrf.mxu0
        %v5146 = vpop.f32.mrf.mxu0
        %v5147 = vadd.f32 0.0, %v5146
        %v5148 = vpop.f32.mrf.mxu0
        %5149 = vmatprep.mubr.bf16.mxu0 0
        %5150 = vmatmul.mubr.bf16.gmra.mxu0 %v5050
        %v5151 = vpop.f32.mrf.mxu0
        %v5152 = vadd.f32 0.0, %v5151
        %v5153 = vpop.f32.mrf.mxu0
        %v5154 = vpop.f32.mrf.mxu0
        %v5155 = vadd.f32 0.0, %v5154
        %v5156 = vpop.f32.mrf.mxu0
        %5157 = vmatprep.mubr.bf16.mxu0 0
        %5158 = vmatmul.mubr.bf16.gmra.mxu0 %v5053
        %v5159 = vpop.f32.mrf.mxu0
        %v5160 = vadd.f32 0.0, %v5159
        %v5161 = vpop.f32.mrf.mxu0
        %v5162 = vpop.f32.mrf.mxu0
        %v5163 = vadd.f32 0.0, %v5162
        %v5164 = vpop.f32.mrf.mxu0
        %5165 = vmatprep.mubr.bf16.mxu0 0
        %5166 = vmatmul.mubr.bf16.gmra.mxu0 %v5056
        %v5167 = vpop.f32.mrf.mxu0
        %v5168 = vadd.f32 0.0, %v5167
        %v5169 = vpop.f32.mrf.mxu0
        %v5170 = vpop.f32.mrf.mxu0
        %v5171 = vadd.f32 0.0, %v5170
        %v5172 = vpop.f32.mrf.mxu0
        %5173 = vmatprep.mubr.bf16.mxu0 0
        %5174 = vmatmul.mubr.bf16.gmra.mxu0 %v5059
        %v5175 = vpop.f32.mrf.mxu0
        %v5176 = vadd.f32 0.0, %v5175
        %v5177 = vpop.f32.mrf.mxu0
        %v5178 = vpop.f32.mrf.mxu0
        %v5179 = vadd.f32 0.0, %v5178
        %v5180 = vpop.f32.mrf.mxu0
        %5181 = vmatprep.mubr.bf16.mxu0 0
        %5182 = vmatmul.mubr.bf16.gmra.mxu0 %v5062
        %v5183 = vpop.f32.mrf.mxu0
        %v5184 = vadd.f32 0.0, %v5183
        %v5185 = vpop.f32.mrf.mxu0
        %v5186 = vpop.f32.mrf.mxu0
        %v5187 = vadd.f32 0.0, %v5186
        %v5188 = vpop.f32.mrf.mxu0
        %5189 = vmatprep.mubr.bf16.mxu0 0
        %5190 = vmatmul.mubr.bf16.gmra.mxu0 %v5065
        %v5191 = vpop.f32.mrf.mxu0
        %v5192 = vadd.f32 0.0, %v5191
        %v5193 = vpop.f32.mrf.mxu0
        %v5194 = vpop.f32.mrf.mxu0
        %v5195 = vadd.f32 0.0, %v5194
        %v5196 = vpop.f32.mrf.mxu0
        %5197 = vmatprep.mubr.bf16.mxu0 0
        %5198 = vmatmul.mubr.bf16.gmra.mxu0 %v5068
        %v5199 = vpop.f32.mrf.mxu0
        %v5200 = vadd.f32 0.0, %v5199
        %v5201 = vpop.f32.mrf.mxu0
        %v5202 = vpop.f32.mrf.mxu0
        %v5203 = vadd.f32 0.0, %v5202
        %v5204 = vpop.f32.mrf.mxu0
        %5205 = vmatprep.mubr.bf16.mxu0 0
        %5206 = vmatmul.mubr.bf16.gmra.mxu0 %v5071
        %v5207 = vpop.f32.mrf.mxu0
        %v5208 = vadd.f32 0.0, %v5207
        %v5209 = vpop.f32.mrf.mxu0
        %v5210 = vpop.f32.mrf.mxu0
        %v5211 = vadd.f32 0.0, %v5210
        %v5212 = vpop.f32.mrf.mxu0
        %5213 = vmatprep.mubr.bf16.mxu0 0
        %5214 = vmatmul.mubr.bf16.gmra.mxu0 %v5074
        %v5215 = vpop.f32.mrf.mxu0
        %v5216 = vadd.f32 0.0, %v5215
        %v5217 = vpop.f32.mrf.mxu0
        %v5218 = vpop.f32.mrf.mxu0
        %v5219 = vadd.f32 0.0, %v5218
        %v5220 = vpop.f32.mrf.mxu0
        %5221 = vmatprep.mubr.bf16.mxu0 0
        %5222 = vmatmul.mubr.bf16.gmra.mxu0 %v5077
        %v5223 = vpop.f32.mrf.mxu0
        %v5224 = vadd.f32 0.0, %v5223
        %v5225 = vpop.f32.mrf.mxu0
        %v5226 = vpop.f32.mrf.mxu0
        %v5227 = vadd.f32 0.0, %v5226
        %v5228 = vpop.f32.mrf.mxu0
        %5229 = vmatprep.mubr.bf16.mxu0 0
        %5230 = vmatmul.mubr.bf16.gmra.mxu0 %v5080
        %v5231 = vpop.f32.mrf.mxu0
        %v5232 = vadd.f32 0.0, %v5231
        %v5233 = vpop.f32.mrf.mxu0
        %v5234 = vpop.f32.mrf.mxu0
        %v5235 = vadd.f32 0.0, %v5234
        %v5236 = vpop.f32.mrf.mxu0
        %5237 = vmatprep.mubr.bf16.mxu0 0
        %5238 = vmatmul.mubr.bf16.gmra.mxu0 %v5083
        %v5239 = vpop.f32.mrf.mxu0
        %v5240 = vadd.f32 0.0, %v5239
        %v5241 = vpop.f32.mrf.mxu0
        %v5242 = vpop.f32.mrf.mxu0
        %v5243 = vadd.f32 0.0, %v5242
        %v5244 = vpop.f32.mrf.mxu0
        %5245 = vdwg.mxu0
        %v5246 = vadd.f32 %v4944, %v5120
        %v5247 = vadd.f32 %v4945, %v5123
        %v5248 = vadd.f32 %v4946, %v5128
        %v5249 = vadd.f32 %v4947, %v5131
        %v5250 = vadd.f32 %v4948, %v5136
        %v5251 = vadd.f32 %v4949, %v5139
        %v5252 = vadd.f32 %v4950, %v5144
        %v5253 = vadd.f32 %v4951, %v5147
        %v5254 = vadd.f32 %v4952, %v5152
        %v5255 = vadd.f32 %v4953, %v5155
        %v5256 = vadd.f32 %v4954, %v5160
        %v5257 = vadd.f32 %v4955, %v5163
        %v5258 = vadd.f32 %v4956, %v5168
        %v5259 = vadd.f32 %v4957, %v5171
        %v5260 = vadd.f32 %v4958, %v5176
        %v5261 = vadd.f32 %v4959, %v5179
        %v5262 = vadd.f32 %v4960, %v5184
        %v5263 = vadd.f32 %v4961, %v5187
        %v5264 = vadd.f32 %v4962, %v5192
        %v5265 = vadd.f32 %v4963, %v5195
        %v5266 = vadd.f32 %v4964, %v5200
        %v5267 = vadd.f32 %v4965, %v5203
        %v5268 = vadd.f32 %v4966, %v5208
        %v5269 = vadd.f32 %v4967, %v5211
        %v5270 = vadd.f32 %v4968, %v5216
        %v5271 = vadd.f32 %v4969, %v5219
        %v5272 = vadd.f32 %v4970, %v5224
        %v5273 = vadd.f32 %v4971, %v5227
        %v5274 = vadd.f32 %v4972, %v5232
        %v5275 = vadd.f32 %v4973, %v5235
        %v5276 = vadd.f32 %v4974, %v5240
        %v5277 = vadd.f32 %v4975, %v5243
        %v5278 = vld [vmem:[%s4976 + $0x1] sm:$0xff]
        %v5279 = vld [vmem:[%s4976 + $0x9] sm:$0xff]
        %v5280 = vld [vmem:[%s4976 + $0x19] sm:$0xff]
        %v5281 = vld [vmem:[%s4976 + $0x21] sm:$0xff]
        %v5282 = vld [vmem:[%s4976 + $0x31] sm:$0xff]
        %v5283 = vld [vmem:[%s4976 + $0x39] sm:$0xff]
        %v5284 = vld [vmem:[%s4976 + $0x49] sm:$0xff]
        %v5285 = vld [vmem:[%s4976 + $0x51] sm:$0xff]
        %v5286 = vld [vmem:[%s4976 + $0x61] sm:$0xff]
        %v5287 = vld [vmem:[%s4976 + $0x69] sm:$0xff]
        %v5288 = vld [vmem:[%s4976 + $0x79] sm:$0xff]
        %v5289 = vld [vmem:[%s4976 + $0x81] sm:$0xff]
        %v5290 = vld [vmem:[%s4976 + $0x91] sm:$0xff]
        %v5291 = vld [vmem:[%s4976 + $0x99] sm:$0xff]
        %v5292 = vld [vmem:[%s4976 + $0xa9] sm:$0xff]
        %v5293 = vld [vmem:[%s4976 + $0xb1] sm:$0xff]
        %v5294 = vld [vmem:[%s4976 + $0xc1] sm:$0xff]
        %v5295 = vld [vmem:[%s4976 + $0xc9] sm:$0xff]
        %v5296 = vld [vmem:[%s4976 + $0xd9] sm:$0xff]
        %v5297 = vld [vmem:[%s4976 + $0xe1] sm:$0xff]
        %v5298 = vld [vmem:[%s4976 + $0xf1] sm:$0xff]
        %v5299 = vld [vmem:[%s4976 + $0xf9] sm:$0xff]
        %v5300 = vld [vmem:[%s4976 + $0x109] sm:$0xff]
        %v5301 = vld [vmem:[%s4976 + $0x111] sm:$0xff]
        %v5302 = vld [vmem:[%s4976 + $0x121] sm:$0xff]
        %v5303 = vld [vmem:[%s4976 + $0x129] sm:$0xff]
        %v5304 = vld [vmem:[%s4976 + $0x139] sm:$0xff]
        %v5305 = vld [vmem:[%s4976 + $0x141] sm:$0xff]
        %v5306 = vld [vmem:[%s4976 + $0x151] sm:$0xff]
        %v5307 = vld [vmem:[%s4976 + $0x159] sm:$0xff]
        %v5308 = vld [vmem:[%s4976 + $0x169] sm:$0xff]
        %v5309 = vld [vmem:[%s4976 + $0x171] sm:$0xff]
        %v5310 = vpack.c.bf16 %v5279, %v5278
        %v5311 = vpack.c.bf16 %v5281, %v5280
        %v5312 = vpack.c.bf16 %v5283, %v5282
        %v5313 = vpack.c.bf16 %v5285, %v5284
        %v5314 = vpack.c.bf16 %v5287, %v5286
        %v5315 = vpack.c.bf16 %v5289, %v5288
        %v5316 = vpack.c.bf16 %v5291, %v5290
        %v5317 = vpack.c.bf16 %v5293, %v5292
        %v5318 = vpack.c.bf16 %v5295, %v5294
        %v5319 = vpack.c.bf16 %v5297, %v5296
        %v5320 = vpack.c.bf16 %v5299, %v5298
        %v5321 = vpack.c.bf16 %v5301, %v5300
        %v5322 = vpack.c.bf16 %v5303, %v5302
        %v5323 = vpack.c.bf16 %v5305, %v5304
        %v5324 = vpack.c.bf16 %v5307, %v5306
        %v5325 = vpack.c.bf16 %v5309, %v5308
        %v5330 = vunpack.c.l.b16 %v3226
        %v5331 = vunpack.c.l.b16 %v3227
        %v5332 = vunpack.c.l.b16 %v3228
        %v5333 = vunpack.c.l.b16 %v3229
        %v5334 = vpack.c.b16 %v5331, %v5330
        %v5335 = vpack.c.b16 %v5333, %v5332
        %v5339 = vsel %vm3109, %v5310, 0
        %v5342 = vsel %vm3109, %v5311, 0
        %v5345 = vsel %vm3109, %v5312, 0
        %v5348 = vsel %vm3109, %v5313, 0
        %v5351 = vsel %vm3109, %v5314, 0
        %v5354 = vsel %vm3109, %v5315, 0
        %v5357 = vsel %vm3109, %v5316, 0
        %v5360 = vsel %vm3109, %v5317, 0
        %v5363 = vsel %vm3109, %v5318, 0
        %v5366 = vsel %vm3109, %v5319, 0
        %v5369 = vsel %vm3109, %v5320, 0
        %v5372 = vsel %vm3109, %v5321, 0
        %v5375 = vsel %vm3109, %v5322, 0
        %v5378 = vsel %vm3109, %v5323, 0
        %v5381 = vsel %vm3109, %v5324, 0
        %v5384 = vsel %vm3109, %v5325, 0
        %5386 = vmatprep.subr.bf16.mxu0 0
        %5387 = vmatpush1.bf16.msra.mxu0 0
        %5388 = vmatprep.subr.bf16.mxu0 0
        %5389 = vmatpush1.bf16.msra.mxu0 0
        %5390 = vmatprep.subr.bf16.mxu0 0
        %5391 = vmatpush1.bf16.msra.mxu0 0
        %5392 = vmatprep.subr.bf16.mxu0 0
        %5393 = vmatpush1.bf16.msra.mxu0 0
        %5394 = vmatprep.subr.bf16.mxu0 0
        %5395 = vmatpush1.bf16.msra.mxu0 0
        %5396 = vmatprep.subr.bf16.mxu0 0
        %5397 = vmatpush1.bf16.msra.mxu0 0
        %5398 = vmatprep.subr.bf16.mxu0 0
        %5399 = vmatpush1.bf16.msra.mxu0 %v5335
        %5400 = vmatprep.subr.bf16.mxu0 0
        %5401 = vmatpush1.bf16.msra.mxu0 %v5334
        %5402 = vmatprep.subr.bf16.mxu0 0
        %5403 = vmatpush2.bf16.msra.mxu0 0
        %5404 = vmatprep.subr.bf16.mxu0 0
        %5405 = vmatpush2.bf16.msra.mxu0 0
        %5406 = vmatprep.subr.bf16.mxu0 0
        %5407 = vmatpush2.bf16.msra.mxu0 0
        %5408 = vmatprep.subr.bf16.mxu0 0
        %5409 = vmatpush2.bf16.msra.mxu0 0
        %5410 = vmatprep.subr.bf16.mxu0 0
        %5411 = vmatpush2.bf16.msra.mxu0 0
        %5412 = vmatprep.subr.bf16.mxu0 0
        %5413 = vmatpush2.bf16.msra.mxu0 0
        %5414 = vmatprep.subr.bf16.mxu0 0
        %5415 = vmatpush2.bf16.msra.mxu0 0
        %5416 = vmatprep.subr.bf16.mxu0 0
        %5417 = vmatpush2.bf16.msra.mxu0 0
        %5418 = vmatprep.mubr.bf16.mxu0 0
        %5419 = vmatmul.mubr.bf16.gmra.mxu0 %v5339
        %v5420 = vpop.f32.mrf.mxu0
        %v5421 = vadd.f32 0.0, %v5420
        %v5422 = vpop.f32.mrf.mxu0
        %v5423 = vpop.f32.mrf.mxu0
        %v5424 = vadd.f32 0.0, %v5423
        %v5425 = vpop.f32.mrf.mxu0
        %5426 = vmatprep.mubr.bf16.mxu0 0
        %5427 = vmatmul.mubr.bf16.gmra.mxu0 %v5342
        %v5428 = vpop.f32.mrf.mxu0
        %v5429 = vadd.f32 0.0, %v5428
        %v5430 = vpop.f32.mrf.mxu0
        %v5431 = vpop.f32.mrf.mxu0
        %v5432 = vadd.f32 0.0, %v5431
        %v5433 = vpop.f32.mrf.mxu0
        %5434 = vmatprep.mubr.bf16.mxu0 0
        %5435 = vmatmul.mubr.bf16.gmra.mxu0 %v5345
        %v5436 = vpop.f32.mrf.mxu0
        %v5437 = vadd.f32 0.0, %v5436
        %v5438 = vpop.f32.mrf.mxu0
        %v5439 = vpop.f32.mrf.mxu0
        %v5440 = vadd.f32 0.0, %v5439
        %v5441 = vpop.f32.mrf.mxu0
        %5442 = vmatprep.mubr.bf16.mxu0 0
        %5443 = vmatmul.mubr.bf16.gmra.mxu0 %v5348
        %v5444 = vpop.f32.mrf.mxu0
        %v5445 = vadd.f32 0.0, %v5444
        %v5446 = vpop.f32.mrf.mxu0
        %v5447 = vpop.f32.mrf.mxu0
        %v5448 = vadd.f32 0.0, %v5447
        %v5449 = vpop.f32.mrf.mxu0
        %5450 = vmatprep.mubr.bf16.mxu0 0
        %5451 = vmatmul.mubr.bf16.gmra.mxu0 %v5351
        %v5452 = vpop.f32.mrf.mxu0
        %v5453 = vadd.f32 0.0, %v5452
        %v5454 = vpop.f32.mrf.mxu0
        %v5455 = vpop.f32.mrf.mxu0
        %v5456 = vadd.f32 0.0, %v5455
        %v5457 = vpop.f32.mrf.mxu0
        %5458 = vmatprep.mubr.bf16.mxu0 0
        %5459 = vmatmul.mubr.bf16.gmra.mxu0 %v5354
        %v5460 = vpop.f32.mrf.mxu0
        %v5461 = vadd.f32 0.0, %v5460
        %v5462 = vpop.f32.mrf.mxu0
        %v5463 = vpop.f32.mrf.mxu0
        %v5464 = vadd.f32 0.0, %v5463
        %v5465 = vpop.f32.mrf.mxu0
        %5466 = vmatprep.mubr.bf16.mxu0 0
        %5467 = vmatmul.mubr.bf16.gmra.mxu0 %v5357
        %v5468 = vpop.f32.mrf.mxu0
        %v5469 = vadd.f32 0.0, %v5468
        %v5470 = vpop.f32.mrf.mxu0
        %v5471 = vpop.f32.mrf.mxu0
        %v5472 = vadd.f32 0.0, %v5471
        %v5473 = vpop.f32.mrf.mxu0
        %5474 = vmatprep.mubr.bf16.mxu0 0
        %5475 = vmatmul.mubr.bf16.gmra.mxu0 %v5360
        %v5476 = vpop.f32.mrf.mxu0
        %v5477 = vadd.f32 0.0, %v5476
        %v5478 = vpop.f32.mrf.mxu0
        %v5479 = vpop.f32.mrf.mxu0
        %v5480 = vadd.f32 0.0, %v5479
        %v5481 = vpop.f32.mrf.mxu0
        %5482 = vmatprep.mubr.bf16.mxu0 0
        %5483 = vmatmul.mubr.bf16.gmra.mxu0 %v5363
        %v5484 = vpop.f32.mrf.mxu0
        %v5485 = vadd.f32 0.0, %v5484
        %v5486 = vpop.f32.mrf.mxu0
        %v5487 = vpop.f32.mrf.mxu0
        %v5488 = vadd.f32 0.0, %v5487
        %v5489 = vpop.f32.mrf.mxu0
        %5490 = vmatprep.mubr.bf16.mxu0 0
        %5491 = vmatmul.mubr.bf16.gmra.mxu0 %v5366
        %v5492 = vpop.f32.mrf.mxu0
        %v5493 = vadd.f32 0.0, %v5492
        %v5494 = vpop.f32.mrf.mxu0
        %v5495 = vpop.f32.mrf.mxu0
        %v5496 = vadd.f32 0.0, %v5495
        %v5497 = vpop.f32.mrf.mxu0
        %5498 = vmatprep.mubr.bf16.mxu0 0
        %5499 = vmatmul.mubr.bf16.gmra.mxu0 %v5369
        %v5500 = vpop.f32.mrf.mxu0
        %v5501 = vadd.f32 0.0, %v5500
        %v5502 = vpop.f32.mrf.mxu0
        %v5503 = vpop.f32.mrf.mxu0
        %v5504 = vadd.f32 0.0, %v5503
        %v5505 = vpop.f32.mrf.mxu0
        %5506 = vmatprep.mubr.bf16.mxu0 0
        %5507 = vmatmul.mubr.bf16.gmra.mxu0 %v5372
        %v5508 = vpop.f32.mrf.mxu0
        %v5509 = vadd.f32 0.0, %v5508
        %v5510 = vpop.f32.mrf.mxu0
        %v5511 = vpop.f32.mrf.mxu0
        %v5512 = vadd.f32 0.0, %v5511
        %v5513 = vpop.f32.mrf.mxu0
        %5514 = vmatprep.mubr.bf16.mxu0 0
        %5515 = vmatmul.mubr.bf16.gmra.mxu0 %v5375
        %v5516 = vpop.f32.mrf.mxu0
        %v5517 = vadd.f32 0.0, %v5516
        %v5518 = vpop.f32.mrf.mxu0
        %v5519 = vpop.f32.mrf.mxu0
        %v5520 = vadd.f32 0.0, %v5519
        %v5521 = vpop.f32.mrf.mxu0
        %5522 = vmatprep.mubr.bf16.mxu0 0
        %5523 = vmatmul.mubr.bf16.gmra.mxu0 %v5378
        %v5524 = vpop.f32.mrf.mxu0
        %v5525 = vadd.f32 0.0, %v5524
        %v5526 = vpop.f32.mrf.mxu0
        %v5527 = vpop.f32.mrf.mxu0
        %v5528 = vadd.f32 0.0, %v5527
        %v5529 = vpop.f32.mrf.mxu0
        %5530 = vmatprep.mubr.bf16.mxu0 0
        %5531 = vmatmul.mubr.bf16.gmra.mxu0 %v5381
        %v5532 = vpop.f32.mrf.mxu0
        %v5533 = vadd.f32 0.0, %v5532
        %v5534 = vpop.f32.mrf.mxu0
        %v5535 = vpop.f32.mrf.mxu0
        %v5536 = vadd.f32 0.0, %v5535
        %v5537 = vpop.f32.mrf.mxu0
        %5538 = vmatprep.mubr.bf16.mxu0 0
        %5539 = vmatmul.mubr.bf16.gmra.mxu0 %v5384
        %v5540 = vpop.f32.mrf.mxu0
        %v5541 = vadd.f32 0.0, %v5540
        %v5542 = vpop.f32.mrf.mxu0
        %v5543 = vpop.f32.mrf.mxu0
        %v5544 = vadd.f32 0.0, %v5543
        %v5545 = vpop.f32.mrf.mxu0
        %5546 = vdwg.mxu0
        %v5547 = vadd.f32 %v5246, %v5421
        %v5548 = vadd.f32 %v5247, %v5424
        %v5549 = vadd.f32 %v5248, %v5429
        %v5550 = vadd.f32 %v5249, %v5432
        %v5551 = vadd.f32 %v5250, %v5437
        %v5552 = vadd.f32 %v5251, %v5440
        %v5553 = vadd.f32 %v5252, %v5445
        %v5554 = vadd.f32 %v5253, %v5448
        %v5555 = vadd.f32 %v5254, %v5453
        %v5556 = vadd.f32 %v5255, %v5456
        %v5557 = vadd.f32 %v5256, %v5461
        %v5558 = vadd.f32 %v5257, %v5464
        %v5559 = vadd.f32 %v5258, %v5469
        %v5560 = vadd.f32 %v5259, %v5472
        %v5561 = vadd.f32 %v5260, %v5477
        %v5562 = vadd.f32 %v5261, %v5480
        %v5563 = vadd.f32 %v5262, %v5485
        %v5564 = vadd.f32 %v5263, %v5488
        %v5565 = vadd.f32 %v5264, %v5493
        %v5566 = vadd.f32 %v5265, %v5496
        %v5567 = vadd.f32 %v5266, %v5501
        %v5568 = vadd.f32 %v5267, %v5504
        %v5569 = vadd.f32 %v5268, %v5509
        %v5570 = vadd.f32 %v5269, %v5512
        %v5571 = vadd.f32 %v5270, %v5517
        %v5572 = vadd.f32 %v5271, %v5520
        %v5573 = vadd.f32 %v5272, %v5525
        %v5574 = vadd.f32 %v5273, %v5528
        %v5575 = vadd.f32 %v5274, %v5533
        %v5576 = vadd.f32 %v5275, %v5536
        %v5577 = vadd.f32 %v5276, %v5541
        %v5578 = vadd.f32 %v5277, %v5544
        %v5579 = vld [vmem:[%s4976 + $0x2] sm:$0xff]
        %v5580 = vld [vmem:[%s4976 + $0xa] sm:$0xff]
        %v5581 = vld [vmem:[%s4976 + $0x1a] sm:$0xff]
        %v5582 = vld [vmem:[%s4976 + $0x22] sm:$0xff]
        %v5583 = vld [vmem:[%s4976 + $0x32] sm:$0xff]
        %v5584 = vld [vmem:[%s4976 + $0x3a] sm:$0xff]
        %v5585 = vld [vmem:[%s4976 + $0x4a] sm:$0xff]
        %v5586 = vld [vmem:[%s4976 + $0x52] sm:$0xff]
        %v5587 = vld [vmem:[%s4976 + $0x62] sm:$0xff]
        %v5588 = vld [vmem:[%s4976 + $0x6a] sm:$0xff]
        %v5589 = vld [vmem:[%s4976 + $0x7a] sm:$0xff]
        %v5590 = vld [vmem:[%s4976 + $0x82] sm:$0xff]
        %v5591 = vld [vmem:[%s4976 + $0x92] sm:$0xff]
        %v5592 = vld [vmem:[%s4976 + $0x9a] sm:$0xff]
        %v5593 = vld [vmem:[%s4976 + $0xaa] sm:$0xff]
        %v5594 = vld [vmem:[%s4976 + $0xb2] sm:$0xff]
        %v5595 = vld [vmem:[%s4976 + $0xc2] sm:$0xff]
        %v5596 = vld [vmem:[%s4976 + $0xca] sm:$0xff]
        %v5597 = vld [vmem:[%s4976 + $0xda] sm:$0xff]
        %v5598 = vld [vmem:[%s4976 + $0xe2] sm:$0xff]
        %v5599 = vld [vmem:[%s4976 + $0xf2] sm:$0xff]
        %v5600 = vld [vmem:[%s4976 + $0xfa] sm:$0xff]
        %v5601 = vld [vmem:[%s4976 + $0x10a] sm:$0xff]
        %v5602 = vld [vmem:[%s4976 + $0x112] sm:$0xff]
        %v5603 = vld [vmem:[%s4976 + $0x122] sm:$0xff]
        %v5604 = vld [vmem:[%s4976 + $0x12a] sm:$0xff]
        %v5605 = vld [vmem:[%s4976 + $0x13a] sm:$0xff]
        %v5606 = vld [vmem:[%s4976 + $0x142] sm:$0xff]
        %v5607 = vld [vmem:[%s4976 + $0x152] sm:$0xff]
        %v5608 = vld [vmem:[%s4976 + $0x15a] sm:$0xff]
        %v5609 = vld [vmem:[%s4976 + $0x16a] sm:$0xff]
        %v5610 = vld [vmem:[%s4976 + $0x172] sm:$0xff]
        %v5611 = vpack.c.bf16 %v5580, %v5579
        %v5612 = vpack.c.bf16 %v5582, %v5581
        %v5613 = vpack.c.bf16 %v5584, %v5583
        %v5614 = vpack.c.bf16 %v5586, %v5585
        %v5615 = vpack.c.bf16 %v5588, %v5587
        %v5616 = vpack.c.bf16 %v5590, %v5589
        %v5617 = vpack.c.bf16 %v5592, %v5591
        %v5618 = vpack.c.bf16 %v5594, %v5593
        %v5619 = vpack.c.bf16 %v5596, %v5595
        %v5620 = vpack.c.bf16 %v5598, %v5597
        %v5621 = vpack.c.bf16 %v5600, %v5599
        %v5622 = vpack.c.bf16 %v5602, %v5601
        %v5623 = vpack.c.bf16 %v5604, %v5603
        %v5624 = vpack.c.bf16 %v5606, %v5605
        %v5625 = vpack.c.bf16 %v5608, %v5607
        %v5626 = vpack.c.bf16 %v5610, %v5609
        %v5631 = vunpack.c.l.b16 %v3230
        %v5632 = vunpack.c.l.b16 %v3231
        %v5633 = vunpack.c.l.b16 %v3232
        %v5634 = vunpack.c.l.b16 %v3233
        %v5635 = vpack.c.b16 %v5632, %v5631
        %v5636 = vpack.c.b16 %v5634, %v5633
        %v5640 = vsel %vm3109, %v5611, 0
        %v5643 = vsel %vm3109, %v5612, 0
        %v5646 = vsel %vm3109, %v5613, 0
        %v5649 = vsel %vm3109, %v5614, 0
        %v5652 = vsel %vm3109, %v5615, 0
        %v5655 = vsel %vm3109, %v5616, 0
        %v5658 = vsel %vm3109, %v5617, 0
        %v5661 = vsel %vm3109, %v5618, 0
        %v5664 = vsel %vm3109, %v5619, 0
        %v5667 = vsel %vm3109, %v5620, 0
        %v5670 = vsel %vm3109, %v5621, 0
        %v5673 = vsel %vm3109, %v5622, 0
        %v5676 = vsel %vm3109, %v5623, 0
        %v5679 = vsel %vm3109, %v5624, 0
        %v5682 = vsel %vm3109, %v5625, 0
        %v5685 = vsel %vm3109, %v5626, 0
        %5687 = vmatprep.subr.bf16.mxu0 0
        %5688 = vmatpush1.bf16.msra.mxu0 0
        %5689 = vmatprep.subr.bf16.mxu0 0
        %5690 = vmatpush1.bf16.msra.mxu0 0
        %5691 = vmatprep.subr.bf16.mxu0 0
        %5692 = vmatpush1.bf16.msra.mxu0 0
        %5693 = vmatprep.subr.bf16.mxu0 0
        %5694 = vmatpush1.bf16.msra.mxu0 0
        %5695 = vmatprep.subr.bf16.mxu0 0
        %5696 = vmatpush1.bf16.msra.mxu0 0
        %5697 = vmatprep.subr.bf16.mxu0 0
        %5698 = vmatpush1.bf16.msra.mxu0 0
        %5699 = vmatprep.subr.bf16.mxu0 0
        %5700 = vmatpush1.bf16.msra.mxu0 %v5636
        %5701 = vmatprep.subr.bf16.mxu0 0
        %5702 = vmatpush1.bf16.msra.mxu0 %v5635
        %5703 = vmatprep.subr.bf16.mxu0 0
        %5704 = vmatpush2.bf16.msra.mxu0 0
        %5705 = vmatprep.subr.bf16.mxu0 0
        %5706 = vmatpush2.bf16.msra.mxu0 0
        %5707 = vmatprep.subr.bf16.mxu0 0
        %5708 = vmatpush2.bf16.msra.mxu0 0
        %5709 = vmatprep.subr.bf16.mxu0 0
        %5710 = vmatpush2.bf16.msra.mxu0 0
        %5711 = vmatprep.subr.bf16.mxu0 0
        %5712 = vmatpush2.bf16.msra.mxu0 0
        %5713 = vmatprep.subr.bf16.mxu0 0
        %5714 = vmatpush2.bf16.msra.mxu0 0
        %5715 = vmatprep.subr.bf16.mxu0 0
        %5716 = vmatpush2.bf16.msra.mxu0 0
        %5717 = vmatprep.subr.bf16.mxu0 0
        %5718 = vmatpush2.bf16.msra.mxu0 0
        %5719 = vmatprep.mubr.bf16.mxu0 0
        %5720 = vmatmul.mubr.bf16.gmra.mxu0 %v5640
        %v5721 = vpop.f32.mrf.mxu0
        %v5722 = vadd.f32 0.0, %v5721
        %v5723 = vpop.f32.mrf.mxu0
        %v5724 = vpop.f32.mrf.mxu0
        %v5725 = vadd.f32 0.0, %v5724
        %v5726 = vpop.f32.mrf.mxu0
        %5727 = vmatprep.mubr.bf16.mxu0 0
        %5728 = vmatmul.mubr.bf16.gmra.mxu0 %v5643
        %v5729 = vpop.f32.mrf.mxu0
        %v5730 = vadd.f32 0.0, %v5729
        %v5731 = vpop.f32.mrf.mxu0
        %v5732 = vpop.f32.mrf.mxu0
        %v5733 = vadd.f32 0.0, %v5732
        %v5734 = vpop.f32.mrf.mxu0
        %5735 = vmatprep.mubr.bf16.mxu0 0
        %5736 = vmatmul.mubr.bf16.gmra.mxu0 %v5646
        %v5737 = vpop.f32.mrf.mxu0
        %v5738 = vadd.f32 0.0, %v5737
        %v5739 = vpop.f32.mrf.mxu0
        %v5740 = vpop.f32.mrf.mxu0
        %v5741 = vadd.f32 0.0, %v5740
        %v5742 = vpop.f32.mrf.mxu0
        %5743 = vmatprep.mubr.bf16.mxu0 0
        %5744 = vmatmul.mubr.bf16.gmra.mxu0 %v5649
        %v5745 = vpop.f32.mrf.mxu0
        %v5746 = vadd.f32 0.0, %v5745
        %v5747 = vpop.f32.mrf.mxu0
        %v5748 = vpop.f32.mrf.mxu0
        %v5749 = vadd.f32 0.0, %v5748
        %v5750 = vpop.f32.mrf.mxu0
        %5751 = vmatprep.mubr.bf16.mxu0 0
        %5752 = vmatmul.mubr.bf16.gmra.mxu0 %v5652
        %v5753 = vpop.f32.mrf.mxu0
        %v5754 = vadd.f32 0.0, %v5753
        %v5755 = vpop.f32.mrf.mxu0
        %v5756 = vpop.f32.mrf.mxu0
        %v5757 = vadd.f32 0.0, %v5756
        %v5758 = vpop.f32.mrf.mxu0
        %5759 = vmatprep.mubr.bf16.mxu0 0
        %5760 = vmatmul.mubr.bf16.gmra.mxu0 %v5655
        %v5761 = vpop.f32.mrf.mxu0
        %v5762 = vadd.f32 0.0, %v5761
        %v5763 = vpop.f32.mrf.mxu0
        %v5764 = vpop.f32.mrf.mxu0
        %v5765 = vadd.f32 0.0, %v5764
        %v5766 = vpop.f32.mrf.mxu0
        %5767 = vmatprep.mubr.bf16.mxu0 0
        %5768 = vmatmul.mubr.bf16.gmra.mxu0 %v5658
        %v5769 = vpop.f32.mrf.mxu0
        %v5770 = vadd.f32 0.0, %v5769
        %v5771 = vpop.f32.mrf.mxu0
        %v5772 = vpop.f32.mrf.mxu0
        %v5773 = vadd.f32 0.0, %v5772
        %v5774 = vpop.f32.mrf.mxu0
        %5775 = vmatprep.mubr.bf16.mxu0 0
        %5776 = vmatmul.mubr.bf16.gmra.mxu0 %v5661
        %v5777 = vpop.f32.mrf.mxu0
        %v5778 = vadd.f32 0.0, %v5777
        %v5779 = vpop.f32.mrf.mxu0
        %v5780 = vpop.f32.mrf.mxu0
        %v5781 = vadd.f32 0.0, %v5780
        %v5782 = vpop.f32.mrf.mxu0
        %5783 = vmatprep.mubr.bf16.mxu0 0
        %5784 = vmatmul.mubr.bf16.gmra.mxu0 %v5664
        %v5785 = vpop.f32.mrf.mxu0
        %v5786 = vadd.f32 0.0, %v5785
        %v5787 = vpop.f32.mrf.mxu0
        %v5788 = vpop.f32.mrf.mxu0
        %v5789 = vadd.f32 0.0, %v5788
        %v5790 = vpop.f32.mrf.mxu0
        %5791 = vmatprep.mubr.bf16.mxu0 0
        %5792 = vmatmul.mubr.bf16.gmra.mxu0 %v5667
        %v5793 = vpop.f32.mrf.mxu0
        %v5794 = vadd.f32 0.0, %v5793
        %v5795 = vpop.f32.mrf.mxu0
        %v5796 = vpop.f32.mrf.mxu0
        %v5797 = vadd.f32 0.0, %v5796
        %v5798 = vpop.f32.mrf.mxu0
        %5799 = vmatprep.mubr.bf16.mxu0 0
        %5800 = vmatmul.mubr.bf16.gmra.mxu0 %v5670
        %v5801 = vpop.f32.mrf.mxu0
        %v5802 = vadd.f32 0.0, %v5801
        %v5803 = vpop.f32.mrf.mxu0
        %v5804 = vpop.f32.mrf.mxu0
        %v5805 = vadd.f32 0.0, %v5804
        %v5806 = vpop.f32.mrf.mxu0
        %5807 = vmatprep.mubr.bf16.mxu0 0
        %5808 = vmatmul.mubr.bf16.gmra.mxu0 %v5673
        %v5809 = vpop.f32.mrf.mxu0
        %v5810 = vadd.f32 0.0, %v5809
        %v5811 = vpop.f32.mrf.mxu0
        %v5812 = vpop.f32.mrf.mxu0
        %v5813 = vadd.f32 0.0, %v5812
        %v5814 = vpop.f32.mrf.mxu0
        %5815 = vmatprep.mubr.bf16.mxu0 0
        %5816 = vmatmul.mubr.bf16.gmra.mxu0 %v5676
        %v5817 = vpop.f32.mrf.mxu0
        %v5818 = vadd.f32 0.0, %v5817
        %v5819 = vpop.f32.mrf.mxu0
        %v5820 = vpop.f32.mrf.mxu0
        %v5821 = vadd.f32 0.0, %v5820
        %v5822 = vpop.f32.mrf.mxu0
        %5823 = vmatprep.mubr.bf16.mxu0 0
        %5824 = vmatmul.mubr.bf16.gmra.mxu0 %v5679
        %v5825 = vpop.f32.mrf.mxu0
        %v5826 = vadd.f32 0.0, %v5825
        %v5827 = vpop.f32.mrf.mxu0
        %v5828 = vpop.f32.mrf.mxu0
        %v5829 = vadd.f32 0.0, %v5828
        %v5830 = vpop.f32.mrf.mxu0
        %5831 = vmatprep.mubr.bf16.mxu0 0
        %5832 = vmatmul.mubr.bf16.gmra.mxu0 %v5682
        %v5833 = vpop.f32.mrf.mxu0
        %v5834 = vadd.f32 0.0, %v5833
        %v5835 = vpop.f32.mrf.mxu0
        %v5836 = vpop.f32.mrf.mxu0
        %v5837 = vadd.f32 0.0, %v5836
        %v5838 = vpop.f32.mrf.mxu0
        %5839 = vmatprep.mubr.bf16.mxu0 0
        %5840 = vmatmul.mubr.bf16.gmra.mxu0 %v5685
        %v5841 = vpop.f32.mrf.mxu0
        %v5842 = vadd.f32 0.0, %v5841
        %v5843 = vpop.f32.mrf.mxu0
        %v5844 = vpop.f32.mrf.mxu0
        %v5845 = vadd.f32 0.0, %v5844
        %v5846 = vpop.f32.mrf.mxu0
        %5847 = vdwg.mxu0
        %v5848 = vadd.f32 %v5547, %v5722
        %v5849 = vadd.f32 %v5548, %v5725
        %v5850 = vadd.f32 %v5549, %v5730
        %v5851 = vadd.f32 %v5550, %v5733
        %v5852 = vadd.f32 %v5551, %v5738
        %v5853 = vadd.f32 %v5552, %v5741
        %v5854 = vadd.f32 %v5553, %v5746
        %v5855 = vadd.f32 %v5554, %v5749
        %v5856 = vadd.f32 %v5555, %v5754
        %v5857 = vadd.f32 %v5556, %v5757
        %v5858 = vadd.f32 %v5557, %v5762
        %v5859 = vadd.f32 %v5558, %v5765
        %v5860 = vadd.f32 %v5559, %v5770
        %v5861 = vadd.f32 %v5560, %v5773
        %v5862 = vadd.f32 %v5561, %v5778
        %v5863 = vadd.f32 %v5562, %v5781
        %v5864 = vadd.f32 %v5563, %v5786
        %v5865 = vadd.f32 %v5564, %v5789
        %v5866 = vadd.f32 %v5565, %v5794
        %v5867 = vadd.f32 %v5566, %v5797
        %v5868 = vadd.f32 %v5567, %v5802
        %v5869 = vadd.f32 %v5568, %v5805
        %v5870 = vadd.f32 %v5569, %v5810
        %v5871 = vadd.f32 %v5570, %v5813
        %v5872 = vadd.f32 %v5571, %v5818
        %v5873 = vadd.f32 %v5572, %v5821
        %v5874 = vadd.f32 %v5573, %v5826
        %v5875 = vadd.f32 %v5574, %v5829
        %v5876 = vadd.f32 %v5575, %v5834
        %v5877 = vadd.f32 %v5576, %v5837
        %v5878 = vadd.f32 %v5577, %v5842
        %v5879 = vadd.f32 %v5578, %v5845
        %v5880 = vld [vmem:[%s4] sm:$0x1]
        %v5882 = vlaneseq
        %v5883 = vshrl.u32 %v5882, 7
        %v5884 = vsub.s32 0, %v5883
        %v5885 = vrot.slane %v5880, %v5884
        %v5887 = vadd.f32 %v5848, %v5885
        %v5888 = vadd.f32 %v5849, %v5885
        %v5889 = vadd.f32 %v5850, %v5885
        %v5890 = vadd.f32 %v5851, %v5885
        %v5891 = vadd.f32 %v5852, %v5885
        %v5892 = vadd.f32 %v5853, %v5885
        %v5893 = vadd.f32 %v5854, %v5885
        %v5894 = vadd.f32 %v5855, %v5885
        %v5895 = vadd.f32 %v5856, %v5885
        %v5896 = vadd.f32 %v5857, %v5885
        %v5897 = vadd.f32 %v5858, %v5885
        %v5898 = vadd.f32 %v5859, %v5885
        %v5899 = vadd.f32 %v5860, %v5885
        %v5900 = vadd.f32 %v5861, %v5885
        %v5901 = vadd.f32 %v5862, %v5885
        %v5902 = vadd.f32 %v5863, %v5885
        %v5903 = vadd.f32 %v5864, %v5885
        %v5904 = vadd.f32 %v5865, %v5885
        %v5905 = vadd.f32 %v5866, %v5885
        %v5906 = vadd.f32 %v5867, %v5885
        %v5907 = vadd.f32 %v5868, %v5885
        %v5908 = vadd.f32 %v5869, %v5885
        %v5909 = vadd.f32 %v5870, %v5885
        %v5910 = vadd.f32 %v5871, %v5885
        %v5911 = vadd.f32 %v5872, %v5885
        %v5912 = vadd.f32 %v5873, %v5885
        %v5913 = vadd.f32 %v5874, %v5885
        %v5914 = vadd.f32 %v5875, %v5885
        %v5915 = vadd.f32 %v5876, %v5885
        %v5916 = vadd.f32 %v5877, %v5885
        %v5917 = vadd.f32 %v5878, %v5885
        %v5918 = vadd.f32 %v5879, %v5885
        %v5919 = vmax.f32 %v5887, 0.0
        %v5920 = vmax.f32 %v5888, 0.0
        %v5921 = vmax.f32 %v5889, 0.0
        %v5922 = vmax.f32 %v5890, 0.0
        %v5923 = vmax.f32 %v5891, 0.0
        %v5924 = vmax.f32 %v5892, 0.0
        %v5925 = vmax.f32 %v5893, 0.0
        %v5926 = vmax.f32 %v5894, 0.0
        %v5927 = vmax.f32 %v5895, 0.0
        %v5928 = vmax.f32 %v5896, 0.0
        %v5929 = vmax.f32 %v5897, 0.0
        %v5930 = vmax.f32 %v5898, 0.0
        %v5931 = vmax.f32 %v5899, 0.0
        %v5932 = vmax.f32 %v5900, 0.0
        %v5933 = vmax.f32 %v5901, 0.0
        %v5934 = vmax.f32 %v5902, 0.0
        %v5935 = vmax.f32 %v5903, 0.0
        %v5936 = vmax.f32 %v5904, 0.0
        %v5937 = vmax.f32 %v5905, 0.0
        %v5938 = vmax.f32 %v5906, 0.0
        %v5939 = vmax.f32 %v5907, 0.0
        %v5940 = vmax.f32 %v5908, 0.0
        %v5941 = vmax.f32 %v5909, 0.0
        %v5942 = vmax.f32 %v5910, 0.0
        %v5943 = vmax.f32 %v5911, 0.0
        %v5944 = vmax.f32 %v5912, 0.0
        %v5945 = vmax.f32 %v5913, 0.0
        %v5946 = vmax.f32 %v5914, 0.0
        %v5947 = vmax.f32 %v5915, 0.0
        %v5948 = vmax.f32 %v5916, 0.0
        %v5949 = vmax.f32 %v5917, 0.0
        %v5950 = vmax.f32 %v5918, 0.0
        %vm5951 = vcmask 523264
        %v5952 = vsel %vm5951, %v5919, 0.0
        %v5953 = vsel %vm5951, %v5920, 0.0
        %v5954 = vadd.f32 %v5952, %v5953
        %v5955 = vsel %vm5951, %v5921, 0.0
        %v5956 = vadd.f32 %v5954, %v5955
        %v5957 = vsel %vm5951, %v5922, 0.0
        %v5958 = vadd.f32 %v5956, %v5957
        %v5959 = vsel %vm5951, %v5923, 0.0
        %v5960 = vadd.f32 %v5958, %v5959
        %v5961 = vsel %vm5951, %v5924, 0.0
        %v5962 = vadd.f32 %v5960, %v5961
        %v5963 = vsel %vm5951, %v5925, 0.0
        %v5964 = vadd.f32 %v5962, %v5963
        %v5965 = vsel %vm5951, %v5926, 0.0
        %v5966 = vadd.f32 %v5964, %v5965
        %v5967 = vsel %vm5951, %v5927, 0.0
        %v5968 = vadd.f32 %v5966, %v5967
        %v5969 = vsel %vm5951, %v5928, 0.0
        %v5970 = vadd.f32 %v5968, %v5969
        %v5971 = vsel %vm5951, %v5929, 0.0
        %v5972 = vadd.f32 %v5970, %v5971
        %v5973 = vsel %vm5951, %v5930, 0.0
        %v5974 = vadd.f32 %v5972, %v5973
        %v5975 = vsel %vm5951, %v5931, 0.0
        %v5976 = vadd.f32 %v5974, %v5975
        %v5977 = vsel %vm5951, %v5932, 0.0
        %v5978 = vadd.f32 %v5976, %v5977
        %v5979 = vsel %vm5951, %v5933, 0.0
        %v5980 = vadd.f32 %v5978, %v5979
        %v5981 = vsel %vm5951, %v5934, 0.0
        %v5982 = vadd.f32 %v5980, %v5981
        %v5983 = vsel %vm5951, %v5935, 0.0
        %v5984 = vadd.f32 %v5982, %v5983
        %v5985 = vsel %vm5951, %v5936, 0.0
        %v5986 = vadd.f32 %v5984, %v5985
        %v5987 = vsel %vm5951, %v5937, 0.0
        %v5988 = vadd.f32 %v5986, %v5987
        %v5989 = vsel %vm5951, %v5938, 0.0
        %v5990 = vadd.f32 %v5988, %v5989
        %v5991 = vsel %vm5951, %v5939, 0.0
        %v5992 = vadd.f32 %v5990, %v5991
        %v5993 = vsel %vm5951, %v5940, 0.0
        %v5994 = vadd.f32 %v5992, %v5993
        %v5995 = vsel %vm5951, %v5941, 0.0
        %v5996 = vadd.f32 %v5994, %v5995
        %v5997 = vsel %vm5951, %v5942, 0.0
        %v5998 = vadd.f32 %v5996, %v5997
        %v5999 = vsel %vm5951, %v5943, 0.0
        %v6000 = vadd.f32 %v5998, %v5999
        %v6001 = vsel %vm5951, %v5944, 0.0
        %v6002 = vadd.f32 %v6000, %v6001
        %v6003 = vsel %vm5951, %v5945, 0.0
        %v6004 = vadd.f32 %v6002, %v6003
        %v6005 = vsel %vm5951, %v5946, 0.0
        %v6006 = vadd.f32 %v6004, %v6005
        %v6007 = vsel %vm5951, %v5947, 0.0
        %v6008 = vadd.f32 %v6006, %v6007
        %v6009 = vsel %vm5951, %v5948, 0.0
        %v6010 = vadd.f32 %v6008, %v6009
        %v6011 = vsel %vm5951, %v5949, 0.0
        %v6012 = vadd.f32 %v6010, %v6011
        %v6013 = vsel %vm5951, %v5950, 0.0
        %v6014 = vadd.f32 %v6012, %v6013
        %v6015 = vrot.slane %v6014, 4
        %v6016 = vadd.f32 %v6014, %v6015
        %v6017 = vrot.slane %v6016, 2
        %v6018 = vadd.f32 %v6016, %v6017
        %v6019 = vrot.slane %v6018, 1
        %v6020 = vadd.f32 %v6018, %v6019
        %v6021 = vmul.f32 %v6020, 0.00390625
        %v6022 = vld [vmem:[%s5] sm:$0xff]
        %v6023 = vld [vmem:[%s5 + $0x8] sm:$0xff]
        %v6024 = vld [vmem:[%s5 + $0x10] sm:$0xff]
        %v6025 = vld [vmem:[%s5 + $0x18] sm:$0xff]
        %v6026 = vld [vmem:[%s5 + $0x20] sm:$0xff]
        %v6027 = vld [vmem:[%s5 + $0x28] sm:$0xff]
        %v6028 = vld [vmem:[%s5 + $0x30] sm:$0xff]
        %v6029 = vld [vmem:[%s5 + $0x38] sm:$0xff]
        %v6030 = vld [vmem:[%s6] sm:$0x1]
        %v6032 = vsel %vm5951, %v6021, 0
        %6034 = vmatprep.subr.mxu0 0.0
        %6035 = vmatpush1.msra.mxu0 0.0
        %6036 = vmatprep.subr.mxu0 0.0
        %6037 = vmatpush1.msra.mxu0 0.0
        %6038 = vmatprep.subr.mxu0 0.0
        %6039 = vmatpush1.msra.mxu0 0.0
        %6040 = vmatprep.subr.mxu0 0.0
        %6041 = vmatpush1.msra.mxu0 0.0
        %6042 = vmatprep.subr.mxu0 0.0
        %6043 = vmatpush1.msra.mxu0 0.0
        %6044 = vmatprep.subr.mxu0 0.0
        %6045 = vmatpush1.msra.mxu0 0.0
        %6046 = vmatprep.subr.mxu0 0.0
        %6047 = vmatpush1.msra.mxu0 0.0
        %6048 = vmatprep.subr.mxu0 0.0
        %6049 = vmatpush1.msra.mxu0 0.0
        %6050 = vmatprep.subr.mxu0 0.0
        %6051 = vmatpush1.msra.mxu0 %v6029
        %6052 = vmatprep.subr.mxu0 0.0
        %6053 = vmatpush1.msra.mxu0 %v6028
        %6054 = vmatprep.subr.mxu0 0.0
        %6055 = vmatpush1.msra.mxu0 %v6027
        %6056 = vmatprep.subr.mxu0 0.0
        %6057 = vmatpush1.msra.mxu0 %v6026
        %6058 = vmatprep.subr.mxu0 0.0
        %6059 = vmatpush1.msra.mxu0 %v6025
        %6060 = vmatprep.subr.mxu0 0.0
        %6061 = vmatpush1.msra.mxu0 %v6024
        %6062 = vmatprep.subr.mxu0 0.0
        %6063 = vmatpush1.msra.mxu0 %v6023
        %6064 = vmatprep.subr.mxu0 0.0
        %6065 = vmatpush1.msra.mxu0 %v6022
        %6066 = vmatprep.subr.mxu0 0.0
        %6067 = vmatpush2.msra.mxu0 0.0
        %6068 = vmatprep.subr.mxu0 0.0
        %6069 = vmatpush2.msra.mxu0 0.0
        %6070 = vmatprep.subr.mxu0 0.0
        %6071 = vmatpush2.msra.mxu0 0.0
        %6072 = vmatprep.subr.mxu0 0.0
        %6073 = vmatpush2.msra.mxu0 0.0
        %6074 = vmatprep.subr.mxu0 0.0
        %6075 = vmatpush2.msra.mxu0 0.0
        %6076 = vmatprep.subr.mxu0 0.0
        %6077 = vmatpush2.msra.mxu0 0.0
        %6078 = vmatprep.subr.mxu0 0.0
        %6079 = vmatpush2.msra.mxu0 0.0
        %6080 = vmatprep.subr.mxu0 0.0
        %6081 = vmatpush2.msra.mxu0 0.0
        %6082 = vmatprep.subr.mxu0 0.0
        %6083 = vmatpush2.msra.mxu0 0.0
        %6084 = vmatprep.subr.mxu0 0.0
        %6085 = vmatpush2.msra.mxu0 0.0
        %6086 = vmatprep.subr.mxu0 0.0
        %6087 = vmatpush2.msra.mxu0 0.0
        %6088 = vmatprep.subr.mxu0 0.0
        %6089 = vmatpush2.msra.mxu0 0.0
        %6090 = vmatprep.subr.mxu0 0.0
        %6091 = vmatpush2.msra.mxu0 0.0
        %6092 = vmatprep.subr.mxu0 0.0
        %6093 = vmatpush2.msra.mxu0 0.0
        %6094 = vmatprep.subr.mxu0 0.0
        %6095 = vmatpush2.msra.mxu0 0.0
        %6096 = vmatprep.subr.mxu0 0.0
        %6097 = vmatpush2.msra.mxu0 0.0
        %6098 = vmatprep.mubr.f32.mxu0 0.0
        %6099 = vmatmul.mubr.f32.gmra.mxu0 %v6032
        %v6100 = vpop.f32.mrf.mxu0
        %v6101 = vadd.f32 %v6030, %v6100
        %v6102 = vpop.f32.mrf.mxu0
        %6103 = vdwg.mxu0
        %vm6104 = vcmp.gt.f32.partialorder %v6101, 0.0
        %v6105 = vmul.f32 %v6101, 0.01
        %v6106 = vsel %vm6104, %v6101, %v6105
        %v6107 = vld [vmem:[%s7] sm:$0xff]
        %v6108 = vld [vmem:[%s7 + $0x8] sm:$0xff]
        %v6109 = vld [vmem:[%s7 + $0x10] sm:$0xff]
        %v6110 = vld [vmem:[%s7 + $0x18] sm:$0xff]
        %v6111 = vld [vmem:[%s8] sm:$0x1]
        %v6113 = vsel %vm3109, %v6106, 0
        %6115 = vmatprep.subr.mxu0 0.0
        %6116 = vmatpush1.msra.mxu0 0.0
        %6117 = vmatprep.subr.mxu0 0.0
        %6118 = vmatpush1.msra.mxu0 0.0
        %6119 = vmatprep.subr.mxu0 0.0
        %6120 = vmatpush1.msra.mxu0 0.0
        %6121 = vmatprep.subr.mxu0 0.0
        %6122 = vmatpush1.msra.mxu0 0.0
        %6123 = vmatprep.subr.mxu0 0.0
        %6124 = vmatpush1.msra.mxu0 0.0
        %6125 = vmatprep.subr.mxu0 0.0
        %6126 = vmatpush1.msra.mxu0 0.0
        %6127 = vmatprep.subr.mxu0 0.0
        %6128 = vmatpush1.msra.mxu0 0.0
        %6129 = vmatprep.subr.mxu0 0.0
        %6130 = vmatpush1.msra.mxu0 0.0
        %6131 = vmatprep.subr.mxu0 0.0
        %6132 = vmatpush1.msra.mxu0 0.0
        %6133 = vmatprep.subr.mxu0 0.0
        %6134 = vmatpush1.msra.mxu0 0.0
        %6135 = vmatprep.subr.mxu0 0.0
        %6136 = vmatpush1.msra.mxu0 0.0
        %6137 = vmatprep.subr.mxu0 0.0
        %6138 = vmatpush1.msra.mxu0 0.0
        %6139 = vmatprep.subr.mxu0 0.0
        %6140 = vmatpush1.msra.mxu0 %v6110
        %6141 = vmatprep.subr.mxu0 0.0
        %6142 = vmatpush1.msra.mxu0 %v6109
        %6143 = vmatprep.subr.mxu0 0.0
        %6144 = vmatpush1.msra.mxu0 %v6108
        %6145 = vmatprep.subr.mxu0 0.0
        %6146 = vmatpush1.msra.mxu0 %v6107
        %6147 = vmatprep.subr.mxu0 0.0
        %6148 = vmatpush2.msra.mxu0 0.0
        %6149 = vmatprep.subr.mxu0 0.0
        %6150 = vmatpush2.msra.mxu0 0.0
        %6151 = vmatprep.subr.mxu0 0.0
        %6152 = vmatpush2.msra.mxu0 0.0
        %6153 = vmatprep.subr.mxu0 0.0
        %6154 = vmatpush2.msra.mxu0 0.0
        %6155 = vmatprep.subr.mxu0 0.0
        %6156 = vmatpush2.msra.mxu0 0.0
        %6157 = vmatprep.subr.mxu0 0.0
        %6158 = vmatpush2.msra.mxu0 0.0
        %6159 = vmatprep.subr.mxu0 0.0
        %6160 = vmatpush2.msra.mxu0 0.0
        %6161 = vmatprep.subr.mxu0 0.0
        %6162 = vmatpush2.msra.mxu0 0.0
        %6163 = vmatprep.subr.mxu0 0.0
        %6164 = vmatpush2.msra.mxu0 0.0
        %6165 = vmatprep.subr.mxu0 0.0
        %6166 = vmatpush2.msra.mxu0 0.0
        %6167 = vmatprep.subr.mxu0 0.0
        %6168 = vmatpush2.msra.mxu0 0.0
        %6169 = vmatprep.subr.mxu0 0.0
        %6170 = vmatpush2.msra.mxu0 0.0
        %6171 = vmatprep.subr.mxu0 0.0
        %6172 = vmatpush2.msra.mxu0 0.0
        %6173 = vmatprep.subr.mxu0 0.0
        %6174 = vmatpush2.msra.mxu0 0.0
        %6175 = vmatprep.subr.mxu0 0.0
        %6176 = vmatpush2.msra.mxu0 0.0
        %6177 = vmatprep.subr.mxu0 0.0
        %6178 = vmatpush2.msra.mxu0 0.0
        %6179 = vmatprep.mubr.f32.mxu0 0.0
        %6180 = vmatmul.mubr.f32.gmra.mxu0 %v6113
        %v6181 = vpop.f32.mrf.mxu0
        %v6182 = vadd.f32 %v6111, %v6181
        %v6183 = vpop.f32.mrf.mxu0
        %6184 = vdwg.mxu0
        %vm6185 = vcmask 32768
        %6186 = vst.msk [vmem:[%s324] sm:$0x1] %vm6185, %v6182
        %s6187 = sand.u32 %s225, 1
        %s6188 = scalar_lea.sflag [#allocation4], %s6187
        %s6189 = sand.u32 %s225, 1
        %s6190 = scalar_lea.vmem [#allocation3], %s6189
        // Predicated region
        $region57: #{tpu_custom_call.1} parent=55 // pred_check
          %p6191 = pneg %p235
        $region58: #{tpu_custom_call.1} parent=55 // pred_check_branch
          %6193 = sbr.rel (%p6191) target = $region60
        $region59: #{tpu_custom_call.1} parent=55 // pred_region
          %s6195 = ssub.s32 16, 16
          %6196 = vsyncadd %s6188, %s6195
          %s6197 = smul.addr %s23, 16
          %s6198 = scalar_lea.hbm %s9, %s6197
          %s6200 = sshll.u32 %s6190, 4
          %s6201 = int_to_ptr.vmem [resolvable:$true] %s6200
          %6203 = dma.vmem_to_hbm [thread:$0]  %s6201, 16, %s6198, %s6188
        $region60: #{tpu_custom_call.1} parent=55 // pred_fallthru
          _
      $region56: #{tpu_custom_call.1} parent=5 // pred_fallthru
        _
      %p6204 = scmp.le.s32.totalorder 2, %s18
      // Predicated region
      $region61: #{tpu_custom_call.1} parent=5 // pred_check
        %p6205 = pneg %p6204
      $region62: #{tpu_custom_call.1} parent=5 // pred_check_branch
        %6207 = sbr.rel (%p6205) target = $region64
      $region63: #{tpu_custom_call.1} parent=5 // pred_region
        %s6208 = ssub.s32 %s18, 2
        // Predicated region
        $region65: #{tpu_custom_call.1} parent=63 // pred_check
          %p6209 = pneg %p241
        $region66: #{tpu_custom_call.1} parent=63 // pred_check_branch
          %6211 = sbr.rel (%p6209) target = $region68
        $region67: #{tpu_custom_call.1} parent=63 // pred_region
          %s6212 = sand.u32 %s226, 1
          %s6213 = scalar_lea.sflag [#allocation4], %s6212
          %s6214 = sand.u32 %s226, 1
          %s6215 = scalar_lea.vmem [#allocation3], %s6214
          %6216 = dma.done %s6213, 16
        $region68: #{tpu_custom_call.1} parent=63 // pred_fallthru
          _
      $region64: #{tpu_custom_call.1} parent=5 // pred_fallthru
        _
    $region6: #{tpu_custom_call.1} parent=1 // loop_footer
      %s22 = sadd.s32 1, %s18
    $region7: #{tpu_custom_call.1} parent=1 // loop_footer_branch
      %17 = sbr.rel target = $region3
    $region8: #{tpu_custom_call.1} parent=1 // loop_exit
      _
    %6217 = vsyncpa [#allocation4], 1
    %s6218 = scalar_lea.sflag [#allocation4], 1
    %6219 = vsyncpa %s6218, 1

</llo_original>
